<compile_context>
chip_gen: v5e
topology: v5e:2x2
jax: 0.10.0
libtpu: 0.0.40
codegen_flags: <defaults>
</compile_context>

<pallas_src>
import math

import jax
import jax.numpy as jnp
import numpy as np
from jax.experimental import pallas as pl
from jax.experimental.pallas import tpu as pltpu

# ---------------------------------------------------------------------------
# fixed sizes from the module
I_SIZES = (39, 500, 500, 20)   # fc_i_layers
O_SIZES = (4, 500, 500, 30)    # fc_o_layers
STATE_SIZE = 32                # rnn_cell.state_size (synthetic)
CELL_OUT = O_SIZES[0]          # rnn_cell output size = 4
DT = 0.1
TAU = 1.0

MAX_T_CHUNK = 32               # timesteps per RNN grid step (unrolled)


def _round_up(n, m):
    return ((n + m - 1) // m) * m


def _default_row_tile():
    # v6e has 128 MiB VMEM -> bigger row tiles amortize per-grid-step overhead
    # further; v7x (64 MiB physical) and v5e (16 MiB scoped default) -> 512.
    try:
        kind = jax.devices()[0].device_kind.lower()
    except Exception:
        return 512
    if "v6" in kind:
        return 1024
    return 512


# ---------------------------------------------------------------------------
# Pallas kernels
def _mlp3_kernel(x_ref, w0_ref, b0_ref, w1_ref, b1_ref, w2_ref, b2_ref, o_ref):
    """3-layer MLP: tanh(L0) -> tanh(L1) -> L2 (no final nonlinearity).

    Weights are bf16 (MXU-native, half the HBM traffic / VMEM footprint);
    accumulation, bias add and tanh stay f32.
    """
    x = x_ref[...].astype(jnp.bfloat16)
    h = jnp.tanh(jnp.dot(x, w0_ref[...],
                         preferred_element_type=jnp.float32) + b0_ref[...])
    h = jnp.tanh(jnp.dot(h.astype(jnp.bfloat16), w1_ref[...],
                         preferred_element_type=jnp.float32) + b1_ref[...])
    o_ref[...] = jnp.dot(h.astype(jnp.bfloat16), w2_ref[...],
                         preferred_element_type=jnp.float32) + b2_ref[...]


def _rnn_kernel(x_ref, whh_ref, out_ref, h_ref):
    """T_CHUNK timesteps of the folded LTC cell per grid step.

    x_ref already holds pre_x = (input-MLP out) @ W_ih + b_h (the input
    projection was folded into the input MLP's last linear layer), so each
    step only needs h @ W_hh.  The kernel emits h (width 32); the output
    projection is folded into the output MLP.  Hidden state persists in a
    VMEM scratch across the sequential grid steps.
    """
    @pl.when(pl.program_id(0) == 0)
    def _():
        h_ref[...] = jnp.zeros_like(h_ref)

    whh = whh_ref[...]
    h = h_ref[...]
    for t in range(x_ref.shape[0]):          # static trip count -> unrolled
        pre = x_ref[t] + jnp.dot(h, whh, preferred_element_type=jnp.float32)
        h = h + DT * (-h + jnp.tanh(pre)) / TAU
        out_ref[t] = h
    h_ref[...] = h


# ---------------------------------------------------------------------------
# wrappers
def mlp3(x, params):
    """x: (N, in) f32 -> (N, out) f32.  params = [(w_bf16, b_f32)] * 3."""
    n, in_dim = x.shape
    out_dim = params[-1][0].shape[1]
    flat = [p for wb in params for p in wb]

    tile = min(_default_row_tile(), _round_up(n, 8))
    n_pad = _round_up(n, tile)
    if n_pad != n:
        x = jnp.pad(x, ((0, n_pad - n), (0, 0)))

    in_specs = [pl.BlockSpec((tile, in_dim), lambda i: (i, 0))]
    for w, b in params:
        in_specs.append(pl.BlockSpec(w.shape, lambda i: (0, 0)))   # resident
        in_specs.append(pl.BlockSpec(b.shape, lambda i: (0, 0)))   # resident

    out = pl.pallas_call(
        _mlp3_kernel,
        out_shape=jax.ShapeDtypeStruct((n_pad, out_dim), jnp.float32),
        grid=(n_pad // tile,),
        in_specs=in_specs,
        out_specs=pl.BlockSpec((tile, out_dim), lambda i: (i, 0)),
        compiler_params=pltpu.CompilerParams(
            dimension_semantics=("parallel",)),
    )(x, *flat)
    return out[:n]


def ltc_rnn(pre_tm, whh):
    """pre_tm: (T, B, H) time-major pre-activations -> (T, B, H) hidden states."""
    T, B, H = pre_tm.shape
    t_chunk = min(MAX_T_CHUNK, _round_up(T, 8))
    t_pad = _round_up(T, t_chunk)
    if t_pad != T:
        # trailing zero timesteps are computed but sliced off (causal forward).
        pre_tm = jnp.pad(pre_tm, ((0, t_pad - T), (0, 0), (0, 0)))

    out = pl.pallas_call(
        _rnn_kernel,
        out_shape=jax.ShapeDtypeStruct((t_pad, B, H), jnp.float32),
        grid_spec=pltpu.PrefetchScalarGridSpec(
            num_scalar_prefetch=0,
            grid=(t_pad // t_chunk,),
            in_specs=[
                pl.BlockSpec((t_chunk, B, H), lambda t: (t, 0, 0)),
                pl.BlockSpec((H, H), lambda t: (0, 0)),
            ],
            out_specs=pl.BlockSpec((t_chunk, B, H), lambda t: (t, 0, 0)),
            scratch_shapes=[pltpu.VMEM((B, H), jnp.float32)],
        ),
        compiler_params=pltpu.CompilerParams(
            dimension_semantics=("arbitrary",)),
    )(pre_tm, whh)
    return out[:T]


def ltc_sequence_forward(x, folded_params):
    """Full forward pass. x: (B, T, 39) float -> (B, T, 30)."""
    i_params, whh, o_params = folded_params
    x = x.astype(jnp.float32)
    B, T, _ = x.shape
    H = STATE_SIZE

    # input MLP (last layer already folded with W_ih / b_h) -> pre-activations
    pre = mlp3(x.reshape(B * T, I_SIZES[0]), i_params)          # (B*T, H)

    # recurrence: time-major, chunked over T
    pre_tm = pre.reshape(B, T, H).transpose(1, 0, 2)            # (T, B, H)
    h_tm = ltc_rnn(pre_tm, whh)                                 # (T, B, H)
    h = h_tm.transpose(1, 0, 2).reshape(B * T, H)               # (B*T, H)

    # output MLP (first layer already folded with W_ho / b_o)
    out = mlp3(h, o_params)                                     # (B*T, 30)
    return out.reshape(B, T, O_SIZES[-1]).astype(jnp.float32)


# ---------------------------------------------------------------------------
# deterministic parameter construction (nn.Linear default init style)
def _linear_init(key, fan_in, fan_out):
    kw, kb = jax.random.split(key)
    bound = 1.0 / math.sqrt(fan_in)
    w = jax.random.uniform(kw, (fan_in, fan_out), jnp.float32, -bound, bound)
    b = jax.random.uniform(kb, (1, fan_out), jnp.float32, -bound, bound)
    return w, b


def build_params(seed=0):
    key = jax.random.PRNGKey(seed)
    keys = jax.random.split(key, 16)
    i_params = [_linear_init(keys[i], I_SIZES[i], I_SIZES[i + 1])
                for i in range(3)]
    o_params = [_linear_init(keys[4 + i], O_SIZES[i], O_SIZES[i + 1])
                for i in range(3)]
    wih, bh = _linear_init(keys[8], I_SIZES[-1], STATE_SIZE)
    whh, _ = _linear_init(keys[9], STATE_SIZE, STATE_SIZE)
    who, bo = _linear_init(keys[10], STATE_SIZE, CELL_OUT)
    cell_params = (wih, whh, bh, who, bo)
    return i_params, cell_params, o_params


def fold_params(i_params, cell_params, o_params):
    """Fold the cell's input/output projections into the adjacent linear
    layers (exact: both compositions are purely linear) and cast the big MLP
    weights to bf16 for the MXU. W_hh stays f32 (tiny, accuracy-sensitive)."""
    wih, whh, bh, who, bo = cell_params
    (wi0, bi0), (wi1, bi1), (wi2, bi2) = i_params
    (wo0, bo0), (wo1, bo1), (wo2, bo2) = o_params

    wi2_f = wi2 @ wih                 # (500,20)@(20,32) -> (500,32)
    bi2_f = bi2 @ wih + bh            # (1,32)
    wo0_f = who @ wo0                 # (32,4)@(4,500)   -> (32,500)
    bo0_f = bo @ wo0 + bo0            # (1,500)

    bf = lambda w: w.astype(jnp.bfloat16)
    i_folded = [(bf(wi0), bi0), (bf(wi1), bi1), (bf(wi2_f), bi2_f)]
    o_folded = [(bf(wo0_f), bo0_f), (bf(wo1), bo1), (bf(wo2), bo2)]
    return i_folded, whh, o_folded


# ---------------------------------------------------------------------------
# pure-JAX reference (original, unfolded, f32) for correctness check
def reference_forward(x, i_params, cell_params, o_params):
    x = x.astype(jnp.float32)
    B, T, _ = x.shape
    out = x
    for idx, (w, b) in enumerate(i_params):
        out = out @ w + b
        if idx < len(i_params) - 1:
            out = jnp.tanh(out)
    wih, whh, bh, who, bo = cell_params
    h = jnp.zeros((B, STATE_SIZE), jnp.float32)
    ys = []
    for t in range(T):
        pre = out[:, t] @ wih + h @ whh + bh
        h = h + DT * (-h + jnp.tanh(pre)) / TAU
        ys.append(h @ who + bo)
    out = jnp.stack(ys, axis=1)
    for idx, (w, b) in enumerate(o_params):
        out = out @ w + b
        if idx < len(o_params) - 1:
            out = jnp.tanh(out)
    return out


if __name__ == "__main__":
    B, T = 2, 8
    key = jax.random.PRNGKey(0)
    x = jax.random.normal(key, (B, T, I_SIZES[0]), jnp.float32)

    i_params, cell_params, o_params = build_params(seed=0)
    folded = fold_params(i_params, cell_params, o_params)

    y = jax.jit(ltc_sequence_forward)(x, folded)
    y = jax.block_until_ready(y)

    y_ref = reference_forward(x, i_params, cell_params, o_params)
    # bf16 MXU operands -> loosened tolerance vs the f32 reference.
    np.testing.assert_allclose(np.asarray(y), np.asarray(y_ref),
                               rtol=5e-2, atol=2e-2)
    assert y.shape == (B, T, O_SIZES[-1]) and y.dtype == jnp.float32
    print("KERNEL_OK")
</pallas_src>

<mosaic_0001>
module attributes {stable_mosaic.version = 11 : i64} {
  func.func @_rnn_kernel(%arg0: i32, %arg1: memref<8x2x32xf32, #tpu.memory_space<vmem>>, %arg2: memref<32x32xf32, #tpu.memory_space<vmem>>, %arg3: memref<8x2x32xf32, #tpu.memory_space<vmem>>, %arg4: memref<2x32xf32, #tpu.memory_space<vmem>>) attributes {dimension_semantics = [#tpu.dimension_semantics<arbitrary>], iteration_bounds = array<i64: 1>, scalar_prefetch = 0 : i64, scratch_operands = 1 : i64, tpu.core_type = #tpu.core_type<tc>, window_params = [{transform_indices = @transform_0, window_bounds = array<i64: 8, 2, 32>}, {pipeline_mode = #tpu.pipeline_mode<synchronous>, transform_indices = @transform_1, window_bounds = array<i64: 32, 32>}, {transform_indices = @transform_2, window_bounds = array<i64: 8, 2, 32>}]} {
    %c0_i32 = arith.constant 0 : i32
    %0 = arith.cmpi eq, %arg0, %c0_i32 : i32
    %1 = arith.extui %0 : i1 to i32
    %c0_i32_0 = arith.constant 0 : i32
    %2 = arith.cmpi ne, %1, %c0_i32_0 : i32
    scf.if %2 {
      %cst_78 = arith.constant 0.000000e+00 : f32
      %134 = vector.broadcast %cst_78 : f32 to vector<2x32xf32>
      %c0_79 = arith.constant 0 : index
      %c0_80 = arith.constant 0 : index
      %135 = vector.load %arg4[%c0_79, %c0_80] : memref<2x32xf32, #tpu.memory_space<vmem>>, vector<2x32xf32>
      tpu.vector_store %arg4[%c0_79, %c0_80], %134 {strides = array<i32>} : memref<2x32xf32, #tpu.memory_space<vmem>>, vector<2x32xf32>,
    } else {
    }
    %c0 = arith.constant 0 : index
    %c0_1 = arith.constant 0 : index
    %3 = vector.load %arg2[%c0, %c0_1] : memref<32x32xf32, #tpu.memory_space<vmem>>, vector<32x32xf32>
    %c0_2 = arith.constant 0 : index
    %c0_3 = arith.constant 0 : index
    %4 = vector.load %arg4[%c0_2, %c0_3] : memref<2x32xf32, #tpu.memory_space<vmem>>, vector<2x32xf32>
    %c0_4 = arith.constant 0 : index
    %c0_5 = arith.constant 0 : index
    %c0_6 = arith.constant 0 : index
    %5 = vector.load %arg1[%c0_4, %c0_5, %c0_6] : memref<8x2x32xf32, #tpu.memory_space<vmem>>, vector<1x2x32xf32>
    %6 = vector.shape_cast %5 : vector<1x2x32xf32> to vector<2x32xf32>
    %cst = arith.constant dense<0.000000e+00> : vector<2x32xf32>
    %7 = tpu.matmul %4, %3, %cst {dimension_numbers = #tpu.dot_dimension_numbers<[1], [0], [0], [1], [0, 0, 1, 1], [], []>} : vector<2x32xf32>, vector<32x32xf32>, vector<2x32xf32> -> vector<2x32xf32>
    %8 = arith.addf %6, %7 : vector<2x32xf32>
    %cst_7 = arith.constant 0.000000e+00 : f32
    %9 = vector.broadcast %cst_7 : f32 to vector<2x32xf32>
    %10 = arith.subf %9, %4 : vector<2x32xf32>
    %11 = math.tanh %8 : vector<2x32xf32>
    %12 = arith.addf %10, %11 : vector<2x32xf32>
    %cst_8 = arith.constant 1.000000e-01 : f32
    %13 = vector.broadcast %cst_8 : f32 to vector<2x32xf32>
    %14 = arith.mulf %13, %12 : vector<2x32xf32>
    %cst_9 = arith.constant 1.000000e+00 : f32
    %15 = vector.broadcast %cst_9 : f32 to vector<2x32xf32>
    %16 = arith.divf %14, %15 : vector<2x32xf32>
    %17 = arith.addf %4, %16 : vector<2x32xf32>
    %c0_10 = arith.constant 0 : index
    %c0_11 = arith.constant 0 : index
    %c0_12 = arith.constant 0 : index
    %18 = vector.load %arg3[%c0_10, %c0_11, %c0_12] : memref<8x2x32xf32, #tpu.memory_space<vmem>>, vector<1x2x32xf32>
    %19 = vector.shape_cast %18 : vector<1x2x32xf32> to vector<2x32xf32>
    %20 = vector.shape_cast %17 : vector<2x32xf32> to vector<1x2x32xf32>
    tpu.vector_store %arg3[%c0_10, %c0_11, %c0_12], %20 {strides = array<i32>} : memref<8x2x32xf32, #tpu.memory_space<vmem>>, vector<1x2x32xf32>,
    %c1 = arith.constant 1 : index
    %c0_13 = arith.constant 0 : index
    %c0_14 = arith.constant 0 : index
    %21 = vector.load %arg1[%c1, %c0_13, %c0_14] : memref<8x2x32xf32, #tpu.memory_space<vmem>>, vector<1x2x32xf32>
    %22 = vector.shape_cast %21 : vector<1x2x32xf32> to vector<2x32xf32>
    %cst_15 = arith.constant dense<0.000000e+00> : vector<2x32xf32>
    %23 = tpu.matmul %17, %3, %cst_15 {dimension_numbers = #tpu.dot_dimension_numbers<[1], [0], [0], [1], [0, 0, 1, 1], [], []>} : vector<2x32xf32>, vector<32x32xf32>, vector<2x32xf32> -> vector<2x32xf32>
    %24 = arith.addf %22, %23 : vector<2x32xf32>
    %cst_16 = arith.constant 0.000000e+00 : f32
    %25 = vector.broadcast %cst_16 : f32 to vector<2x32xf32>
    %26 = arith.subf %25, %17 : vector<2x32xf32>
    %27 = math.tanh %24 : vector<2x32xf32>
    %28 = arith.addf %26, %27 : vector<2x32xf32>
    %cst_17 = arith.constant 1.000000e-01 : f32
    %29 = vector.broadcast %cst_17 : f32 to vector<2x32xf32>
    %30 = arith.mulf %29, %28 : vector<2x32xf32>
    %cst_18 = arith.constant 1.000000e+00 : f32
    %31 = vector.broadcast %cst_18 : f32 to vector<2x32xf32>
    %32 = arith.divf %30, %31 : vector<2x32xf32>
    %33 = arith.addf %17, %32 : vector<2x32xf32>
    %c1_19 = arith.constant 1 : index
    %c0_20 = arith.constant 0 : index
    %c0_21 = arith.constant 0 : index
    %34 = vector.load %arg3[%c1_19, %c0_20, %c0_21] : memref<8x2x32xf32, #tpu.memory_space<vmem>>, vector<1x2x32xf32>
    %35 = vector.shape_cast %34 : vector<1x2x32xf32> to vector<2x32xf32>
    %36 = vector.shape_cast %33 : vector<2x32xf32> to vector<1x2x32xf32>
    tpu.vector_store %arg3[%c1_19, %c0_20, %c0_21], %36 {strides = array<i32>} : memref<8x2x32xf32, #tpu.memory_space<vmem>>, vector<1x2x32xf32>,
    %c2 = arith.constant 2 : index
    %c0_22 = arith.constant 0 : index
    %c0_23 = arith.constant 0 : index
    %37 = vector.load %arg1[%c2, %c0_22, %c0_23] : memref<8x2x32xf32, #tpu.memory_space<vmem>>, vector<1x2x32xf32>
    %38 = vector.shape_cast %37 : vector<1x2x32xf32> to vector<2x32xf32>
    %cst_24 = arith.constant dense<0.000000e+00> : vector<2x32xf32>
    %39 = tpu.matmul %33, %3, %cst_24 {dimension_numbers = #tpu.dot_dimension_numbers<[1], [0], [0], [1], [0, 0, 1, 1], [], []>} : vector<2x32xf32>, vector<32x32xf32>, vector<2x32xf32> -> vector<2x32xf32>
    %40 = arith.addf %38, %39 : vector<2x32xf32>
    %cst_25 = arith.constant 0.000000e+00 : f32
    %41 = vector.broadcast %cst_25 : f32 to vector<2x32xf32>
    %42 = arith.subf %41, %33 : vector<2x32xf32>
    %43 = math.tanh %40 : vector<2x32xf32>
    %44 = arith.addf %42, %43 : vector<2x32xf32>
    %cst_26 = arith.constant 1.000000e-01 : f32
    %45 = vector.broadcast %cst_26 : f32 to vector<2x32xf32>
    %46 = arith.mulf %45, %44 : vector<2x32xf32>
    %cst_27 = arith.constant 1.000000e+00 : f32
    %47 = vector.broadcast %cst_27 : f32 to vector<2x32xf32>
    %48 = arith.divf %46, %47 : vector<2x32xf32>
    %49 = arith.addf %33, %48 : vector<2x32xf32>
    %c2_28 = arith.constant 2 : index
    %c0_29 = arith.constant 0 : index
    %c0_30 = arith.constant 0 : index
    %50 = vector.load %arg3[%c2_28, %c0_29, %c0_30] : memref<8x2x32xf32, #tpu.memory_space<vmem>>, vector<1x2x32xf32>
    %51 = vector.shape_cast %50 : vector<1x2x32xf32> to vector<2x32xf32>
    %52 = vector.shape_cast %49 : vector<2x32xf32> to vector<1x2x32xf32>
    tpu.vector_store %arg3[%c2_28, %c0_29, %c0_30], %52 {strides = array<i32>} : memref<8x2x32xf32, #tpu.memory_space<vmem>>, vector<1x2x32xf32>,
    %c3 = arith.constant 3 : index
    %c0_31 = arith.constant 0 : index
    %c0_32 = arith.constant 0 : index
    %53 = vector.load %arg1[%c3, %c0_31, %c0_32] : memref<8x2x32xf32, #tpu.memory_space<vmem>>, vector<1x2x32xf32>
    %54 = vector.shape_cast %53 : vector<1x2x32xf32> to vector<2x32xf32>
    %cst_33 = arith.constant dense<0.000000e+00> : vector<2x32xf32>
    %55 = tpu.matmul %49, %3, %cst_33 {dimension_numbers = #tpu.dot_dimension_numbers<[1], [0], [0], [1], [0, 0, 1, 1], [], []>} : vector<2x32xf32>, vector<32x32xf32>, vector<2x32xf32> -> vector<2x32xf32>
    %56 = arith.addf %54, %55 : vector<2x32xf32>
    %cst_34 = arith.constant 0.000000e+00 : f32
    %57 = vector.broadcast %cst_34 : f32 to vector<2x32xf32>
    %58 = arith.subf %57, %49 : vector<2x32xf32>
    %59 = math.tanh %56 : vector<2x32xf32>
    %60 = arith.addf %58, %59 : vector<2x32xf32>
    %cst_35 = arith.constant 1.000000e-01 : f32
    %61 = vector.broadcast %cst_35 : f32 to vector<2x32xf32>
    %62 = arith.mulf %61, %60 : vector<2x32xf32>
    %cst_36 = arith.constant 1.000000e+00 : f32
    %63 = vector.broadcast %cst_36 : f32 to vector<2x32xf32>
    %64 = arith.divf %62, %63 : vector<2x32xf32>
    %65 = arith.addf %49, %64 : vector<2x32xf32>
    %c3_37 = arith.constant 3 : index
    %c0_38 = arith.constant 0 : index
    %c0_39 = arith.constant 0 : index
    %66 = vector.load %arg3[%c3_37, %c0_38, %c0_39] : memref<8x2x32xf32, #tpu.memory_space<vmem>>, vector<1x2x32xf32>
    %67 = vector.shape_cast %66 : vector<1x2x32xf32> to vector<2x32xf32>
    %68 = vector.shape_cast %65 : vector<2x32xf32> to vector<1x2x32xf32>
    tpu.vector_store %arg3[%c3_37, %c0_38, %c0_39], %68 {strides = array<i32>} : memref<8x2x32xf32, #tpu.memory_space<vmem>>, vector<1x2x32xf32>,
    %c4 = arith.constant 4 : index
    %c0_40 = arith.constant 0 : index
    %c0_41 = arith.constant 0 : index
    %69 = vector.load %arg1[%c4, %c0_40, %c0_41] : memref<8x2x32xf32, #tpu.memory_space<vmem>>, vector<1x2x32xf32>
    %70 = vector.shape_cast %69 : vector<1x2x32xf32> to vector<2x32xf32>
    %cst_42 = arith.constant dense<0.000000e+00> : vector<2x32xf32>
    %71 = tpu.matmul %65, %3, %cst_42 {dimension_numbers = #tpu.dot_dimension_numbers<[1], [0], [0], [1], [0, 0, 1, 1], [], []>} : vector<2x32xf32>, vector<32x32xf32>, vector<2x32xf32> -> vector<2x32xf32>
    %72 = arith.addf %70, %71 : vector<2x32xf32>
    %cst_43 = arith.constant 0.000000e+00 : f32
    %73 = vector.broadcast %cst_43 : f32 to vector<2x32xf32>
    %74 = arith.subf %73, %65 : vector<2x32xf32>
    %75 = math.tanh %72 : vector<2x32xf32>
    %76 = arith.addf %74, %75 : vector<2x32xf32>
    %cst_44 = arith.constant 1.000000e-01 : f32
    %77 = vector.broadcast %cst_44 : f32 to vector<2x32xf32>
    %78 = arith.mulf %77, %76 : vector<2x32xf32>
    %cst_45 = arith.constant 1.000000e+00 : f32
    %79 = vector.broadcast %cst_45 : f32 to vector<2x32xf32>
    %80 = arith.divf %78, %79 : vector<2x32xf32>
    %81 = arith.addf %65, %80 : vector<2x32xf32>
    %c4_46 = arith.constant 4 : index
    %c0_47 = arith.constant 0 : index
    %c0_48 = arith.constant 0 : index
    %82 = vector.load %arg3[%c4_46, %c0_47, %c0_48] : memref<8x2x32xf32, #tpu.memory_space<vmem>>, vector<1x2x32xf32>
    %83 = vector.shape_cast %82 : vector<1x2x32xf32> to vector<2x32xf32>
    %84 = vector.shape_cast %81 : vector<2x32xf32> to vector<1x2x32xf32>
    tpu.vector_store %arg3[%c4_46, %c0_47, %c0_48], %84 {strides = array<i32>} : memref<8x2x32xf32, #tpu.memory_space<vmem>>, vector<1x2x32xf32>,
    %c5 = arith.constant 5 : index
    %c0_49 = arith.constant 0 : index
    %c0_50 = arith.constant 0 : index
    %85 = vector.load %arg1[%c5, %c0_49, %c0_50] : memref<8x2x32xf32, #tpu.memory_space<vmem>>, vector<1x2x32xf32>
    %86 = vector.shape_cast %85 : vector<1x2x32xf32> to vector<2x32xf32>
    %cst_51 = arith.constant dense<0.000000e+00> : vector<2x32xf32>
    %87 = tpu.matmul %81, %3, %cst_51 {dimension_numbers = #tpu.dot_dimension_numbers<[1], [0], [0], [1], [0, 0, 1, 1], [], []>} : vector<2x32xf32>, vector<32x32xf32>, vector<2x32xf32> -> vector<2x32xf32>
    %88 = arith.addf %86, %87 : vector<2x32xf32>
    %cst_52 = arith.constant 0.000000e+00 : f32
    %89 = vector.broadcast %cst_52 : f32 to vector<2x32xf32>
    %90 = arith.subf %89, %81 : vector<2x32xf32>
    %91 = math.tanh %88 : vector<2x32xf32>
    %92 = arith.addf %90, %91 : vector<2x32xf32>
    %cst_53 = arith.constant 1.000000e-01 : f32
    %93 = vector.broadcast %cst_53 : f32 to vector<2x32xf32>
    %94 = arith.mulf %93, %92 : vector<2x32xf32>
    %cst_54 = arith.constant 1.000000e+00 : f32
    %95 = vector.broadcast %cst_54 : f32 to vector<2x32xf32>
    %96 = arith.divf %94, %95 : vector<2x32xf32>
    %97 = arith.addf %81, %96 : vector<2x32xf32>
    %c5_55 = arith.constant 5 : index
    %c0_56 = arith.constant 0 : index
    %c0_57 = arith.constant 0 : index
    %98 = vector.load %arg3[%c5_55, %c0_56, %c0_57] : memref<8x2x32xf32, #tpu.memory_space<vmem>>, vector<1x2x32xf32>
    %99 = vector.shape_cast %98 : vector<1x2x32xf32> to vector<2x32xf32>
    %100 = vector.shape_cast %97 : vector<2x32xf32> to vector<1x2x32xf32>
    tpu.vector_store %arg3[%c5_55, %c0_56, %c0_57], %100 {strides = array<i32>} : memref<8x2x32xf32, #tpu.memory_space<vmem>>, vector<1x2x32xf32>,
    %c6 = arith.constant 6 : index
    %c0_58 = arith.constant 0 : index
    %c0_59 = arith.constant 0 : index
    %101 = vector.load %arg1[%c6, %c0_58, %c0_59] : memref<8x2x32xf32, #tpu.memory_space<vmem>>, vector<1x2x32xf32>
    %102 = vector.shape_cast %101 : vector<1x2x32xf32> to vector<2x32xf32>
    %cst_60 = arith.constant dense<0.000000e+00> : vector<2x32xf32>
    %103 = tpu.matmul %97, %3, %cst_60 {dimension_numbers = #tpu.dot_dimension_numbers<[1], [0], [0], [1], [0, 0, 1, 1], [], []>} : vector<2x32xf32>, vector<32x32xf32>, vector<2x32xf32> -> vector<2x32xf32>
    %104 = arith.addf %102, %103 : vector<2x32xf32>
    %cst_61 = arith.constant 0.000000e+00 : f32
    %105 = vector.broadcast %cst_61 : f32 to vector<2x32xf32>
    %106 = arith.subf %105, %97 : vector<2x32xf32>
    %107 = math.tanh %104 : vector<2x32xf32>
    %108 = arith.addf %106, %107 : vector<2x32xf32>
    %cst_62 = arith.constant 1.000000e-01 : f32
    %109 = vector.broadcast %cst_62 : f32 to vector<2x32xf32>
    %110 = arith.mulf %109, %108 : vector<2x32xf32>
    %cst_63 = arith.constant 1.000000e+00 : f32
    %111 = vector.broadcast %cst_63 : f32 to vector<2x32xf32>
    %112 = arith.divf %110, %111 : vector<2x32xf32>
    %113 = arith.addf %97, %112 : vector<2x32xf32>
    %c6_64 = arith.constant 6 : index
    %c0_65 = arith.constant 0 : index
    %c0_66 = arith.constant 0 : index
    %114 = vector.load %arg3[%c6_64, %c0_65, %c0_66] : memref<8x2x32xf32, #tpu.memory_space<vmem>>, vector<1x2x32xf32>
    %115 = vector.shape_cast %114 : vector<1x2x32xf32> to vector<2x32xf32>
    %116 = vector.shape_cast %113 : vector<2x32xf32> to vector<1x2x32xf32>
    tpu.vector_store %arg3[%c6_64, %c0_65, %c0_66], %116 {strides = array<i32>} : memref<8x2x32xf32, #tpu.memory_space<vmem>>, vector<1x2x32xf32>,
    %c7 = arith.constant 7 : index
    %c0_67 = arith.constant 0 : index
    %c0_68 = arith.constant 0 : index
    %117 = vector.load %arg1[%c7, %c0_67, %c0_68] : memref<8x2x32xf32, #tpu.memory_space<vmem>>, vector<1x2x32xf32>
    %118 = vector.shape_cast %117 : vector<1x2x32xf32> to vector<2x32xf32>
    %cst_69 = arith.constant dense<0.000000e+00> : vector<2x32xf32>
    %119 = tpu.matmul %113, %3, %cst_69 {dimension_numbers = #tpu.dot_dimension_numbers<[1], [0], [0], [1], [0, 0, 1, 1], [], []>} : vector<2x32xf32>, vector<32x32xf32>, vector<2x32xf32> -> vector<2x32xf32>
    %120 = arith.addf %118, %119 : vector<2x32xf32>
    %cst_70 = arith.constant 0.000000e+00 : f32
    %121 = vector.broadcast %cst_70 : f32 to vector<2x32xf32>
    %122 = arith.subf %121, %113 : vector<2x32xf32>
    %123 = math.tanh %120 : vector<2x32xf32>
    %124 = arith.addf %122, %123 : vector<2x32xf32>
    %cst_71 = arith.constant 1.000000e-01 : f32
    %125 = vector.broadcast %cst_71 : f32 to vector<2x32xf32>
    %126 = arith.mulf %125, %124 : vector<2x32xf32>
    %cst_72 = arith.constant 1.000000e+00 : f32
    %127 = vector.broadcast %cst_72 : f32 to vector<2x32xf32>
    %128 = arith.divf %126, %127 : vector<2x32xf32>
    %129 = arith.addf %113, %128 : vector<2x32xf32>
    %c7_73 = arith.constant 7 : index
    %c0_74 = arith.constant 0 : index
    %c0_75 = arith.constant 0 : index
    %130 = vector.load %arg3[%c7_73, %c0_74, %c0_75] : memref<8x2x32xf32, #tpu.memory_space<vmem>>, vector<1x2x32xf32>
    %131 = vector.shape_cast %130 : vector<1x2x32xf32> to vector<2x32xf32>
    %132 = vector.shape_cast %129 : vector<2x32xf32> to vector<1x2x32xf32>
    tpu.vector_store %arg3[%c7_73, %c0_74, %c0_75], %132 {strides = array<i32>} : memref<8x2x32xf32, #tpu.memory_space<vmem>>, vector<1x2x32xf32>,
    %c0_76 = arith.constant 0 : index
    %c0_77 = arith.constant 0 : index
    %133 = vector.load %arg4[%c0_76, %c0_77] : memref<2x32xf32, #tpu.memory_space<vmem>>, vector<2x32xf32>
    tpu.vector_store %arg4[%c0_76, %c0_77], %129 {strides = array<i32>} : memref<2x32xf32, #tpu.memory_space<vmem>>, vector<2x32xf32>,
    return
  }
  func.func @transform_0(%arg0: i32) -> (i32, i32, i32) {
    %c0_i32 = arith.constant 0 : i32
    %c0_i32_0 = arith.constant 0 : i32
    %c0_i32_1 = arith.constant 0 : i32
    return %arg0, %c0_i32, %c0_i32_0 : i32, i32, i32
  }
  func.func @transform_1(%arg0: i32) -> (i32, i32) {
    %c0_i32 = arith.constant 0 : i32
    %c0_i32_0 = arith.constant 0 : i32
    %c0_i32_1 = arith.constant 0 : i32
    return %c0_i32, %c0_i32_0 : i32, i32
  }
  func.func @transform_2(%arg0: i32) -> (i32, i32, i32) {
    %c0_i32 = arith.constant 0 : i32
    %c0_i32_0 = arith.constant 0 : i32
    %c0_i32_1 = arith.constant 0 : i32
    return %arg0, %c0_i32, %c0_i32_0 : i32, i32, i32
  }
}

module attributes {stable_mosaic.version = 11 : i64} {
  func.func @_mlp3_kernel(%arg0: i32, %arg1: memref<16x39xf32, #tpu.memory_space<vmem>>, %arg2: memref<39x500xbf16, #tpu.memory_space<vmem>>, %arg3: memref<1x500xf32, #tpu.memory_space<vmem>>, %arg4: memref<500x500xbf16, #tpu.memory_space<vmem>>, %arg5: memref<1x500xf32, #tpu.memory_space<vmem>>, %arg6: memref<500x32xbf16, #tpu.memory_space<vmem>>, %arg7: memref<1x32xf32, #tpu.memory_space<vmem>>, %arg8: memref<16x32xf32, #tpu.memory_space<vmem>>) attributes {dimension_semantics = [#tpu.dimension_semantics<parallel>], iteration_bounds = array<i64: 1>, scalar_prefetch = 0 : i64, scratch_operands = 0 : i64, tpu.core_type = #tpu.core_type<tc>, window_params = [{transform_indices = @transform_0, window_bounds = array<i64: 16, 39>}, {pipeline_mode = #tpu.pipeline_mode<synchronous>, transform_indices = @transform_1, window_bounds = array<i64: 39, 500>}, {pipeline_mode = #tpu.pipeline_mode<synchronous>, transform_indices = @transform_2, window_bounds = array<i64: 1, 500>}, {pipeline_mode = #tpu.pipeline_mode<synchronous>, transform_indices = @transform_3, window_bounds = array<i64: 500, 500>}, {pipeline_mode = #tpu.pipeline_mode<synchronous>, transform_indices = @transform_4, window_bounds = array<i64: 1, 500>}, {pipeline_mode = #tpu.pipeline_mode<synchronous>, transform_indices = @transform_5, window_bounds = array<i64: 500, 32>}, {pipeline_mode = #tpu.pipeline_mode<synchronous>, transform_indices = @transform_6, window_bounds = array<i64: 1, 32>}, {transform_indices = @transform_7, window_bounds = array<i64: 16, 32>}]} {
    %c0 = arith.constant 0 : index
    %c0_0 = arith.constant 0 : index
    %0 = vector.load %arg1[%c0, %c0_0] : memref<16x39xf32, #tpu.memory_space<vmem>>, vector<16x39xf32>
    %1 = arith.truncf %0 : vector<16x39xf32> to vector<16x39xbf16>
    %c0_1 = arith.constant 0 : index
    %c0_2 = arith.constant 0 : index
    %2 = vector.load %arg2[%c0_1, %c0_2] : memref<39x500xbf16, #tpu.memory_space<vmem>>, vector<39x500xbf16>
    %cst = arith.constant dense<0.000000e+00> : vector<16x500xf32>
    %3 = tpu.matmul %1, %2, %cst {dimension_numbers = #tpu.dot_dimension_numbers<[1], [0], [0], [1], [0, 0, 1, 1], [], []>} : vector<16x39xbf16>, vector<39x500xbf16>, vector<16x500xf32> -> vector<16x500xf32>
    %c0_3 = arith.constant 0 : index
    %c0_4 = arith.constant 0 : index
    %4 = vector.load %arg3[%c0_3, %c0_4] : memref<1x500xf32, #tpu.memory_space<vmem>>, vector<1x500xf32>
    %5 = vector.broadcast %4 : vector<1x500xf32> to vector<16x500xf32>
    %6 = arith.addf %3, %5 : vector<16x500xf32>
    %7 = math.tanh %6 : vector<16x500xf32>
    %8 = arith.truncf %7 : vector<16x500xf32> to vector<16x500xbf16>
    %c0_5 = arith.constant 0 : index
    %c0_6 = arith.constant 0 : index
    %9 = vector.load %arg4[%c0_5, %c0_6] : memref<500x500xbf16, #tpu.memory_space<vmem>>, vector<500x500xbf16>
    %cst_7 = arith.constant dense<0.000000e+00> : vector<16x500xf32>
    %10 = tpu.matmul %8, %9, %cst_7 {dimension_numbers = #tpu.dot_dimension_numbers<[1], [0], [0], [1], [0, 0, 1, 1], [], []>} : vector<16x500xbf16>, vector<500x500xbf16>, vector<16x500xf32> -> vector<16x500xf32>
    %c0_8 = arith.constant 0 : index
    %c0_9 = arith.constant 0 : index
    %11 = vector.load %arg5[%c0_8, %c0_9] : memref<1x500xf32, #tpu.memory_space<vmem>>, vector<1x500xf32>
    %12 = vector.broadcast %11 : vector<1x500xf32> to vector<16x500xf32>
    %13 = arith.addf %10, %12 : vector<16x500xf32>
    %14 = math.tanh %13 : vector<16x500xf32>
    %15 = arith.truncf %14 : vector<16x500xf32> to vector<16x500xbf16>
    %c0_10 = arith.constant 0 : index
    %c0_11 = arith.constant 0 : index
    %16 = vector.load %arg6[%c0_10, %c0_11] : memref<500x32xbf16, #tpu.memory_space<vmem>>, vector<500x32xbf16>
    %cst_12 = arith.constant dense<0.000000e+00> : vector<16x32xf32>
    %17 = tpu.matmul %15, %16, %cst_12 {dimension_numbers = #tpu.dot_dimension_numbers<[1], [0], [0], [1], [0, 0, 1, 1], [], []>} : vector<16x500xbf16>, vector<500x32xbf16>, vector<16x32xf32> -> vector<16x32xf32>
    %c0_13 = arith.constant 0 : index
    %c0_14 = arith.constant 0 : index
    %18 = vector.load %arg7[%c0_13, %c0_14] : memref<1x32xf32, #tpu.memory_space<vmem>>, vector<1x32xf32>
    %19 = vector.broadcast %18 : vector<1x32xf32> to vector<16x32xf32>
    %20 = arith.addf %17, %19 : vector<16x32xf32>
    %c0_15 = arith.constant 0 : index
    %c0_16 = arith.constant 0 : index
    %21 = vector.load %arg8[%c0_15, %c0_16] : memref<16x32xf32, #tpu.memory_space<vmem>>, vector<16x32xf32>
    tpu.vector_store %arg8[%c0_15, %c0_16], %20 {strides = array<i32>} : memref<16x32xf32, #tpu.memory_space<vmem>>, vector<16x32xf32>,
    return
  }
  func.func @transform_0(%arg0: i32) -> (i32, i32) {
    %c0_i32 = arith.constant 0 : i32
    %c0_i32_0 = arith.constant 0 : i32
    return %arg0, %c0_i32 : i32, i32
  }
  func.func @transform_1(%arg0: i32) -> (i32, i32) {
    %c0_i32 = arith.constant 0 : i32
    %c0_i32_0 = arith.constant 0 : i32
    %c0_i32_1 = arith.constant 0 : i32
    return %c0_i32, %c0_i32_0 : i32, i32
  }
  func.func @transform_2(%arg0: i32) -> (i32, i32) {
    %c0_i32 = arith.constant 0 : i32
    %c0_i32_0 = arith.constant 0 : i32
    %c0_i32_1 = arith.constant 0 : i32
    return %c0_i32, %c0_i32_0 : i32, i32
  }
  func.func @transform_3(%arg0: i32) -> (i32, i32) {
    %c0_i32 = arith.constant 0 : i32
    %c0_i32_0 = arith.constant 0 : i32
    %c0_i32_1 = arith.constant 0 : i32
    return %c0_i32, %c0_i32_0 : i32, i32
  }
  func.func @transform_4(%arg0: i32) -> (i32, i32) {
    %c0_i32 = arith.constant 0 : i32
    %c0_i32_0 = arith.constant 0 : i32
    %c0_i32_1 = arith.constant 0 : i32
    return %c0_i32, %c0_i32_0 : i32, i32
  }
  func.func @transform_5(%arg0: i32) -> (i32, i32) {
    %c0_i32 = arith.constant 0 : i32
    %c0_i32_0 = arith.constant 0 : i32
    %c0_i32_1 = arith.constant 0 : i32
    return %c0_i32, %c0_i32_0 : i32, i32
  }
  func.func @transform_6(%arg0: i32) -> (i32, i32) {
    %c0_i32 = arith.constant 0 : i32
    %c0_i32_0 = arith.constant 0 : i32
    %c0_i32_1 = arith.constant 0 : i32
    return %c0_i32, %c0_i32_0 : i32, i32
  }
  func.func @transform_7(%arg0: i32) -> (i32, i32) {
    %c0_i32 = arith.constant 0 : i32
    %c0_i32_0 = arith.constant 0 : i32
    return %arg0, %c0_i32 : i32, i32
  }
}

module attributes {stable_mosaic.version = 11 : i64} {
  func.func @_mlp3_kernel(%arg0: i32, %arg1: memref<16x32xf32, #tpu.memory_space<vmem>>, %arg2: memref<32x500xbf16, #tpu.memory_space<vmem>>, %arg3: memref<1x500xf32, #tpu.memory_space<vmem>>, %arg4: memref<500x500xbf16, #tpu.memory_space<vmem>>, %arg5: memref<1x500xf32, #tpu.memory_space<vmem>>, %arg6: memref<500x30xbf16, #tpu.memory_space<vmem>>, %arg7: memref<1x30xf32, #tpu.memory_space<vmem>>, %arg8: memref<16x30xf32, #tpu.memory_space<vmem>>) attributes {dimension_semantics = [#tpu.dimension_semantics<parallel>], iteration_bounds = array<i64: 1>, scalar_prefetch = 0 : i64, scratch_operands = 0 : i64, tpu.core_type = #tpu.core_type<tc>, window_params = [{transform_indices = @transform_0, window_bounds = array<i64: 16, 32>}, {pipeline_mode = #tpu.pipeline_mode<synchronous>, transform_indices = @transform_1, window_bounds = array<i64: 32, 500>}, {pipeline_mode = #tpu.pipeline_mode<synchronous>, transform_indices = @transform_2, window_bounds = array<i64: 1, 500>}, {pipeline_mode = #tpu.pipeline_mode<synchronous>, transform_indices = @transform_3, window_bounds = array<i64: 500, 500>}, {pipeline_mode = #tpu.pipeline_mode<synchronous>, transform_indices = @transform_4, window_bounds = array<i64: 1, 500>}, {pipeline_mode = #tpu.pipeline_mode<synchronous>, transform_indices = @transform_5, window_bounds = array<i64: 500, 30>}, {pipeline_mode = #tpu.pipeline_mode<synchronous>, transform_indices = @transform_6, window_bounds = array<i64: 1, 30>}, {transform_indices = @transform_7, window_bounds = array<i64: 16, 30>}]} {
    %c0 = arith.constant 0 : index
    %c0_0 = arith.constant 0 : index
    %0 = vector.load %arg1[%c0, %c0_0] : memref<16x32xf32, #tpu.memory_space<vmem>>, vector<16x32xf32>
    %1 = arith.truncf %0 : vector<16x32xf32> to vector<16x32xbf16>
    %c0_1 = arith.constant 0 : index
    %c0_2 = arith.constant 0 : index
    %2 = vector.load %arg2[%c0_1, %c0_2] : memref<32x500xbf16, #tpu.memory_space<vmem>>, vector<32x500xbf16>
    %cst = arith.constant dense<0.000000e+00> : vector<16x500xf32>
    %3 = tpu.matmul %1, %2, %cst {dimension_numbers = #tpu.dot_dimension_numbers<[1], [0], [0], [1], [0, 0, 1, 1], [], []>} : vector<16x32xbf16>, vector<32x500xbf16>, vector<16x500xf32> -> vector<16x500xf32>
    %c0_3 = arith.constant 0 : index
    %c0_4 = arith.constant 0 : index
    %4 = vector.load %arg3[%c0_3, %c0_4] : memref<1x500xf32, #tpu.memory_space<vmem>>, vector<1x500xf32>
    %5 = vector.broadcast %4 : vector<1x500xf32> to vector<16x500xf32>
    %6 = arith.addf %3, %5 : vector<16x500xf32>
    %7 = math.tanh %6 : vector<16x500xf32>
    %8 = arith.truncf %7 : vector<16x500xf32> to vector<16x500xbf16>
    %c0_5 = arith.constant 0 : index
    %c0_6 = arith.constant 0 : index
    %9 = vector.load %arg4[%c0_5, %c0_6] : memref<500x500xbf16, #tpu.memory_space<vmem>>, vector<500x500xbf16>
    %cst_7 = arith.constant dense<0.000000e+00> : vector<16x500xf32>
    %10 = tpu.matmul %8, %9, %cst_7 {dimension_numbers = #tpu.dot_dimension_numbers<[1], [0], [0], [1], [0, 0, 1, 1], [], []>} : vector<16x500xbf16>, vector<500x500xbf16>, vector<16x500xf32> -> vector<16x500xf32>
    %c0_8 = arith.constant 0 : index
    %c0_9 = arith.constant 0 : index
    %11 = vector.load %arg5[%c0_8, %c0_9] : memref<1x500xf32, #tpu.memory_space<vmem>>, vector<1x500xf32>
    %12 = vector.broadcast %11 : vector<1x500xf32> to vector<16x500xf32>
    %13 = arith.addf %10, %12 : vector<16x500xf32>
    %14 = math.tanh %13 : vector<16x500xf32>
    %15 = arith.truncf %14 : vector<16x500xf32> to vector<16x500xbf16>
    %c0_10 = arith.constant 0 : index
    %c0_11 = arith.constant 0 : index
    %16 = vector.load %arg6[%c0_10, %c0_11] : memref<500x30xbf16, #tpu.memory_space<vmem>>, vector<500x30xbf16>
    %cst_12 = arith.constant dense<0.000000e+00> : vector<16x30xf32>
    %17 = tpu.matmul %15, %16, %cst_12 {dimension_numbers = #tpu.dot_dimension_numbers<[1], [0], [0], [1], [0, 0, 1, 1], [], []>} : vector<16x500xbf16>, vector<500x30xbf16>, vector<16x30xf32> -> vector<16x30xf32>
    %c0_13 = arith.constant 0 : index
    %c0_14 = arith.constant 0 : index
    %18 = vector.load %arg7[%c0_13, %c0_14] : memref<1x30xf32, #tpu.memory_space<vmem>>, vector<1x30xf32>
    %19 = vector.broadcast %18 : vector<1x30xf32> to vector<16x30xf32>
    %20 = arith.addf %17, %19 : vector<16x30xf32>
    %c0_15 = arith.constant 0 : index
    %c0_16 = arith.constant 0 : index
    %21 = vector.load %arg8[%c0_15, %c0_16] : memref<16x30xf32, #tpu.memory_space<vmem>>, vector<16x30xf32>
    tpu.vector_store %arg8[%c0_15, %c0_16], %20 {strides = array<i32>} : memref<16x30xf32, #tpu.memory_space<vmem>>, vector<16x30xf32>,
    return
  }
  func.func @transform_0(%arg0: i32) -> (i32, i32) {
    %c0_i32 = arith.constant 0 : i32
    %c0_i32_0 = arith.constant 0 : i32
    return %arg0, %c0_i32 : i32, i32
  }
  func.func @transform_1(%arg0: i32) -> (i32, i32) {
    %c0_i32 = arith.constant 0 : i32
    %c0_i32_0 = arith.constant 0 : i32
    %c0_i32_1 = arith.constant 0 : i32
    return %c0_i32, %c0_i32_0 : i32, i32
  }
  func.func @transform_2(%arg0: i32) -> (i32, i32) {
    %c0_i32 = arith.constant 0 : i32
    %c0_i32_0 = arith.constant 0 : i32
    %c0_i32_1 = arith.constant 0 : i32
    return %c0_i32, %c0_i32_0 : i32, i32
  }
  func.func @transform_3(%arg0: i32) -> (i32, i32) {
    %c0_i32 = arith.constant 0 : i32
    %c0_i32_0 = arith.constant 0 : i32
    %c0_i32_1 = arith.constant 0 : i32
    return %c0_i32, %c0_i32_0 : i32, i32
  }
  func.func @transform_4(%arg0: i32) -> (i32, i32) {
    %c0_i32 = arith.constant 0 : i32
    %c0_i32_0 = arith.constant 0 : i32
    %c0_i32_1 = arith.constant 0 : i32
    return %c0_i32, %c0_i32_0 : i32, i32
  }
  func.func @transform_5(%arg0: i32) -> (i32, i32) {
    %c0_i32 = arith.constant 0 : i32
    %c0_i32_0 = arith.constant 0 : i32
    %c0_i32_1 = arith.constant 0 : i32
    return %c0_i32, %c0_i32_0 : i32, i32
  }
  func.func @transform_6(%arg0: i32) -> (i32, i32) {
    %c0_i32 = arith.constant 0 : i32
    %c0_i32_0 = arith.constant 0 : i32
    %c0_i32_1 = arith.constant 0 : i32
    return %c0_i32, %c0_i32_0 : i32, i32
  }
  func.func @transform_7(%arg0: i32) -> (i32, i32) {
    %c0_i32 = arith.constant 0 : i32
    %c0_i32_0 = arith.constant 0 : i32
    return %arg0, %c0_i32 : i32, i32
  }
}

</mosaic_0001>

<llo_original>
// kernel: ltc_sequence_forward.4
$region0: #{ltc_sequence_forward.4}
  #allocation0 [shape = 'u32[]', space=smem, size = 0x4, offset = 0x4, fixed_abs, tag = 'smem constant byte address 0x4 - core index']
  #allocation1 [shape = 'u32[72,128]{1,0:T(1,128)}', space=vmem, size = 0x9000, scoped, tag = 'internal scratch']
  #allocation2 [shape = 'f32[2,32]{1,0:T(2,128)}', space=vmem, size = 0x400, scoped, tag = 'scratch operand']
  %s0 = inlined_call_operand.vmem [shape: f32[8,2,32], index: 0, kind: input, shape index: {}]
  %s1 = inlined_call_operand.vmem [shape: f32[32,32], index: 1, kind: input, shape index: {}]
  %s2 = inlined_call_operand.vmem [shape: f32[8,2,32], index: 2, kind: output, shape index: {}]
  %s3 = sld [smem:[#allocation0]]
  $region22: #{ltc_sequence_forward.4} parent=0
    _
  %s5 = ssub.s32 1, %s3
  %s6 = scalar_select 0, %s5, %s3
  // Predicated region
  $region2: #{ltc_sequence_forward.4} parent=0 // pred_check
    _
  $region3: #{ltc_sequence_forward.4} parent=0 // pred_check_branch
    %8 = sbr.rel (0) target = $region5
  $region4: #{ltc_sequence_forward.4} parent=0 // pred_region
    _
  $region5: #{ltc_sequence_forward.4} parent=0 // pred_fallthru
    _
  // Predicated region
  $region6: #{ltc_sequence_forward.4} parent=0 // pred_check
    _
  $region7: #{ltc_sequence_forward.4} parent=0 // pred_check_branch
    %10 = sbr.rel (0) target = $region9
  $region8: #{ltc_sequence_forward.4} parent=0 // pred_region
    _
  $region9: #{ltc_sequence_forward.4} parent=0 // pred_fallthru
    _
  %p11 = scmp.eq.s32.totalorder 0, 0
  // Predicated region
  $region10: #{ltc_sequence_forward.4} parent=0 // pred_check
    %p12 = pneg %p11
  $region11: #{ltc_sequence_forward.4} parent=0 // pred_check_branch
    %14 = sbr.rel (%p12) target = $region13
  $region12: #{ltc_sequence_forward.4} parent=0 // pred_region
    %vm15 = vcmask 254976
    %16 = vst.msk [vmem:[#allocation2] sm:$0x3] %vm15, 0.0
  $region13: #{ltc_sequence_forward.4} parent=0 // pred_fallthru
    _
  %v17 = vld [vmem:[%s1] sm:$0xff]
  %v18 = vld [vmem:[%s1 + $0x8] sm:$0xff]
  %v19 = vld [vmem:[%s1 + $0x10] sm:$0xff]
  %v20 = vld [vmem:[%s1 + $0x18] sm:$0xff]
  %v21 = vld [vmem:[#allocation2] sm:$0x3]
  %v22 = vld [vmem:[%s0] sm:$0x3]
  %vm23 = vcmask 261120
  %v25 = vsel %vm23, %v21, 0
  %27 = vmatpush.msra.mxu0 0.0
  %28 = vmatpush.msra.mxu0 0.0
  %29 = vmatpush.msra.mxu0 0.0
  %30 = vmatpush.msra.mxu0 0.0
  %31 = vmatpush.msra.mxu0 0.0
  %32 = vmatpush.msra.mxu0 0.0
  %33 = vmatpush.msra.mxu0 0.0
  %34 = vmatpush.msra.mxu0 0.0
  %35 = vmatpush.msra.mxu0 0.0
  %36 = vmatpush.msra.mxu0 0.0
  %37 = vmatpush.msra.mxu0 0.0
  %38 = vmatpush.msra.mxu0 0.0
  %39 = vmatpush.msra.mxu0 %v20
  %40 = vmatpush.msra.mxu0 %v19
  %41 = vmatpush.msra.mxu0 %v18
  %42 = vmatpush.msra.mxu0 %v17
  %43 = vmatmul.f32.gmra.mxu0 %v25
  %v44 = vpop.f32.mrf.mxu0
  %v45 = vadd.f32 0.0, %v44
  %46 = vdwg.mxu0
  %v47 = vadd.f32 %v22, %v45
  %v48 = vsub.f32 0.0, %v21
  %v49 = vtanh.pop %v47
  %v50 = vadd.f32 %v48, %v49
  %v51 = vmul.f32 %v50, 0.1
  %v52 = vadd.f32 %v21, %v51
  %vm53 = vcmask 254976
  %54 = vst.msk [vmem:[%s2] sm:$0x3] %vm53, %v52
  %s55 = scalar_lea.vmem %s0, 2
  %v56 = vld [vmem:[%s55] sm:$0x3]
  %v58 = vsel %vm23, %v52, 0
  %60 = vmatpush.msra.mxu0 0.0
  %61 = vmatpush.msra.mxu0 0.0
  %62 = vmatpush.msra.mxu0 0.0
  %63 = vmatpush.msra.mxu0 0.0
  %64 = vmatpush.msra.mxu0 0.0
  %65 = vmatpush.msra.mxu0 0.0
  %66 = vmatpush.msra.mxu0 0.0
  %67 = vmatpush.msra.mxu0 0.0
  %68 = vmatpush.msra.mxu0 0.0
  %69 = vmatpush.msra.mxu0 0.0
  %70 = vmatpush.msra.mxu0 0.0
  %71 = vmatpush.msra.mxu0 0.0
  %72 = vmatpush.msra.mxu0 %v20
  %73 = vmatpush.msra.mxu0 %v19
  %74 = vmatpush.msra.mxu0 %v18
  %75 = vmatpush.msra.mxu0 %v17
  %76 = vmatmul.f32.gmra.mxu0 %v58
  %v77 = vpop.f32.mrf.mxu0
  %v78 = vadd.f32 0.0, %v77
  %79 = vdwg.mxu0
  %v80 = vadd.f32 %v56, %v78
  %v81 = vsub.f32 0.0, %v52
  %v82 = vtanh.pop %v80
  %v83 = vadd.f32 %v81, %v82
  %v84 = vmul.f32 %v83, 0.1
  %v85 = vadd.f32 %v52, %v84
  %s86 = scalar_lea.vmem %s2, 2
  %87 = vst.msk [vmem:[%s86] sm:$0x3] %vm53, %v85
  %s88 = scalar_lea.vmem %s0, 4
  %v89 = vld [vmem:[%s88] sm:$0x3]
  %v91 = vsel %vm23, %v85, 0
  %93 = vmatpush.msra.mxu0 0.0
  %94 = vmatpush.msra.mxu0 0.0
  %95 = vmatpush.msra.mxu0 0.0
  %96 = vmatpush.msra.mxu0 0.0
  %97 = vmatpush.msra.mxu0 0.0
  %98 = vmatpush.msra.mxu0 0.0
  %99 = vmatpush.msra.mxu0 0.0
  %100 = vmatpush.msra.mxu0 0.0
  %101 = vmatpush.msra.mxu0 0.0
  %102 = vmatpush.msra.mxu0 0.0
  %103 = vmatpush.msra.mxu0 0.0
  %104 = vmatpush.msra.mxu0 0.0
  %105 = vmatpush.msra.mxu0 %v20
  %106 = vmatpush.msra.mxu0 %v19
  %107 = vmatpush.msra.mxu0 %v18
  %108 = vmatpush.msra.mxu0 %v17
  %109 = vmatmul.f32.gmra.mxu0 %v91
  %v110 = vpop.f32.mrf.mxu0
  %v111 = vadd.f32 0.0, %v110
  %112 = vdwg.mxu0
  %v113 = vadd.f32 %v89, %v111
  %v114 = vsub.f32 0.0, %v85
  %v115 = vtanh.pop %v113
  %v116 = vadd.f32 %v114, %v115
  %v117 = vmul.f32 %v116, 0.1
  %v118 = vadd.f32 %v85, %v117
  %s119 = scalar_lea.vmem %s2, 4
  %120 = vst.msk [vmem:[%s119] sm:$0x3] %vm53, %v118
  %s121 = scalar_lea.vmem %s0, 6
  %v122 = vld [vmem:[%s121] sm:$0x3]
  %v124 = vsel %vm23, %v118, 0
  %126 = vmatpush.msra.mxu0 0.0
  %127 = vmatpush.msra.mxu0 0.0
  %128 = vmatpush.msra.mxu0 0.0
  %129 = vmatpush.msra.mxu0 0.0
  %130 = vmatpush.msra.mxu0 0.0
  %131 = vmatpush.msra.mxu0 0.0
  %132 = vmatpush.msra.mxu0 0.0
  %133 = vmatpush.msra.mxu0 0.0
  %134 = vmatpush.msra.mxu0 0.0
  %135 = vmatpush.msra.mxu0 0.0
  %136 = vmatpush.msra.mxu0 0.0
  %137 = vmatpush.msra.mxu0 0.0
  %138 = vmatpush.msra.mxu0 %v20
  %139 = vmatpush.msra.mxu0 %v19
  %140 = vmatpush.msra.mxu0 %v18
  %141 = vmatpush.msra.mxu0 %v17
  %142 = vmatmul.f32.gmra.mxu0 %v124
  %v143 = vpop.f32.mrf.mxu0
  %v144 = vadd.f32 0.0, %v143
  %145 = vdwg.mxu0
  %v146 = vadd.f32 %v122, %v144
  %v147 = vsub.f32 0.0, %v118
  %v148 = vtanh.pop %v146
  %v149 = vadd.f32 %v147, %v148
  %v150 = vmul.f32 %v149, 0.1
  %v151 = vadd.f32 %v118, %v150
  %s152 = scalar_lea.vmem %s2, 6
  %153 = vst.msk [vmem:[%s152] sm:$0x3] %vm53, %v151
  %s154 = scalar_lea.vmem %s0, 8
  %v155 = vld [vmem:[%s154] sm:$0x3]
  %v157 = vsel %vm23, %v151, 0
  %159 = vmatpush.msra.mxu0 0.0
  %160 = vmatpush.msra.mxu0 0.0
  %161 = vmatpush.msra.mxu0 0.0
  %162 = vmatpush.msra.mxu0 0.0
  %163 = vmatpush.msra.mxu0 0.0
  %164 = vmatpush.msra.mxu0 0.0
  %165 = vmatpush.msra.mxu0 0.0
  %166 = vmatpush.msra.mxu0 0.0
  %167 = vmatpush.msra.mxu0 0.0
  %168 = vmatpush.msra.mxu0 0.0
  %169 = vmatpush.msra.mxu0 0.0
  %170 = vmatpush.msra.mxu0 0.0
  %171 = vmatpush.msra.mxu0 %v20
  %172 = vmatpush.msra.mxu0 %v19
  %173 = vmatpush.msra.mxu0 %v18
  %174 = vmatpush.msra.mxu0 %v17
  %175 = vmatmul.f32.gmra.mxu0 %v157
  %v176 = vpop.f32.mrf.mxu0
  %v177 = vadd.f32 0.0, %v176
  %178 = vdwg.mxu0
  %v179 = vadd.f32 %v155, %v177
  %v180 = vsub.f32 0.0, %v151
  %v181 = vtanh.pop %v179
  %v182 = vadd.f32 %v180, %v181
  %v183 = vmul.f32 %v182, 0.1
  %v184 = vadd.f32 %v151, %v183
  %s185 = scalar_lea.vmem %s2, 8
  %186 = vst.msk [vmem:[%s185] sm:$0x3] %vm53, %v184
  %s187 = scalar_lea.vmem %s0, 10
  %v188 = vld [vmem:[%s187] sm:$0x3]
  %v190 = vsel %vm23, %v184, 0
  %192 = vmatpush.msra.mxu0 0.0
  %193 = vmatpush.msra.mxu0 0.0
  %194 = vmatpush.msra.mxu0 0.0
  %195 = vmatpush.msra.mxu0 0.0
  %196 = vmatpush.msra.mxu0 0.0
  %197 = vmatpush.msra.mxu0 0.0
  %198 = vmatpush.msra.mxu0 0.0
  %199 = vmatpush.msra.mxu0 0.0
  %200 = vmatpush.msra.mxu0 0.0
  %201 = vmatpush.msra.mxu0 0.0
  %202 = vmatpush.msra.mxu0 0.0
  %203 = vmatpush.msra.mxu0 0.0
  %204 = vmatpush.msra.mxu0 %v20
  %205 = vmatpush.msra.mxu0 %v19
  %206 = vmatpush.msra.mxu0 %v18
  %207 = vmatpush.msra.mxu0 %v17
  %208 = vmatmul.f32.gmra.mxu0 %v190
  %v209 = vpop.f32.mrf.mxu0
  %v210 = vadd.f32 0.0, %v209
  %211 = vdwg.mxu0
  %v212 = vadd.f32 %v188, %v210
  %v213 = vsub.f32 0.0, %v184
  %v214 = vtanh.pop %v212
  %v215 = vadd.f32 %v213, %v214
  %v216 = vmul.f32 %v215, 0.1
  %v217 = vadd.f32 %v184, %v216
  %s218 = scalar_lea.vmem %s2, 10
  %219 = vst.msk [vmem:[%s218] sm:$0x3] %vm53, %v217
  %s220 = scalar_lea.vmem %s0, 12
  %v221 = vld [vmem:[%s220] sm:$0x3]
  %v223 = vsel %vm23, %v217, 0
  %225 = vmatpush.msra.mxu0 0.0
  %226 = vmatpush.msra.mxu0 0.0
  %227 = vmatpush.msra.mxu0 0.0
  %228 = vmatpush.msra.mxu0 0.0
  %229 = vmatpush.msra.mxu0 0.0
  %230 = vmatpush.msra.mxu0 0.0
  %231 = vmatpush.msra.mxu0 0.0
  %232 = vmatpush.msra.mxu0 0.0
  %233 = vmatpush.msra.mxu0 0.0
  %234 = vmatpush.msra.mxu0 0.0
  %235 = vmatpush.msra.mxu0 0.0
  %236 = vmatpush.msra.mxu0 0.0
  %237 = vmatpush.msra.mxu0 %v20
  %238 = vmatpush.msra.mxu0 %v19
  %239 = vmatpush.msra.mxu0 %v18
  %240 = vmatpush.msra.mxu0 %v17
  %241 = vmatmul.f32.gmra.mxu0 %v223
  %v242 = vpop.f32.mrf.mxu0
  %v243 = vadd.f32 0.0, %v242
  %244 = vdwg.mxu0
  %v245 = vadd.f32 %v221, %v243
  %v246 = vsub.f32 0.0, %v217
  %v247 = vtanh.pop %v245
  %v248 = vadd.f32 %v246, %v247
  %v249 = vmul.f32 %v248, 0.1
  %v250 = vadd.f32 %v217, %v249
  %s251 = scalar_lea.vmem %s2, 12
  %252 = vst.msk [vmem:[%s251] sm:$0x3] %vm53, %v250
  %s253 = scalar_lea.vmem %s0, 14
  %v254 = vld [vmem:[%s253] sm:$0x3]
  %v256 = vsel %vm23, %v250, 0
  %258 = vmatpush.msra.mxu0 0.0
  %259 = vmatpush.msra.mxu0 0.0
  %260 = vmatpush.msra.mxu0 0.0
  %261 = vmatpush.msra.mxu0 0.0
  %262 = vmatpush.msra.mxu0 0.0
  %263 = vmatpush.msra.mxu0 0.0
  %264 = vmatpush.msra.mxu0 0.0
  %265 = vmatpush.msra.mxu0 0.0
  %266 = vmatpush.msra.mxu0 0.0
  %267 = vmatpush.msra.mxu0 0.0
  %268 = vmatpush.msra.mxu0 0.0
  %269 = vmatpush.msra.mxu0 0.0
  %270 = vmatpush.msra.mxu0 %v20
  %271 = vmatpush.msra.mxu0 %v19
  %272 = vmatpush.msra.mxu0 %v18
  %273 = vmatpush.msra.mxu0 %v17
  %274 = vmatmul.f32.gmra.mxu0 %v256
  %v275 = vpop.f32.mrf.mxu0
  %v276 = vadd.f32 0.0, %v275
  %277 = vdwg.mxu0
  %v278 = vadd.f32 %v254, %v276
  %v279 = vsub.f32 0.0, %v250
  %v280 = vtanh.pop %v278
  %v281 = vadd.f32 %v279, %v280
  %v282 = vmul.f32 %v281, 0.1
  %v283 = vadd.f32 %v250, %v282
  %s284 = scalar_lea.vmem %s2, 14
  %285 = vst.msk [vmem:[%s284] sm:$0x3] %vm53, %v283
  %286 = vst.msk [vmem:[#allocation2] sm:$0x3] %vm53, %v283
  // Predicated region
  $region14: #{ltc_sequence_forward.4} parent=0 // pred_check
    _
  $region15: #{ltc_sequence_forward.4} parent=0 // pred_check_branch
    %288 = sbr.rel (0) target = $region17
  $region16: #{ltc_sequence_forward.4} parent=0 // pred_region
    _
  $region17: #{ltc_sequence_forward.4} parent=0 // pred_fallthru
    _
  // Predicated region
  $region18: #{ltc_sequence_forward.4} parent=0 // pred_check
    _
  $region19: #{ltc_sequence_forward.4} parent=0 // pred_check_branch
    %290 = sbr.rel (0) target = $region21
  $region20: #{ltc_sequence_forward.4} parent=0 // pred_region
    _
  $region21: #{ltc_sequence_forward.4} parent=0 // pred_fallthru
    _

// kernel: ltc_sequence_forward.5
$region0: #{ltc_sequence_forward.5}
  #allocation0 [shape = 'u32[]', space=smem, size = 0x4, offset = 0x4, fixed_abs, tag = 'smem constant byte address 0x4 - core index']
  #allocation1 [shape = 'u32[72,128]{1,0:T(1,128)}', space=vmem, size = 0x9000, scoped, tag = 'internal scratch']
  %s0 = inlined_call_operand.vmem [shape: f32[16,32], index: 0, kind: input, shape index: {}]
  %s1 = inlined_call_operand.vmem [shape: bf16[32,500], index: 1, kind: input, shape index: {}]
  %s2 = inlined_call_operand.vmem [shape: f32[1,500], index: 2, kind: input, shape index: {}]
  %s3 = inlined_call_operand.hbm [shape: bf16[500,500], index: 3, kind: input, shape index: {}]
  %s4 = inlined_call_operand.vmem [shape: f32[1,500], index: 4, kind: input, shape index: {}]
  %s5 = inlined_call_operand.vmem [shape: bf16[500,30], index: 5, kind: input, shape index: {}]
  %s6 = inlined_call_operand.vmem [shape: f32[1,30], index: 6, kind: input, shape index: {}]
  %s7 = inlined_call_operand.hbm [shape: f32[16,30], index: 7, kind: output, shape index: {}]
  %s8 = sld [smem:[#allocation0]]
  $region42: #{ltc_sequence_forward.5} parent=0
    _
  %s10 = ssub.s32 1, %s8
  %s11 = scalar_select 0, %s10, %s8
  $region1: #{ltc_sequence_forward.5} parent=0
    #allocation2 [shape = 'u8[516096]{0}', space=vmem, size = 0x7e000, scoped, tag = 'input window, operand 3, single buffered']
    #allocation3 [shape = 's32[1]{0}', space=sflag, size = 0x4, scoped, tag = 'scoped memory for ltc_sequence_forward.5']
    #allocation4 [shape = 's32[1]{0}', space=sflag, size = 0x4, scoped, tag = 'scoped memory for ltc_sequence_forward.5']
    #allocation5 [shape = 'u8[8192]{0}', space=vmem, size = 0x2000, scoped, tag = 'output window, operand 0, single buffered']
    %12 = vsyncpa [#allocation3], 0
    %13 = vsyncpa [#allocation4], 0
    // Predicated region
    $region2: #{ltc_sequence_forward.5} parent=1 // pred_check
      _
    $region3: #{ltc_sequence_forward.5} parent=1 // pred_check_branch
      %15 = sbr.rel (0) target = $region5
    $region4: #{ltc_sequence_forward.5} parent=1 // pred_region
      _
    $region5: #{ltc_sequence_forward.5} parent=1 // pred_fallthru
      _
    // Predicated region
    $region6: #{ltc_sequence_forward.5} parent=1 // pred_check
      _
    $region7: #{ltc_sequence_forward.5} parent=1 // pred_check_branch
      %17 = sbr.rel (0) target = $region9
    $region8: #{ltc_sequence_forward.5} parent=1 // pred_region
      _
    $region9: #{ltc_sequence_forward.5} parent=1 // pred_fallthru
      _
    // Predicated region
    $region10: #{ltc_sequence_forward.5} parent=1 // pred_check
      _
    $region11: #{ltc_sequence_forward.5} parent=1 // pred_check_branch
      %19 = sbr.rel (0) target = $region13
    $region12: #{ltc_sequence_forward.5} parent=1 // pred_region
      _
    $region13: #{ltc_sequence_forward.5} parent=1 // pred_fallthru
      _
    // Predicated region
    $region14: #{ltc_sequence_forward.5} parent=1 // pred_check
      _
    $region15: #{ltc_sequence_forward.5} parent=1 // pred_check_branch
      %21 = sbr.rel (0) target = $region17
    $region16: #{ltc_sequence_forward.5} parent=1 // pred_region
      %23 = vsyncadd [#allocation3], 0
      %s24 = sshll.u32 %s3, 4
      %s25 = int_to_ptr.hbm [resolvable:$true] %s24
      %s26 = sshll.u32 [#allocation2], 4
      %s27 = int_to_ptr.vmem [resolvable:$true] %s26
      %32 = dma.hbm_to_vmem [thread:$0]  %s25, 16128, %s27, [#allocation3], 256, 256, 16
    $region17: #{ltc_sequence_forward.5} parent=1 // pred_fallthru
      _
    // Predicated region
    $region18: #{ltc_sequence_forward.5} parent=1 // pred_check
      _
    $region19: #{ltc_sequence_forward.5} parent=1 // pred_check_branch
      %34 = sbr.rel (0) target = $region21
    $region20: #{ltc_sequence_forward.5} parent=1 // pred_region
      _
    $region21: #{ltc_sequence_forward.5} parent=1 // pred_fallthru
      _
    // Predicated region
    $region22: #{ltc_sequence_forward.5} parent=1 // pred_check
      _
    $region23: #{ltc_sequence_forward.5} parent=1 // pred_check_branch
      %36 = sbr.rel (0) target = $region25
    $region24: #{ltc_sequence_forward.5} parent=1 // pred_region
      _
    $region25: #{ltc_sequence_forward.5} parent=1 // pred_fallthru
      _
    // Predicated region
    $region26: #{ltc_sequence_forward.5} parent=1 // pred_check
      _
    $region27: #{ltc_sequence_forward.5} parent=1 // pred_check_branch
      %38 = sbr.rel (0) target = $region29
    $region28: #{ltc_sequence_forward.5} parent=1 // pred_region
      _
    $region29: #{ltc_sequence_forward.5} parent=1 // pred_fallthru
      _
    // Predicated region
    $region30: #{ltc_sequence_forward.5} parent=1 // pred_check
      _
    $region31: #{ltc_sequence_forward.5} parent=1 // pred_check_branch
      %40 = sbr.rel (0) target = $region33
    $region32: #{ltc_sequence_forward.5} parent=1 // pred_region
      %42 = dma.done [#allocation3], 16128
    $region33: #{ltc_sequence_forward.5} parent=1 // pred_fallthru
      _
    %v44 = vld [vmem:[%s0] sm:$0xff]
    %v45 = vld [vmem:[%s0 + $0x8] sm:$0xff]
    %v46 = vpack.c.bf16 %v45, %v44
    %v47 = vld [vmem:[%s1] sm:$0xff]
    %v48 = vld [vmem:[%s1 + $0x8] sm:$0xff]
    %v49 = vld [vmem:[%s1 + $0x10] sm:$0xff]
    %v50 = vld [vmem:[%s1 + $0x18] sm:$0xff]
    %v51 = vld [vmem:[%s1 + $0x20] sm:$0xff]
    %v52 = vld [vmem:[%s1 + $0x28] sm:$0xff]
    %v53 = vld [vmem:[%s1 + $0x30] sm:$0xff]
    %v54 = vld [vmem:[%s1 + $0x38] sm:$0xff]
    %v55 = vld [vmem:[%s2] sm:$0xf]
    %v57 = vperm.slane %v55, 0
    %v58 = vperm.slane %v55, 1
    %v59 = vperm.slane %v55, 2
    %v60 = vperm.slane %v55, 3
    %v73 = vunpack.c.l.b16 %v47
    %v74 = vunpack.c.h.b16 %v47
    %v75 = vunpack.c.l.b16 %v48
    %v76 = vunpack.c.h.b16 %v48
    %v77 = vunpack.c.l.b16 %v49
    %v78 = vunpack.c.h.b16 %v49
    %v79 = vunpack.c.l.b16 %v50
    %v80 = vunpack.c.h.b16 %v50
    %v81 = vunpack.c.l.b16 %v51
    %v82 = vunpack.c.h.b16 %v51
    %v83 = vunpack.c.l.b16 %v52
    %v84 = vunpack.c.h.b16 %v52
    %v85 = vunpack.c.l.b16 %v53
    %v86 = vunpack.c.h.b16 %v53
    %v87 = vunpack.c.l.b16 %v54
    %v88 = vunpack.c.h.b16 %v54
    %v89 = vpack.c.b16 %v77, %v73
    %v90 = vpack.c.b16 %v78, %v74
    %v91 = vpack.c.b16 %v79, %v75
    %v92 = vpack.c.b16 %v80, %v76
    %v93 = vpack.c.b16 %v85, %v81
    %v94 = vpack.c.b16 %v86, %v82
    %v95 = vpack.c.b16 %v87, %v83
    %v96 = vpack.c.b16 %v88, %v84
    %vm105 = vcmask 261120
    %v107 = vsel %vm105, %v46, 0
    %109 = vmatpush.bf16.msra.mxu0 0
    %110 = vmatpush.bf16.msra.mxu0 0
    %111 = vmatpush.bf16.msra.mxu0 0
    %112 = vmatpush.bf16.msra.mxu0 0
    %113 = vmatpush.bf16.msra.mxu0 0
    %114 = vmatpush.bf16.msra.mxu0 0
    %115 = vmatpush.bf16.msra.mxu0 %v93
    %116 = vmatpush.bf16.msra.mxu0 %v89
    %117 = vmatmul.bf16.gmra.mxu0 %v107
    %v118 = vpop.f32.mrf.mxu0
    %v119 = vadd.f32 %v57, %v118
    %v120 = vpop.f32.mrf.mxu0
    %v121 = vadd.f32 %v57, %v120
    %122 = vdwg.mxu0
    %123 = vmatpush.bf16.msra.mxu0 0
    %124 = vmatpush.bf16.msra.mxu0 0
    %125 = vmatpush.bf16.msra.mxu0 0
    %126 = vmatpush.bf16.msra.mxu0 0
    %127 = vmatpush.bf16.msra.mxu0 0
    %128 = vmatpush.bf16.msra.mxu0 0
    %129 = vmatpush.bf16.msra.mxu0 %v94
    %130 = vmatpush.bf16.msra.mxu0 %v90
    %131 = vmatmul.bf16.gmra.mxu0 %v107
    %v132 = vpop.f32.mrf.mxu0
    %v133 = vadd.f32 %v58, %v132
    %v134 = vpop.f32.mrf.mxu0
    %v135 = vadd.f32 %v58, %v134
    %136 = vdwg.mxu0
    %137 = vmatpush.bf16.msra.mxu0 0
    %138 = vmatpush.bf16.msra.mxu0 0
    %139 = vmatpush.bf16.msra.mxu0 0
    %140 = vmatpush.bf16.msra.mxu0 0
    %141 = vmatpush.bf16.msra.mxu0 0
    %142 = vmatpush.bf16.msra.mxu0 0
    %143 = vmatpush.bf16.msra.mxu0 %v95
    %144 = vmatpush.bf16.msra.mxu0 %v91
    %145 = vmatmul.bf16.gmra.mxu0 %v107
    %v146 = vpop.f32.mrf.mxu0
    %v147 = vadd.f32 %v59, %v146
    %v148 = vpop.f32.mrf.mxu0
    %v149 = vadd.f32 %v59, %v148
    %150 = vdwg.mxu0
    %151 = vmatpush.bf16.msra.mxu0 0
    %152 = vmatpush.bf16.msra.mxu0 0
    %153 = vmatpush.bf16.msra.mxu0 0
    %154 = vmatpush.bf16.msra.mxu0 0
    %155 = vmatpush.bf16.msra.mxu0 0
    %156 = vmatpush.bf16.msra.mxu0 0
    %157 = vmatpush.bf16.msra.mxu0 %v96
    %158 = vmatpush.bf16.msra.mxu0 %v92
    %159 = vmatmul.bf16.gmra.mxu0 %v107
    %v160 = vpop.f32.mrf.mxu0
    %v161 = vadd.f32 %v60, %v160
    %v162 = vpop.f32.mrf.mxu0
    %v163 = vadd.f32 %v60, %v162
    %164 = vdwg.mxu0
    %v165 = vtanh.pop %v119
    %v166 = vtanh.pop %v133
    %v167 = vtanh.pop %v147
    %v168 = vtanh.pop %v161
    %v169 = vtanh.pop %v121
    %v170 = vtanh.pop %v135
    %v171 = vtanh.pop %v149
    %v172 = vtanh.pop %v163
    %v173 = vpack.c.bf16 %v169, %v165
    %v174 = vpack.c.bf16 %v170, %v166
    %v175 = vpack.c.bf16 %v171, %v167
    %v176 = vpack.c.bf16 %v172, %v168
    %v177 = vld [vmem:[#allocation2] sm:$0xff]
    %v178 = vld [vmem:[#allocation2 + $0x8] sm:$0xff]
    %v179 = vld [vmem:[#allocation2 + $0x10] sm:$0xff]
    %v180 = vld [vmem:[#allocation2 + $0x18] sm:$0xff]
    %v181 = vld [vmem:[#allocation2 + $0x20] sm:$0xff]
    %v182 = vld [vmem:[#allocation2 + $0x28] sm:$0xff]
    %v183 = vld [vmem:[#allocation2 + $0x30] sm:$0xff]
    %v184 = vld [vmem:[#allocation2 + $0x38] sm:$0xff]
    %v185 = vld [vmem:[#allocation2 + $0x40] sm:$0xff]
    %v186 = vld [vmem:[#allocation2 + $0x48] sm:$0xff]
    %v187 = vld [vmem:[#allocation2 + $0x50] sm:$0xff]
    %v188 = vld [vmem:[#allocation2 + $0x58] sm:$0xff]
    %v189 = vld [vmem:[#allocation2 + $0x60] sm:$0xff]
    %v190 = vld [vmem:[#allocation2 + $0x68] sm:$0xff]
    %v191 = vld [vmem:[#allocation2 + $0x70] sm:$0xff]
    %v192 = vld [vmem:[#allocation2 + $0x78] sm:$0xff]
    %v193 = vld [vmem:[#allocation2 + $0x80] sm:$0xff]
    %v194 = vld [vmem:[#allocation2 + $0x88] sm:$0xff]
    %v195 = vld [vmem:[#allocation2 + $0x90] sm:$0xff]
    %v196 = vld [vmem:[#allocation2 + $0x98] sm:$0xff]
    %v197 = vld [vmem:[#allocation2 + $0xa0] sm:$0xff]
    %v198 = vld [vmem:[#allocation2 + $0xa8] sm:$0xff]
    %v199 = vld [vmem:[#allocation2 + $0xb0] sm:$0xff]
    %v200 = vld [vmem:[#allocation2 + $0xb8] sm:$0xff]
    %v201 = vld [vmem:[#allocation2 + $0xc0] sm:$0xff]
    %v202 = vld [vmem:[#allocation2 + $0xc8] sm:$0xff]
    %v203 = vld [vmem:[#allocation2 + $0xd0] sm:$0xff]
    %v204 = vld [vmem:[#allocation2 + $0xd8] sm:$0xff]
    %v205 = vld [vmem:[#allocation2 + $0xe0] sm:$0xff]
    %v206 = vld [vmem:[#allocation2 + $0xe8] sm:$0xff]
    %v207 = vld [vmem:[#allocation2 + $0xf0] sm:$0xff]
    %v208 = vld [vmem:[#allocation2 + $0xf8] sm:$0xff]
    %v209 = vld [vmem:[#allocation2 + $0x100] sm:$0xff]
    %v210 = vld [vmem:[#allocation2 + $0x108] sm:$0xff]
    %v211 = vld [vmem:[#allocation2 + $0x110] sm:$0xff]
    %v212 = vld [vmem:[#allocation2 + $0x118] sm:$0xff]
    %v213 = vld [vmem:[#allocation2 + $0x120] sm:$0xff]
    %v214 = vld [vmem:[#allocation2 + $0x128] sm:$0xff]
    %v215 = vld [vmem:[#allocation2 + $0x130] sm:$0xff]
    %v216 = vld [vmem:[#allocation2 + $0x138] sm:$0xff]
    %v217 = vld [vmem:[#allocation2 + $0x140] sm:$0xff]
    %v218 = vld [vmem:[#allocation2 + $0x148] sm:$0xff]
    %v219 = vld [vmem:[#allocation2 + $0x150] sm:$0xff]
    %v220 = vld [vmem:[#allocation2 + $0x158] sm:$0xff]
    %v221 = vld [vmem:[#allocation2 + $0x160] sm:$0xff]
    %v222 = vld [vmem:[#allocation2 + $0x168] sm:$0xff]
    %v223 = vld [vmem:[#allocation2 + $0x170] sm:$0xff]
    %v224 = vld [vmem:[#allocation2 + $0x178] sm:$0xff]
    %v225 = vld [vmem:[#allocation2 + $0x180] sm:$0xff]
    %v226 = vld [vmem:[#allocation2 + $0x188] sm:$0xff]
    %v227 = vld [vmem:[#allocation2 + $0x190] sm:$0xff]
    %v228 = vld [vmem:[#allocation2 + $0x198] sm:$0xff]
    %v229 = vld [vmem:[#allocation2 + $0x1a0] sm:$0xff]
    %v230 = vld [vmem:[#allocation2 + $0x1a8] sm:$0xff]
    %v231 = vld [vmem:[#allocation2 + $0x1b0] sm:$0xff]
    %v232 = vld [vmem:[#allocation2 + $0x1b8] sm:$0xff]
    %v233 = vld [vmem:[#allocation2 + $0x1c0] sm:$0xff]
    %v234 = vld [vmem:[#allocation2 + $0x1c8] sm:$0xff]
    %v235 = vld [vmem:[#allocation2 + $0x1d0] sm:$0xff]
    %v236 = vld [vmem:[#allocation2 + $0x1d8] sm:$0xff]
    %v237 = vld [vmem:[#allocation2 + $0x1e0] sm:$0xff]
    %v238 = vld [vmem:[#allocation2 + $0x1e8] sm:$0xff]
    %v239 = vld [vmem:[#allocation2 + $0x1f0] sm:$0xff]
    %v240 = vld [vmem:[#allocation2 + $0x1f8] sm:$0xff]
    %v241 = vld [vmem:[#allocation2 + $0x200] sm:$0xff]
    %v242 = vld [vmem:[#allocation2 + $0x208] sm:$0xff]
    %v243 = vld [vmem:[#allocation2 + $0x210] sm:$0xff]
    %v244 = vld [vmem:[#allocation2 + $0x218] sm:$0xff]
    %v245 = vld [vmem:[#allocation2 + $0x220] sm:$0xff]
    %v246 = vld [vmem:[#allocation2 + $0x228] sm:$0xff]
    %v247 = vld [vmem:[#allocation2 + $0x230] sm:$0xff]
    %v248 = vld [vmem:[#allocation2 + $0x238] sm:$0xff]
    %v249 = vld [vmem:[#allocation2 + $0x240] sm:$0xff]
    %v250 = vld [vmem:[#allocation2 + $0x248] sm:$0xff]
    %v251 = vld [vmem:[#allocation2 + $0x250] sm:$0xff]
    %v252 = vld [vmem:[#allocation2 + $0x258] sm:$0xff]
    %v253 = vld [vmem:[#allocation2 + $0x260] sm:$0xff]
    %v254 = vld [vmem:[#allocation2 + $0x268] sm:$0xff]
    %v255 = vld [vmem:[#allocation2 + $0x270] sm:$0xff]
    %v256 = vld [vmem:[#allocation2 + $0x278] sm:$0xff]
    %v257 = vld [vmem:[#allocation2 + $0x280] sm:$0xff]
    %v258 = vld [vmem:[#allocation2 + $0x288] sm:$0xff]
    %v259 = vld [vmem:[#allocation2 + $0x290] sm:$0xff]
    %v260 = vld [vmem:[#allocation2 + $0x298] sm:$0xff]
    %v261 = vld [vmem:[#allocation2 + $0x2a0] sm:$0xff]
    %v262 = vld [vmem:[#allocation2 + $0x2a8] sm:$0xff]
    %v263 = vld [vmem:[#allocation2 + $0x2b0] sm:$0xff]
    %v264 = vld [vmem:[#allocation2 + $0x2b8] sm:$0xff]
    %v265 = vld [vmem:[#allocation2 + $0x2c0] sm:$0xff]
    %v266 = vld [vmem:[#allocation2 + $0x2c8] sm:$0xff]
    %v267 = vld [vmem:[#allocation2 + $0x2d0] sm:$0xff]
    %v268 = vld [vmem:[#allocation2 + $0x2d8] sm:$0xff]
    %v269 = vld [vmem:[#allocation2 + $0x2e0] sm:$0xff]
    %v270 = vld [vmem:[#allocation2 + $0x2e8] sm:$0xff]
    %v271 = vld [vmem:[#allocation2 + $0x2f0] sm:$0xff]
    %v272 = vld [vmem:[#allocation2 + $0x2f8] sm:$0xff]
    %v273 = vld [vmem:[#allocation2 + $0x300] sm:$0xff]
    %v274 = vld [vmem:[#allocation2 + $0x308] sm:$0xff]
    %v275 = vld [vmem:[#allocation2 + $0x310] sm:$0xff]
    %v276 = vld [vmem:[#allocation2 + $0x318] sm:$0xff]
    %v277 = vld [vmem:[#allocation2 + $0x320] sm:$0xff]
    %v278 = vld [vmem:[#allocation2 + $0x328] sm:$0xff]
    %v279 = vld [vmem:[#allocation2 + $0x330] sm:$0xff]
    %v280 = vld [vmem:[#allocation2 + $0x338] sm:$0xff]
    %v281 = vld [vmem:[#allocation2 + $0x340] sm:$0xff]
    %v282 = vld [vmem:[#allocation2 + $0x348] sm:$0xff]
    %v283 = vld [vmem:[#allocation2 + $0x350] sm:$0xff]
    %v284 = vld [vmem:[#allocation2 + $0x358] sm:$0xff]
    %v285 = vld [vmem:[#allocation2 + $0x360] sm:$0xff]
    %v286 = vld [vmem:[#allocation2 + $0x368] sm:$0xff]
    %v287 = vld [vmem:[#allocation2 + $0x370] sm:$0xff]
    %v288 = vld [vmem:[#allocation2 + $0x378] sm:$0xff]
    %v289 = vld [vmem:[#allocation2 + $0x380] sm:$0xff]
    %v290 = vld [vmem:[#allocation2 + $0x388] sm:$0xff]
    %v291 = vld [vmem:[#allocation2 + $0x390] sm:$0xff]
    %v292 = vld [vmem:[#allocation2 + $0x398] sm:$0xff]
    %v293 = vld [vmem:[#allocation2 + $0x3a0] sm:$0xff]
    %v294 = vld [vmem:[#allocation2 + $0x3a8] sm:$0xff]
    %v295 = vld [vmem:[#allocation2 + $0x3b0] sm:$0xff]
    %v296 = vld [vmem:[#allocation2 + $0x3b8] sm:$0xff]
    %v297 = vld [vmem:[#allocation2 + $0x3c0] sm:$0xff]
    %v298 = vld [vmem:[#allocation2 + $0x3c8] sm:$0xff]
    %v299 = vld [vmem:[#allocation2 + $0x3d0] sm:$0xff]
    %v300 = vld [vmem:[#allocation2 + $0x3d8] sm:$0xff]
    %v301 = vld [vmem:[#allocation2 + $0x3e0] sm:$0x33]
    %v302 = vld [vmem:[#allocation2 + $0x3e8] sm:$0x33]
    %v303 = vld [vmem:[%s4] sm:$0xf]
    %v305 = vperm.slane %v303, 0
    %v306 = vperm.slane %v303, 1
    %v307 = vperm.slane %v303, 2
    %v308 = vperm.slane %v303, 3
    %v439 = vunpack.c.l.b16 %v177
    %v440 = vunpack.c.h.b16 %v177
    %v441 = vunpack.c.l.b16 %v178
    %v442 = vunpack.c.h.b16 %v178
    %v443 = vunpack.c.l.b16 %v179
    %v444 = vunpack.c.h.b16 %v179
    %v445 = vunpack.c.l.b16 %v180
    %v446 = vunpack.c.h.b16 %v180
    %v447 = vunpack.c.l.b16 %v181
    %v448 = vunpack.c.h.b16 %v181
    %v449 = vunpack.c.l.b16 %v182
    %v450 = vunpack.c.h.b16 %v182
    %v451 = vunpack.c.l.b16 %v183
    %v452 = vunpack.c.h.b16 %v183
    %v453 = vunpack.c.l.b16 %v184
    %v454 = vunpack.c.h.b16 %v184
    %v455 = vunpack.c.l.b16 %v185
    %v456 = vunpack.c.h.b16 %v185
    %v457 = vunpack.c.l.b16 %v186
    %v458 = vunpack.c.h.b16 %v186
    %v459 = vunpack.c.l.b16 %v187
    %v460 = vunpack.c.h.b16 %v187
    %v461 = vunpack.c.l.b16 %v188
    %v462 = vunpack.c.h.b16 %v188
    %v463 = vunpack.c.l.b16 %v189
    %v464 = vunpack.c.h.b16 %v189
    %v465 = vunpack.c.l.b16 %v190
    %v466 = vunpack.c.h.b16 %v190
    %v467 = vunpack.c.l.b16 %v191
    %v468 = vunpack.c.h.b16 %v191
    %v469 = vunpack.c.l.b16 %v192
    %v470 = vunpack.c.h.b16 %v192
    %v471 = vunpack.c.l.b16 %v193
    %v472 = vunpack.c.h.b16 %v193
    %v473 = vunpack.c.l.b16 %v194
    %v474 = vunpack.c.h.b16 %v194
    %v475 = vunpack.c.l.b16 %v195
    %v476 = vunpack.c.h.b16 %v195
    %v477 = vunpack.c.l.b16 %v196
    %v478 = vunpack.c.h.b16 %v196
    %v479 = vunpack.c.l.b16 %v197
    %v480 = vunpack.c.h.b16 %v197
    %v481 = vunpack.c.l.b16 %v198
    %v482 = vunpack.c.h.b16 %v198
    %v483 = vunpack.c.l.b16 %v199
    %v484 = vunpack.c.h.b16 %v199
    %v485 = vunpack.c.l.b16 %v200
    %v486 = vunpack.c.h.b16 %v200
    %v487 = vunpack.c.l.b16 %v201
    %v488 = vunpack.c.h.b16 %v201
    %v489 = vunpack.c.l.b16 %v202
    %v490 = vunpack.c.h.b16 %v202
    %v491 = vunpack.c.l.b16 %v203
    %v492 = vunpack.c.h.b16 %v203
    %v493 = vunpack.c.l.b16 %v204
    %v494 = vunpack.c.h.b16 %v204
    %v495 = vunpack.c.l.b16 %v205
    %v496 = vunpack.c.h.b16 %v205
    %v497 = vunpack.c.l.b16 %v206
    %v498 = vunpack.c.h.b16 %v206
    %v499 = vunpack.c.l.b16 %v207
    %v500 = vunpack.c.h.b16 %v207
    %v501 = vunpack.c.l.b16 %v208
    %v502 = vunpack.c.h.b16 %v208
    %v503 = vunpack.c.l.b16 %v209
    %v504 = vunpack.c.h.b16 %v209
    %v505 = vunpack.c.l.b16 %v210
    %v506 = vunpack.c.h.b16 %v210
    %v507 = vunpack.c.l.b16 %v211
    %v508 = vunpack.c.h.b16 %v211
    %v509 = vunpack.c.l.b16 %v212
    %v510 = vunpack.c.h.b16 %v212
    %v511 = vunpack.c.l.b16 %v213
    %v512 = vunpack.c.h.b16 %v213
    %v513 = vunpack.c.l.b16 %v214
    %v514 = vunpack.c.h.b16 %v214
    %v515 = vunpack.c.l.b16 %v215
    %v516 = vunpack.c.h.b16 %v215
    %v517 = vunpack.c.l.b16 %v216
    %v518 = vunpack.c.h.b16 %v216
    %v519 = vunpack.c.l.b16 %v217
    %v520 = vunpack.c.h.b16 %v217
    %v521 = vunpack.c.l.b16 %v218
    %v522 = vunpack.c.h.b16 %v218
    %v523 = vunpack.c.l.b16 %v219
    %v524 = vunpack.c.h.b16 %v219
    %v525 = vunpack.c.l.b16 %v220
    %v526 = vunpack.c.h.b16 %v220
    %v527 = vunpack.c.l.b16 %v221
    %v528 = vunpack.c.h.b16 %v221
    %v529 = vunpack.c.l.b16 %v222
    %v530 = vunpack.c.h.b16 %v222
    %v531 = vunpack.c.l.b16 %v223
    %v532 = vunpack.c.h.b16 %v223
    %v533 = vunpack.c.l.b16 %v224
    %v534 = vunpack.c.h.b16 %v224
    %v535 = vunpack.c.l.b16 %v225
    %v536 = vunpack.c.h.b16 %v225
    %v537 = vunpack.c.l.b16 %v226
    %v538 = vunpack.c.h.b16 %v226
    %v539 = vunpack.c.l.b16 %v227
    %v540 = vunpack.c.h.b16 %v227
    %v541 = vunpack.c.l.b16 %v228
    %v542 = vunpack.c.h.b16 %v228
    %v543 = vunpack.c.l.b16 %v229
    %v544 = vunpack.c.h.b16 %v229
    %v545 = vunpack.c.l.b16 %v230
    %v546 = vunpack.c.h.b16 %v230
    %v547 = vunpack.c.l.b16 %v231
    %v548 = vunpack.c.h.b16 %v231
    %v549 = vunpack.c.l.b16 %v232
    %v550 = vunpack.c.h.b16 %v232
    %v551 = vunpack.c.l.b16 %v233
    %v552 = vunpack.c.h.b16 %v233
    %v553 = vunpack.c.l.b16 %v234
    %v554 = vunpack.c.h.b16 %v234
    %v555 = vunpack.c.l.b16 %v235
    %v556 = vunpack.c.h.b16 %v235
    %v557 = vunpack.c.l.b16 %v236
    %v558 = vunpack.c.h.b16 %v236
    %v559 = vunpack.c.l.b16 %v237
    %v560 = vunpack.c.h.b16 %v237
    %v561 = vunpack.c.l.b16 %v238
    %v562 = vunpack.c.h.b16 %v238
    %v563 = vunpack.c.l.b16 %v239
    %v564 = vunpack.c.h.b16 %v239
    %v565 = vunpack.c.l.b16 %v240
    %v566 = vunpack.c.h.b16 %v240
    %v567 = vunpack.c.l.b16 %v241
    %v568 = vunpack.c.h.b16 %v241
    %v569 = vunpack.c.l.b16 %v242
    %v570 = vunpack.c.h.b16 %v242
    %v571 = vunpack.c.l.b16 %v243
    %v572 = vunpack.c.h.b16 %v243
    %v573 = vunpack.c.l.b16 %v244
    %v574 = vunpack.c.h.b16 %v244
    %v575 = vunpack.c.l.b16 %v245
    %v576 = vunpack.c.h.b16 %v245
    %v577 = vunpack.c.l.b16 %v246
    %v578 = vunpack.c.h.b16 %v246
    %v579 = vunpack.c.l.b16 %v247
    %v580 = vunpack.c.h.b16 %v247
    %v581 = vunpack.c.l.b16 %v248
    %v582 = vunpack.c.h.b16 %v248
    %v583 = vunpack.c.l.b16 %v249
    %v584 = vunpack.c.h.b16 %v249
    %v585 = vunpack.c.l.b16 %v250
    %v586 = vunpack.c.h.b16 %v250
    %v587 = vunpack.c.l.b16 %v251
    %v588 = vunpack.c.h.b16 %v251
    %v589 = vunpack.c.l.b16 %v252
    %v590 = vunpack.c.h.b16 %v252
    %v591 = vunpack.c.l.b16 %v253
    %v592 = vunpack.c.h.b16 %v253
    %v593 = vunpack.c.l.b16 %v254
    %v594 = vunpack.c.h.b16 %v254
    %v595 = vunpack.c.l.b16 %v255
    %v596 = vunpack.c.h.b16 %v255
    %v597 = vunpack.c.l.b16 %v256
    %v598 = vunpack.c.h.b16 %v256
    %v599 = vunpack.c.l.b16 %v257
    %v600 = vunpack.c.h.b16 %v257
    %v601 = vunpack.c.l.b16 %v258
    %v602 = vunpack.c.h.b16 %v258
    %v603 = vunpack.c.l.b16 %v259
    %v604 = vunpack.c.h.b16 %v259
    %v605 = vunpack.c.l.b16 %v260
    %v606 = vunpack.c.h.b16 %v260
    %v607 = vunpack.c.l.b16 %v261
    %v608 = vunpack.c.h.b16 %v261
    %v609 = vunpack.c.l.b16 %v262
    %v610 = vunpack.c.h.b16 %v262
    %v611 = vunpack.c.l.b16 %v263
    %v612 = vunpack.c.h.b16 %v263
    %v613 = vunpack.c.l.b16 %v264
    %v614 = vunpack.c.h.b16 %v264
    %v615 = vunpack.c.l.b16 %v265
    %v616 = vunpack.c.h.b16 %v265
    %v617 = vunpack.c.l.b16 %v266
    %v618 = vunpack.c.h.b16 %v266
    %v619 = vunpack.c.l.b16 %v267
    %v620 = vunpack.c.h.b16 %v267
    %v621 = vunpack.c.l.b16 %v268
    %v622 = vunpack.c.h.b16 %v268
    %v623 = vunpack.c.l.b16 %v269
    %v624 = vunpack.c.h.b16 %v269
    %v625 = vunpack.c.l.b16 %v270
    %v626 = vunpack.c.h.b16 %v270
    %v627 = vunpack.c.l.b16 %v271
    %v628 = vunpack.c.h.b16 %v271
    %v629 = vunpack.c.l.b16 %v272
    %v630 = vunpack.c.h.b16 %v272
    %v631 = vunpack.c.l.b16 %v273
    %v632 = vunpack.c.h.b16 %v273
    %v633 = vunpack.c.l.b16 %v274
    %v634 = vunpack.c.h.b16 %v274
    %v635 = vunpack.c.l.b16 %v275
    %v636 = vunpack.c.h.b16 %v275
    %v637 = vunpack.c.l.b16 %v276
    %v638 = vunpack.c.h.b16 %v276
    %v639 = vunpack.c.l.b16 %v277
    %v640 = vunpack.c.h.b16 %v277
    %v641 = vunpack.c.l.b16 %v278
    %v642 = vunpack.c.h.b16 %v278
    %v643 = vunpack.c.l.b16 %v279
    %v644 = vunpack.c.h.b16 %v279
    %v645 = vunpack.c.l.b16 %v280
    %v646 = vunpack.c.h.b16 %v280
    %v647 = vunpack.c.l.b16 %v281
    %v648 = vunpack.c.h.b16 %v281
    %v649 = vunpack.c.l.b16 %v282
    %v650 = vunpack.c.h.b16 %v282
    %v651 = vunpack.c.l.b16 %v283
    %v652 = vunpack.c.h.b16 %v283
    %v653 = vunpack.c.l.b16 %v284
    %v654 = vunpack.c.h.b16 %v284
    %v655 = vunpack.c.l.b16 %v285
    %v656 = vunpack.c.h.b16 %v285
    %v657 = vunpack.c.l.b16 %v286
    %v658 = vunpack.c.h.b16 %v286
    %v659 = vunpack.c.l.b16 %v287
    %v660 = vunpack.c.h.b16 %v287
    %v661 = vunpack.c.l.b16 %v288
    %v662 = vunpack.c.h.b16 %v288
    %v663 = vunpack.c.l.b16 %v289
    %v664 = vunpack.c.h.b16 %v289
    %v665 = vunpack.c.l.b16 %v290
    %v666 = vunpack.c.h.b16 %v290
    %v667 = vunpack.c.l.b16 %v291
    %v668 = vunpack.c.h.b16 %v291
    %v669 = vunpack.c.l.b16 %v292
    %v670 = vunpack.c.h.b16 %v292
    %v671 = vunpack.c.l.b16 %v293
    %v672 = vunpack.c.h.b16 %v293
    %v673 = vunpack.c.l.b16 %v294
    %v674 = vunpack.c.h.b16 %v294
    %v675 = vunpack.c.l.b16 %v295
    %v676 = vunpack.c.h.b16 %v295
    %v677 = vunpack.c.l.b16 %v296
    %v678 = vunpack.c.h.b16 %v296
    %v679 = vunpack.c.l.b16 %v297
    %v680 = vunpack.c.h.b16 %v297
    %v681 = vunpack.c.l.b16 %v298
    %v682 = vunpack.c.h.b16 %v298
    %v683 = vunpack.c.l.b16 %v299
    %v684 = vunpack.c.h.b16 %v299
    %v685 = vunpack.c.l.b16 %v300
    %v686 = vunpack.c.h.b16 %v300
    %v687 = vunpack.c.l.b16 %v301
    %v688 = vunpack.c.h.b16 %v301
    %v689 = vunpack.c.l.b16 %v302
    %v690 = vunpack.c.h.b16 %v302
    %v691 = vpack.c.b16 %v443, %v439
    %v692 = vpack.c.b16 %v444, %v440
    %v693 = vpack.c.b16 %v445, %v441
    %v694 = vpack.c.b16 %v446, %v442
    %v695 = vpack.c.b16 %v451, %v447
    %v696 = vpack.c.b16 %v452, %v448
    %v697 = vpack.c.b16 %v453, %v449
    %v698 = vpack.c.b16 %v454, %v450
    %v699 = vpack.c.b16 %v459, %v455
    %v700 = vpack.c.b16 %v460, %v456
    %v701 = vpack.c.b16 %v461, %v457
    %v702 = vpack.c.b16 %v462, %v458
    %v703 = vpack.c.b16 %v467, %v463
    %v704 = vpack.c.b16 %v468, %v464
    %v705 = vpack.c.b16 %v469, %v465
    %v706 = vpack.c.b16 %v470, %v466
    %v707 = vpack.c.b16 %v475, %v471
    %v708 = vpack.c.b16 %v476, %v472
    %v709 = vpack.c.b16 %v477, %v473
    %v710 = vpack.c.b16 %v478, %v474
    %v711 = vpack.c.b16 %v483, %v479
    %v712 = vpack.c.b16 %v484, %v480
    %v713 = vpack.c.b16 %v485, %v481
    %v714 = vpack.c.b16 %v486, %v482
    %v715 = vpack.c.b16 %v491, %v487
    %v716 = vpack.c.b16 %v492, %v488
    %v717 = vpack.c.b16 %v493, %v489
    %v718 = vpack.c.b16 %v494, %v490
    %v719 = vpack.c.b16 %v499, %v495
    %v720 = vpack.c.b16 %v500, %v496
    %v721 = vpack.c.b16 %v501, %v497
    %v722 = vpack.c.b16 %v502, %v498
    %v723 = vpack.c.b16 %v507, %v503
    %v724 = vpack.c.b16 %v508, %v504
    %v725 = vpack.c.b16 %v509, %v505
    %v726 = vpack.c.b16 %v510, %v506
    %v727 = vpack.c.b16 %v515, %v511
    %v728 = vpack.c.b16 %v516, %v512
    %v729 = vpack.c.b16 %v517, %v513
    %v730 = vpack.c.b16 %v518, %v514
    %v731 = vpack.c.b16 %v523, %v519
    %v732 = vpack.c.b16 %v524, %v520
    %v733 = vpack.c.b16 %v525, %v521
    %v734 = vpack.c.b16 %v526, %v522
    %v735 = vpack.c.b16 %v531, %v527
    %v736 = vpack.c.b16 %v532, %v528
    %v737 = vpack.c.b16 %v533, %v529
    %v738 = vpack.c.b16 %v534, %v530
    %v739 = vpack.c.b16 %v539, %v535
    %v740 = vpack.c.b16 %v540, %v536
    %v741 = vpack.c.b16 %v541, %v537
    %v742 = vpack.c.b16 %v542, %v538
    %v743 = vpack.c.b16 %v547, %v543
    %v744 = vpack.c.b16 %v548, %v544
    %v745 = vpack.c.b16 %v549, %v545
    %v746 = vpack.c.b16 %v550, %v546
    %v747 = vpack.c.b16 %v555, %v551
    %v748 = vpack.c.b16 %v556, %v552
    %v749 = vpack.c.b16 %v557, %v553
    %v750 = vpack.c.b16 %v558, %v554
    %v751 = vpack.c.b16 %v563, %v559
    %v752 = vpack.c.b16 %v564, %v560
    %v753 = vpack.c.b16 %v565, %v561
    %v754 = vpack.c.b16 %v566, %v562
    %v755 = vpack.c.b16 %v571, %v567
    %v756 = vpack.c.b16 %v572, %v568
    %v757 = vpack.c.b16 %v573, %v569
    %v758 = vpack.c.b16 %v574, %v570
    %v759 = vpack.c.b16 %v579, %v575
    %v760 = vpack.c.b16 %v580, %v576
    %v761 = vpack.c.b16 %v581, %v577
    %v762 = vpack.c.b16 %v582, %v578
    %v763 = vpack.c.b16 %v587, %v583
    %v764 = vpack.c.b16 %v588, %v584
    %v765 = vpack.c.b16 %v589, %v585
    %v766 = vpack.c.b16 %v590, %v586
    %v767 = vpack.c.b16 %v595, %v591
    %v768 = vpack.c.b16 %v596, %v592
    %v769 = vpack.c.b16 %v597, %v593
    %v770 = vpack.c.b16 %v598, %v594
    %v771 = vpack.c.b16 %v603, %v599
    %v772 = vpack.c.b16 %v604, %v600
    %v773 = vpack.c.b16 %v605, %v601
    %v774 = vpack.c.b16 %v606, %v602
    %v775 = vpack.c.b16 %v611, %v607
    %v776 = vpack.c.b16 %v612, %v608
    %v777 = vpack.c.b16 %v613, %v609
    %v778 = vpack.c.b16 %v614, %v610
    %v779 = vpack.c.b16 %v619, %v615
    %v780 = vpack.c.b16 %v620, %v616
    %v781 = vpack.c.b16 %v621, %v617
    %v782 = vpack.c.b16 %v622, %v618
    %v783 = vpack.c.b16 %v627, %v623
    %v784 = vpack.c.b16 %v628, %v624
    %v785 = vpack.c.b16 %v629, %v625
    %v786 = vpack.c.b16 %v630, %v626
    %v787 = vpack.c.b16 %v635, %v631
    %v788 = vpack.c.b16 %v636, %v632
    %v789 = vpack.c.b16 %v637, %v633
    %v790 = vpack.c.b16 %v638, %v634
    %v791 = vpack.c.b16 %v643, %v639
    %v792 = vpack.c.b16 %v644, %v640
    %v793 = vpack.c.b16 %v645, %v641
    %v794 = vpack.c.b16 %v646, %v642
    %v795 = vpack.c.b16 %v651, %v647
    %v796 = vpack.c.b16 %v652, %v648
    %v797 = vpack.c.b16 %v653, %v649
    %v798 = vpack.c.b16 %v654, %v650
    %v799 = vpack.c.b16 %v659, %v655
    %v800 = vpack.c.b16 %v660, %v656
    %v801 = vpack.c.b16 %v661, %v657
    %v802 = vpack.c.b16 %v662, %v658
    %v803 = vpack.c.b16 %v667, %v663
    %v804 = vpack.c.b16 %v668, %v664
    %v805 = vpack.c.b16 %v669, %v665
    %v806 = vpack.c.b16 %v670, %v666
    %v807 = vpack.c.b16 %v675, %v671
    %v808 = vpack.c.b16 %v676, %v672
    %v809 = vpack.c.b16 %v677, %v673
    %v810 = vpack.c.b16 %v678, %v674
    %v811 = vpack.c.b16 %v683, %v679
    %v812 = vpack.c.b16 %v684, %v680
    %v813 = vpack.c.b16 %v685, %v681
    %v814 = vpack.c.b16 %v686, %v682
    %v815 = vpack.c.b16 %v687, %v687
    %v816 = vpack.c.b16 %v688, %v688
    %v817 = vpack.c.b16 %v689, %v689
    %v818 = vpack.c.b16 %v690, %v690
    %vm943 = vcmask 949248
    %v945 = vsel %vm943, %v176, 0
    %vm947 = vcmask 1041408
    %v949 = vsel %vm947, %v815, 0
    %v952 = vsel %vm947, %v816, 0
    %v955 = vsel %vm947, %v817, 0
    %v958 = vsel %vm947, %v818, 0
    %960 = vmatpush.bf16.msra.mxu0 %v719
    %961 = vmatpush.bf16.msra.mxu0 %v715
    %962 = vmatpush.bf16.msra.mxu0 %v711
    %963 = vmatpush.bf16.msra.mxu0 %v707
    %964 = vmatpush.bf16.msra.mxu0 %v703
    %965 = vmatpush.bf16.msra.mxu0 %v699
    %966 = vmatpush.bf16.msra.mxu0 %v695
    %967 = vmatpush.bf16.msra.mxu0 %v691
    %968 = vmatmul.bf16.gmra.mxu0 %v173
    %v969 = vpop.f32.mrf.mxu0
    %v970 = vadd.f32 %v305, %v969
    %v971 = vpop.f32.mrf.mxu0
    %v972 = vadd.f32 %v305, %v971
    %973 = vdwg.mxu0
    %974 = vmatpush.bf16.msra.mxu0 %v751
    %975 = vmatpush.bf16.msra.mxu0 %v747
    %976 = vmatpush.bf16.msra.mxu0 %v743
    %977 = vmatpush.bf16.msra.mxu0 %v739
    %978 = vmatpush.bf16.msra.mxu0 %v735
    %979 = vmatpush.bf16.msra.mxu0 %v731
    %980 = vmatpush.bf16.msra.mxu0 %v727
    %981 = vmatpush.bf16.msra.mxu0 %v723
    %982 = vmatmul.bf16.gmra.mxu0 %v174
    %v983 = vpop.f32.mrf.mxu0
    %v984 = vadd.f32 %v970, %v983
    %v985 = vpop.f32.mrf.mxu0
    %v986 = vadd.f32 %v972, %v985
    %987 = vdwg.mxu0
    %988 = vmatpush.bf16.msra.mxu0 %v783
    %989 = vmatpush.bf16.msra.mxu0 %v779
    %990 = vmatpush.bf16.msra.mxu0 %v775
    %991 = vmatpush.bf16.msra.mxu0 %v771
    %992 = vmatpush.bf16.msra.mxu0 %v767
    %993 = vmatpush.bf16.msra.mxu0 %v763
    %994 = vmatpush.bf16.msra.mxu0 %v759
    %995 = vmatpush.bf16.msra.mxu0 %v755
    %996 = vmatmul.bf16.gmra.mxu0 %v175
    %v997 = vpop.f32.mrf.mxu0
    %v998 = vadd.f32 %v984, %v997
    %v999 = vpop.f32.mrf.mxu0
    %v1000 = vadd.f32 %v986, %v999
    %1001 = vdwg.mxu0
    %1002 = vmatpush.bf16.msra.mxu0 %v949
    %1003 = vmatpush.bf16.msra.mxu0 %v811
    %1004 = vmatpush.bf16.msra.mxu0 %v807
    %1005 = vmatpush.bf16.msra.mxu0 %v803
    %1006 = vmatpush.bf16.msra.mxu0 %v799
    %1007 = vmatpush.bf16.msra.mxu0 %v795
    %1008 = vmatpush.bf16.msra.mxu0 %v791
    %1009 = vmatpush.bf16.msra.mxu0 %v787
    %1010 = vmatmul.bf16.gmra.mxu0 %v945
    %v1011 = vpop.f32.mrf.mxu0
    %v1012 = vadd.f32 %v998, %v1011
    %v1013 = vpop.f32.mrf.mxu0
    %v1014 = vadd.f32 %v1000, %v1013
    %1015 = vdwg.mxu0
    %1016 = vmatpush.bf16.msra.mxu0 %v720
    %1017 = vmatpush.bf16.msra.mxu0 %v716
    %1018 = vmatpush.bf16.msra.mxu0 %v712
    %1019 = vmatpush.bf16.msra.mxu0 %v708
    %1020 = vmatpush.bf16.msra.mxu0 %v704
    %1021 = vmatpush.bf16.msra.mxu0 %v700
    %1022 = vmatpush.bf16.msra.mxu0 %v696
    %1023 = vmatpush.bf16.msra.mxu0 %v692
    %1024 = vmatmul.bf16.gmra.mxu0 %v173
    %v1025 = vpop.f32.mrf.mxu0
    %v1026 = vadd.f32 %v306, %v1025
    %v1027 = vpop.f32.mrf.mxu0
    %v1028 = vadd.f32 %v306, %v1027
    %1029 = vdwg.mxu0
    %1030 = vmatpush.bf16.msra.mxu0 %v752
    %1031 = vmatpush.bf16.msra.mxu0 %v748
    %1032 = vmatpush.bf16.msra.mxu0 %v744
    %1033 = vmatpush.bf16.msra.mxu0 %v740
    %1034 = vmatpush.bf16.msra.mxu0 %v736
    %1035 = vmatpush.bf16.msra.mxu0 %v732
    %1036 = vmatpush.bf16.msra.mxu0 %v728
    %1037 = vmatpush.bf16.msra.mxu0 %v724
    %1038 = vmatmul.bf16.gmra.mxu0 %v174
    %v1039 = vpop.f32.mrf.mxu0
    %v1040 = vadd.f32 %v1026, %v1039
    %v1041 = vpop.f32.mrf.mxu0
    %v1042 = vadd.f32 %v1028, %v1041
    %1043 = vdwg.mxu0
    %1044 = vmatpush.bf16.msra.mxu0 %v784
    %1045 = vmatpush.bf16.msra.mxu0 %v780
    %1046 = vmatpush.bf16.msra.mxu0 %v776
    %1047 = vmatpush.bf16.msra.mxu0 %v772
    %1048 = vmatpush.bf16.msra.mxu0 %v768
    %1049 = vmatpush.bf16.msra.mxu0 %v764
    %1050 = vmatpush.bf16.msra.mxu0 %v760
    %1051 = vmatpush.bf16.msra.mxu0 %v756
    %1052 = vmatmul.bf16.gmra.mxu0 %v175
    %v1053 = vpop.f32.mrf.mxu0
    %v1054 = vadd.f32 %v1040, %v1053
    %v1055 = vpop.f32.mrf.mxu0
    %v1056 = vadd.f32 %v1042, %v1055
    %1057 = vdwg.mxu0
    %1058 = vmatpush.bf16.msra.mxu0 %v952
    %1059 = vmatpush.bf16.msra.mxu0 %v812
    %1060 = vmatpush.bf16.msra.mxu0 %v808
    %1061 = vmatpush.bf16.msra.mxu0 %v804
    %1062 = vmatpush.bf16.msra.mxu0 %v800
    %1063 = vmatpush.bf16.msra.mxu0 %v796
    %1064 = vmatpush.bf16.msra.mxu0 %v792
    %1065 = vmatpush.bf16.msra.mxu0 %v788
    %1066 = vmatmul.bf16.gmra.mxu0 %v945
    %v1067 = vpop.f32.mrf.mxu0
    %v1068 = vadd.f32 %v1054, %v1067
    %v1069 = vpop.f32.mrf.mxu0
    %v1070 = vadd.f32 %v1056, %v1069
    %1071 = vdwg.mxu0
    %1072 = vmatpush.bf16.msra.mxu0 %v721
    %1073 = vmatpush.bf16.msra.mxu0 %v717
    %1074 = vmatpush.bf16.msra.mxu0 %v713
    %1075 = vmatpush.bf16.msra.mxu0 %v709
    %1076 = vmatpush.bf16.msra.mxu0 %v705
    %1077 = vmatpush.bf16.msra.mxu0 %v701
    %1078 = vmatpush.bf16.msra.mxu0 %v697
    %1079 = vmatpush.bf16.msra.mxu0 %v693
    %1080 = vmatmul.bf16.gmra.mxu0 %v173
    %v1081 = vpop.f32.mrf.mxu0
    %v1082 = vadd.f32 %v307, %v1081
    %v1083 = vpop.f32.mrf.mxu0
    %v1084 = vadd.f32 %v307, %v1083
    %1085 = vdwg.mxu0
    %1086 = vmatpush.bf16.msra.mxu0 %v753
    %1087 = vmatpush.bf16.msra.mxu0 %v749
    %1088 = vmatpush.bf16.msra.mxu0 %v745
    %1089 = vmatpush.bf16.msra.mxu0 %v741
    %1090 = vmatpush.bf16.msra.mxu0 %v737
    %1091 = vmatpush.bf16.msra.mxu0 %v733
    %1092 = vmatpush.bf16.msra.mxu0 %v729
    %1093 = vmatpush.bf16.msra.mxu0 %v725
    %1094 = vmatmul.bf16.gmra.mxu0 %v174
    %v1095 = vpop.f32.mrf.mxu0
    %v1096 = vadd.f32 %v1082, %v1095
    %v1097 = vpop.f32.mrf.mxu0
    %v1098 = vadd.f32 %v1084, %v1097
    %1099 = vdwg.mxu0
    %1100 = vmatpush.bf16.msra.mxu0 %v785
    %1101 = vmatpush.bf16.msra.mxu0 %v781
    %1102 = vmatpush.bf16.msra.mxu0 %v777
    %1103 = vmatpush.bf16.msra.mxu0 %v773
    %1104 = vmatpush.bf16.msra.mxu0 %v769
    %1105 = vmatpush.bf16.msra.mxu0 %v765
    %1106 = vmatpush.bf16.msra.mxu0 %v761
    %1107 = vmatpush.bf16.msra.mxu0 %v757
    %1108 = vmatmul.bf16.gmra.mxu0 %v175
    %v1109 = vpop.f32.mrf.mxu0
    %v1110 = vadd.f32 %v1096, %v1109
    %v1111 = vpop.f32.mrf.mxu0
    %v1112 = vadd.f32 %v1098, %v1111
    %1113 = vdwg.mxu0
    %1114 = vmatpush.bf16.msra.mxu0 %v955
    %1115 = vmatpush.bf16.msra.mxu0 %v813
    %1116 = vmatpush.bf16.msra.mxu0 %v809
    %1117 = vmatpush.bf16.msra.mxu0 %v805
    %1118 = vmatpush.bf16.msra.mxu0 %v801
    %1119 = vmatpush.bf16.msra.mxu0 %v797
    %1120 = vmatpush.bf16.msra.mxu0 %v793
    %1121 = vmatpush.bf16.msra.mxu0 %v789
    %1122 = vmatmul.bf16.gmra.mxu0 %v945
    %v1123 = vpop.f32.mrf.mxu0
    %v1124 = vadd.f32 %v1110, %v1123
    %v1125 = vpop.f32.mrf.mxu0
    %v1126 = vadd.f32 %v1112, %v1125
    %1127 = vdwg.mxu0
    %1128 = vmatpush.bf16.msra.mxu0 %v722
    %1129 = vmatpush.bf16.msra.mxu0 %v718
    %1130 = vmatpush.bf16.msra.mxu0 %v714
    %1131 = vmatpush.bf16.msra.mxu0 %v710
    %1132 = vmatpush.bf16.msra.mxu0 %v706
    %1133 = vmatpush.bf16.msra.mxu0 %v702
    %1134 = vmatpush.bf16.msra.mxu0 %v698
    %1135 = vmatpush.bf16.msra.mxu0 %v694
    %1136 = vmatmul.bf16.gmra.mxu0 %v173
    %v1137 = vpop.f32.mrf.mxu0
    %v1138 = vadd.f32 %v308, %v1137
    %v1139 = vpop.f32.mrf.mxu0
    %v1140 = vadd.f32 %v308, %v1139
    %1141 = vdwg.mxu0
    %1142 = vmatpush.bf16.msra.mxu0 %v754
    %1143 = vmatpush.bf16.msra.mxu0 %v750
    %1144 = vmatpush.bf16.msra.mxu0 %v746
    %1145 = vmatpush.bf16.msra.mxu0 %v742
    %1146 = vmatpush.bf16.msra.mxu0 %v738
    %1147 = vmatpush.bf16.msra.mxu0 %v734
    %1148 = vmatpush.bf16.msra.mxu0 %v730
    %1149 = vmatpush.bf16.msra.mxu0 %v726
    %1150 = vmatmul.bf16.gmra.mxu0 %v174
    %v1151 = vpop.f32.mrf.mxu0
    %v1152 = vadd.f32 %v1138, %v1151
    %v1153 = vpop.f32.mrf.mxu0
    %v1154 = vadd.f32 %v1140, %v1153
    %1155 = vdwg.mxu0
    %1156 = vmatpush.bf16.msra.mxu0 %v786
    %1157 = vmatpush.bf16.msra.mxu0 %v782
    %1158 = vmatpush.bf16.msra.mxu0 %v778
    %1159 = vmatpush.bf16.msra.mxu0 %v774
    %1160 = vmatpush.bf16.msra.mxu0 %v770
    %1161 = vmatpush.bf16.msra.mxu0 %v766
    %1162 = vmatpush.bf16.msra.mxu0 %v762
    %1163 = vmatpush.bf16.msra.mxu0 %v758
    %1164 = vmatmul.bf16.gmra.mxu0 %v175
    %v1165 = vpop.f32.mrf.mxu0
    %v1166 = vadd.f32 %v1152, %v1165
    %v1167 = vpop.f32.mrf.mxu0
    %v1168 = vadd.f32 %v1154, %v1167
    %1169 = vdwg.mxu0
    %1170 = vmatpush.bf16.msra.mxu0 %v958
    %1171 = vmatpush.bf16.msra.mxu0 %v814
    %1172 = vmatpush.bf16.msra.mxu0 %v810
    %1173 = vmatpush.bf16.msra.mxu0 %v806
    %1174 = vmatpush.bf16.msra.mxu0 %v802
    %1175 = vmatpush.bf16.msra.mxu0 %v798
    %1176 = vmatpush.bf16.msra.mxu0 %v794
    %1177 = vmatpush.bf16.msra.mxu0 %v790
    %1178 = vmatmul.bf16.gmra.mxu0 %v945
    %v1179 = vpop.f32.mrf.mxu0
    %v1180 = vadd.f32 %v1166, %v1179
    %v1181 = vpop.f32.mrf.mxu0
    %v1182 = vadd.f32 %v1168, %v1181
    %1183 = vdwg.mxu0
    %v1184 = vtanh.pop %v1012
    %v1185 = vtanh.pop %v1068
    %v1186 = vtanh.pop %v1124
    %v1187 = vtanh.pop %v1180
    %v1188 = vtanh.pop %v1014
    %v1189 = vtanh.pop %v1070
    %v1190 = vtanh.pop %v1126
    %v1191 = vtanh.pop %v1182
    %v1192 = vpack.c.bf16 %v1188, %v1184
    %v1193 = vpack.c.bf16 %v1189, %v1185
    %v1194 = vpack.c.bf16 %v1190, %v1186
    %v1195 = vpack.c.bf16 %v1191, %v1187
    %v1196 = vld [vmem:[%s5] sm:$0xf]
    %v1197 = vld [vmem:[%s5 + $0x4] sm:$0xf]
    %v1198 = vld [vmem:[%s5 + $0x8] sm:$0xf]
    %v1199 = vld [vmem:[%s5 + $0xc] sm:$0xf]
    %v1200 = vld [vmem:[%s5 + $0x10] sm:$0xf]
    %v1201 = vld [vmem:[%s5 + $0x14] sm:$0xf]
    %v1202 = vld [vmem:[%s5 + $0x18] sm:$0xf]
    %v1203 = vld [vmem:[%s5 + $0x1c] sm:$0xf]
    %v1204 = vld [vmem:[%s5 + $0x20] sm:$0xf]
    %v1205 = vld [vmem:[%s5 + $0x24] sm:$0xf]
    %v1206 = vld [vmem:[%s5 + $0x28] sm:$0xf]
    %v1207 = vld [vmem:[%s5 + $0x2c] sm:$0xf]
    %v1208 = vld [vmem:[%s5 + $0x30] sm:$0xf]
    %v1209 = vld [vmem:[%s5 + $0x34] sm:$0xf]
    %v1210 = vld [vmem:[%s5 + $0x38] sm:$0xf]
    %v1211 = vld [vmem:[%s5 + $0x3c] sm:$0xf]
    %v1212 = vld [vmem:[%s5 + $0x40] sm:$0xf]
    %v1213 = vld [vmem:[%s5 + $0x44] sm:$0xf]
    %v1214 = vld [vmem:[%s5 + $0x48] sm:$0xf]
    %v1215 = vld [vmem:[%s5 + $0x4c] sm:$0xf]
    %v1216 = vld [vmem:[%s5 + $0x50] sm:$0xf]
    %v1217 = vld [vmem:[%s5 + $0x54] sm:$0xf]
    %v1218 = vld [vmem:[%s5 + $0x58] sm:$0xf]
    %v1219 = vld [vmem:[%s5 + $0x5c] sm:$0xf]
    %v1220 = vld [vmem:[%s5 + $0x60] sm:$0xf]
    %v1221 = vld [vmem:[%s5 + $0x64] sm:$0xf]
    %v1222 = vld [vmem:[%s5 + $0x68] sm:$0xf]
    %v1223 = vld [vmem:[%s5 + $0x6c] sm:$0xf]
    %v1224 = vld [vmem:[%s5 + $0x70] sm:$0xf]
    %v1225 = vld [vmem:[%s5 + $0x74] sm:$0xf]
    %v1226 = vld [vmem:[%s5 + $0x78] sm:$0xf]
    %v1227 = vld [vmem:[%s5 + $0x7c] sm:$0xf]
    %v1228 = vld [vmem:[%s5 + $0x80] sm:$0xf]
    %v1229 = vld [vmem:[%s5 + $0x84] sm:$0xf]
    %v1230 = vld [vmem:[%s5 + $0x88] sm:$0xf]
    %v1231 = vld [vmem:[%s5 + $0x8c] sm:$0xf]
    %v1232 = vld [vmem:[%s5 + $0x90] sm:$0xf]
    %v1233 = vld [vmem:[%s5 + $0x94] sm:$0xf]
    %v1234 = vld [vmem:[%s5 + $0x98] sm:$0xf]
    %v1235 = vld [vmem:[%s5 + $0x9c] sm:$0xf]
    %v1236 = vld [vmem:[%s5 + $0xa0] sm:$0xf]
    %v1237 = vld [vmem:[%s5 + $0xa4] sm:$0xf]
    %v1238 = vld [vmem:[%s5 + $0xa8] sm:$0xf]
    %v1239 = vld [vmem:[%s5 + $0xac] sm:$0xf]
    %v1240 = vld [vmem:[%s5 + $0xb0] sm:$0xf]
    %v1241 = vld [vmem:[%s5 + $0xb4] sm:$0xf]
    %v1242 = vld [vmem:[%s5 + $0xb8] sm:$0xf]
    %v1243 = vld [vmem:[%s5 + $0xbc] sm:$0xf]
    %v1244 = vld [vmem:[%s5 + $0xc0] sm:$0xf]
    %v1245 = vld [vmem:[%s5 + $0xc4] sm:$0xf]
    %v1246 = vld [vmem:[%s5 + $0xc8] sm:$0xf]
    %v1247 = vld [vmem:[%s5 + $0xcc] sm:$0xf]
    %v1248 = vld [vmem:[%s5 + $0xd0] sm:$0xf]
    %v1249 = vld [vmem:[%s5 + $0xd4] sm:$0xf]
    %v1250 = vld [vmem:[%s5 + $0xd8] sm:$0xf]
    %v1251 = vld [vmem:[%s5 + $0xdc] sm:$0xf]
    %v1252 = vld [vmem:[%s5 + $0xe0] sm:$0xf]
    %v1253 = vld [vmem:[%s5 + $0xe4] sm:$0xf]
    %v1254 = vld [vmem:[%s5 + $0xe8] sm:$0xf]
    %v1255 = vld [vmem:[%s5 + $0xec] sm:$0xf]
    %v1256 = vld [vmem:[%s5 + $0xf0] sm:$0xf]
    %v1257 = vld [vmem:[%s5 + $0xf4] sm:$0xf]
    %v1258 = vld [vmem:[%s5 + $0xf8] sm:$0x3]
    %v1259 = vld [vmem:[%s6] sm:$0x1]
    %v1261 = vperm.slane %v1259, 0
    %v1326 = vunpack.c.l.b16 %v1196
    %v1327 = vunpack.c.l.b16 %v1197
    %v1328 = vunpack.c.l.b16 %v1198
    %v1329 = vunpack.c.l.b16 %v1199
    %v1330 = vunpack.c.l.b16 %v1200
    %v1331 = vunpack.c.l.b16 %v1201
    %v1332 = vunpack.c.l.b16 %v1202
    %v1333 = vunpack.c.l.b16 %v1203
    %v1334 = vunpack.c.l.b16 %v1204
    %v1335 = vunpack.c.l.b16 %v1205
    %v1336 = vunpack.c.l.b16 %v1206
    %v1337 = vunpack.c.l.b16 %v1207
    %v1338 = vunpack.c.l.b16 %v1208
    %v1339 = vunpack.c.l.b16 %v1209
    %v1340 = vunpack.c.l.b16 %v1210
    %v1341 = vunpack.c.l.b16 %v1211
    %v1342 = vunpack.c.l.b16 %v1212
    %v1343 = vunpack.c.l.b16 %v1213
    %v1344 = vunpack.c.l.b16 %v1214
    %v1345 = vunpack.c.l.b16 %v1215
    %v1346 = vunpack.c.l.b16 %v1216
    %v1347 = vunpack.c.l.b16 %v1217
    %v1348 = vunpack.c.l.b16 %v1218
    %v1349 = vunpack.c.l.b16 %v1219
    %v1350 = vunpack.c.l.b16 %v1220
    %v1351 = vunpack.c.l.b16 %v1221
    %v1352 = vunpack.c.l.b16 %v1222
    %v1353 = vunpack.c.l.b16 %v1223
    %v1354 = vunpack.c.l.b16 %v1224
    %v1355 = vunpack.c.l.b16 %v1225
    %v1356 = vunpack.c.l.b16 %v1226
    %v1357 = vunpack.c.l.b16 %v1227
    %v1358 = vunpack.c.l.b16 %v1228
    %v1359 = vunpack.c.l.b16 %v1229
    %v1360 = vunpack.c.l.b16 %v1230
    %v1361 = vunpack.c.l.b16 %v1231
    %v1362 = vunpack.c.l.b16 %v1232
    %v1363 = vunpack.c.l.b16 %v1233
    %v1364 = vunpack.c.l.b16 %v1234
    %v1365 = vunpack.c.l.b16 %v1235
    %v1366 = vunpack.c.l.b16 %v1236
    %v1367 = vunpack.c.l.b16 %v1237
    %v1368 = vunpack.c.l.b16 %v1238
    %v1369 = vunpack.c.l.b16 %v1239
    %v1370 = vunpack.c.l.b16 %v1240
    %v1371 = vunpack.c.l.b16 %v1241
    %v1372 = vunpack.c.l.b16 %v1242
    %v1373 = vunpack.c.l.b16 %v1243
    %v1374 = vunpack.c.l.b16 %v1244
    %v1375 = vunpack.c.l.b16 %v1245
    %v1376 = vunpack.c.l.b16 %v1246
    %v1377 = vunpack.c.l.b16 %v1247
    %v1378 = vunpack.c.l.b16 %v1248
    %v1379 = vunpack.c.l.b16 %v1249
    %v1380 = vunpack.c.l.b16 %v1250
    %v1381 = vunpack.c.l.b16 %v1251
    %v1382 = vunpack.c.l.b16 %v1252
    %v1383 = vunpack.c.l.b16 %v1253
    %v1384 = vunpack.c.l.b16 %v1254
    %v1385 = vunpack.c.l.b16 %v1255
    %v1386 = vunpack.c.l.b16 %v1256
    %v1387 = vunpack.c.l.b16 %v1257
    %v1388 = vunpack.c.l.b16 %v1258
    %v1389 = vpack.c.b16 %v1327, %v1326
    %v1390 = vpack.c.b16 %v1329, %v1328
    %v1391 = vpack.c.b16 %v1331, %v1330
    %v1392 = vpack.c.b16 %v1333, %v1332
    %v1393 = vpack.c.b16 %v1335, %v1334
    %v1394 = vpack.c.b16 %v1337, %v1336
    %v1395 = vpack.c.b16 %v1339, %v1338
    %v1396 = vpack.c.b16 %v1341, %v1340
    %v1397 = vpack.c.b16 %v1343, %v1342
    %v1398 = vpack.c.b16 %v1345, %v1344
    %v1399 = vpack.c.b16 %v1347, %v1346
    %v1400 = vpack.c.b16 %v1349, %v1348
    %v1401 = vpack.c.b16 %v1351, %v1350
    %v1402 = vpack.c.b16 %v1353, %v1352
    %v1403 = vpack.c.b16 %v1355, %v1354
    %v1404 = vpack.c.b16 %v1357, %v1356
    %v1405 = vpack.c.b16 %v1359, %v1358
    %v1406 = vpack.c.b16 %v1361, %v1360
    %v1407 = vpack.c.b16 %v1363, %v1362
    %v1408 = vpack.c.b16 %v1365, %v1364
    %v1409 = vpack.c.b16 %v1367, %v1366
    %v1410 = vpack.c.b16 %v1369, %v1368
    %v1411 = vpack.c.b16 %v1371, %v1370
    %v1412 = vpack.c.b16 %v1373, %v1372
    %v1413 = vpack.c.b16 %v1375, %v1374
    %v1414 = vpack.c.b16 %v1377, %v1376
    %v1415 = vpack.c.b16 %v1379, %v1378
    %v1416 = vpack.c.b16 %v1381, %v1380
    %v1417 = vpack.c.b16 %v1383, %v1382
    %v1418 = vpack.c.b16 %v1385, %v1384
    %v1419 = vpack.c.b16 %v1387, %v1386
    %v1420 = vpack.c.b16 %v1388, %v1388
    %v1453 = vsel %vm943, %v1195, 0
    %v1456 = vsel %vm947, %v1420, 0
    %1458 = vmatpush.bf16.msra.mxu0 %v1396
    %1459 = vmatpush.bf16.msra.mxu0 %v1395
    %1460 = vmatpush.bf16.msra.mxu0 %v1394
    %1461 = vmatpush.bf16.msra.mxu0 %v1393
    %1462 = vmatpush.bf16.msra.mxu0 %v1392
    %1463 = vmatpush.bf16.msra.mxu0 %v1391
    %1464 = vmatpush.bf16.msra.mxu0 %v1390
    %1465 = vmatpush.bf16.msra.mxu0 %v1389
    %1466 = vmatmul.bf16.gmra.mxu0 %v1192
    %v1467 = vpop.f32.mrf.mxu0
    %v1468 = vadd.f32 %v1261, %v1467
    %v1469 = vpop.f32.mrf.mxu0
    %v1470 = vadd.f32 %v1261, %v1469
    %1471 = vdwg.mxu0
    %1472 = vmatpush.bf16.msra.mxu0 %v1404
    %1473 = vmatpush.bf16.msra.mxu0 %v1403
    %1474 = vmatpush.bf16.msra.mxu0 %v1402
    %1475 = vmatpush.bf16.msra.mxu0 %v1401
    %1476 = vmatpush.bf16.msra.mxu0 %v1400
    %1477 = vmatpush.bf16.msra.mxu0 %v1399
    %1478 = vmatpush.bf16.msra.mxu0 %v1398
    %1479 = vmatpush.bf16.msra.mxu0 %v1397
    %1480 = vmatmul.bf16.gmra.mxu0 %v1193
    %v1481 = vpop.f32.mrf.mxu0
    %v1482 = vadd.f32 %v1468, %v1481
    %v1483 = vpop.f32.mrf.mxu0
    %v1484 = vadd.f32 %v1470, %v1483
    %1485 = vdwg.mxu0
    %1486 = vmatpush.bf16.msra.mxu0 %v1412
    %1487 = vmatpush.bf16.msra.mxu0 %v1411
    %1488 = vmatpush.bf16.msra.mxu0 %v1410
    %1489 = vmatpush.bf16.msra.mxu0 %v1409
    %1490 = vmatpush.bf16.msra.mxu0 %v1408
    %1491 = vmatpush.bf16.msra.mxu0 %v1407
    %1492 = vmatpush.bf16.msra.mxu0 %v1406
    %1493 = vmatpush.bf16.msra.mxu0 %v1405
    %1494 = vmatmul.bf16.gmra.mxu0 %v1194
    %v1495 = vpop.f32.mrf.mxu0
    %v1496 = vadd.f32 %v1482, %v1495
    %v1497 = vpop.f32.mrf.mxu0
    %v1498 = vadd.f32 %v1484, %v1497
    %1499 = vdwg.mxu0
    %1500 = vmatpush.bf16.msra.mxu0 %v1456
    %1501 = vmatpush.bf16.msra.mxu0 %v1419
    %1502 = vmatpush.bf16.msra.mxu0 %v1418
    %1503 = vmatpush.bf16.msra.mxu0 %v1417
    %1504 = vmatpush.bf16.msra.mxu0 %v1416
    %1505 = vmatpush.bf16.msra.mxu0 %v1415
    %1506 = vmatpush.bf16.msra.mxu0 %v1414
    %1507 = vmatpush.bf16.msra.mxu0 %v1413
    %1508 = vmatmul.bf16.gmra.mxu0 %v1453
    %v1509 = vpop.f32.mrf.mxu0
    %v1510 = vadd.f32 %v1496, %v1509
    %v1511 = vpop.f32.mrf.mxu0
    %v1512 = vadd.f32 %v1498, %v1511
    %1513 = vdwg.mxu0
    %vm1514 = vcmask 244736
    %1515 = vst.msk [vmem:[#allocation5] sm:$0xff] %vm1514, %v1510
    %1516 = vst.msk [vmem:[#allocation5 + $0x8] sm:$0xff] %vm1514, %v1512
    // Predicated region
    $region34: #{ltc_sequence_forward.5} parent=1 // pred_check
      _
    $region35: #{ltc_sequence_forward.5} parent=1 // pred_check_branch
      %1518 = sbr.rel (0) target = $region37
    $region36: #{ltc_sequence_forward.5} parent=1 // pred_region
      %1520 = vsyncadd [#allocation4], 0
      %s1521 = sshll.u32 [#allocation5], 4
      %s1522 = int_to_ptr.vmem [resolvable:$true] %s1521
      %s1523 = sshll.u32 %s7, 4
      %s1524 = int_to_ptr.hbm [resolvable:$true] %s1523
      %1529 = dma.vmem_to_hbm [thread:$0]  %s1522, 256, %s1524, [#allocation4], 128, 128, 8
    $region37: #{ltc_sequence_forward.5} parent=1 // pred_fallthru
      _
    // Predicated region
    $region38: #{ltc_sequence_forward.5} parent=1 // pred_check
      _
    $region39: #{ltc_sequence_forward.5} parent=1 // pred_check_branch
      %1531 = sbr.rel (0) target = $region41
    $region40: #{ltc_sequence_forward.5} parent=1 // pred_region
      %1533 = dma.done [#allocation4], 256
    $region41: #{ltc_sequence_forward.5} parent=1 // pred_fallthru
      _
    %1534 = vsyncpa [#allocation3], 1
    %1535 = vsyncpa [#allocation4], 1

// kernel: ltc_sequence_forward.3
$region0: #{ltc_sequence_forward.3}
  #allocation0 [shape = 'u32[]', space=smem, size = 0x4, offset = 0x4, fixed_abs, tag = 'smem constant byte address 0x4 - core index']
  #allocation1 [shape = 'u32[72,128]{1,0:T(1,128)}', space=vmem, size = 0x9000, scoped, tag = 'internal scratch']
  %s0 = inlined_call_operand.vmem [shape: f32[16,39], index: 0, kind: input, shape index: {}]
  %s1 = inlined_call_operand.vmem [shape: bf16[39,500], index: 1, kind: input, shape index: {}]
  %s2 = inlined_call_operand.vmem [shape: f32[1,500], index: 2, kind: input, shape index: {}]
  %s3 = inlined_call_operand.hbm [shape: bf16[500,500], index: 3, kind: input, shape index: {}]
  %s4 = inlined_call_operand.vmem [shape: f32[1,500], index: 4, kind: input, shape index: {}]
  %s5 = inlined_call_operand.vmem [shape: bf16[500,32], index: 5, kind: input, shape index: {}]
  %s6 = inlined_call_operand.vmem [shape: f32[1,32], index: 6, kind: input, shape index: {}]
  %s7 = inlined_call_operand.vmem [shape: f32[16,32], index: 7, kind: output, shape index: {}]
  %s8 = sld [smem:[#allocation0]]
  $region42: #{ltc_sequence_forward.3} parent=0
    _
  %s10 = ssub.s32 1, %s8
  %s11 = scalar_select 0, %s10, %s8
  $region1: #{ltc_sequence_forward.3} parent=0
    #allocation2 [shape = 'u8[516096]{0}', space=vmem, size = 0x7e000, scoped, tag = 'input window, operand 3, single buffered']
    #allocation3 [shape = 's32[1]{0}', space=sflag, size = 0x4, scoped, tag = 'scoped memory for ltc_sequence_forward.3']
    %12 = vsyncpa [#allocation3], 0
    // Predicated region
    $region2: #{ltc_sequence_forward.3} parent=1 // pred_check
      _
    $region3: #{ltc_sequence_forward.3} parent=1 // pred_check_branch
      %14 = sbr.rel (0) target = $region5
    $region4: #{ltc_sequence_forward.3} parent=1 // pred_region
      _
    $region5: #{ltc_sequence_forward.3} parent=1 // pred_fallthru
      _
    // Predicated region
    $region6: #{ltc_sequence_forward.3} parent=1 // pred_check
      _
    $region7: #{ltc_sequence_forward.3} parent=1 // pred_check_branch
      %16 = sbr.rel (0) target = $region9
    $region8: #{ltc_sequence_forward.3} parent=1 // pred_region
      _
    $region9: #{ltc_sequence_forward.3} parent=1 // pred_fallthru
      _
    // Predicated region
    $region10: #{ltc_sequence_forward.3} parent=1 // pred_check
      _
    $region11: #{ltc_sequence_forward.3} parent=1 // pred_check_branch
      %18 = sbr.rel (0) target = $region13
    $region12: #{ltc_sequence_forward.3} parent=1 // pred_region
      _
    $region13: #{ltc_sequence_forward.3} parent=1 // pred_fallthru
      _
    // Predicated region
    $region14: #{ltc_sequence_forward.3} parent=1 // pred_check
      _
    $region15: #{ltc_sequence_forward.3} parent=1 // pred_check_branch
      %20 = sbr.rel (0) target = $region17
    $region16: #{ltc_sequence_forward.3} parent=1 // pred_region
      %22 = vsyncadd [#allocation3], 0
      %s23 = sshll.u32 %s3, 4
      %s24 = int_to_ptr.hbm [resolvable:$true] %s23
      %s25 = sshll.u32 [#allocation2], 4
      %s26 = int_to_ptr.vmem [resolvable:$true] %s25
      %31 = dma.hbm_to_vmem [thread:$0]  %s24, 16128, %s26, [#allocation3], 256, 256, 16
    $region17: #{ltc_sequence_forward.3} parent=1 // pred_fallthru
      _
    // Predicated region
    $region18: #{ltc_sequence_forward.3} parent=1 // pred_check
      _
    $region19: #{ltc_sequence_forward.3} parent=1 // pred_check_branch
      %33 = sbr.rel (0) target = $region21
    $region20: #{ltc_sequence_forward.3} parent=1 // pred_region
      _
    $region21: #{ltc_sequence_forward.3} parent=1 // pred_fallthru
      _
    // Predicated region
    $region22: #{ltc_sequence_forward.3} parent=1 // pred_check
      _
    $region23: #{ltc_sequence_forward.3} parent=1 // pred_check_branch
      %35 = sbr.rel (0) target = $region25
    $region24: #{ltc_sequence_forward.3} parent=1 // pred_region
      _
    $region25: #{ltc_sequence_forward.3} parent=1 // pred_fallthru
      _
    // Predicated region
    $region26: #{ltc_sequence_forward.3} parent=1 // pred_check
      _
    $region27: #{ltc_sequence_forward.3} parent=1 // pred_check_branch
      %37 = sbr.rel (0) target = $region29
    $region28: #{ltc_sequence_forward.3} parent=1 // pred_region
      _
    $region29: #{ltc_sequence_forward.3} parent=1 // pred_fallthru
      _
    // Predicated region
    $region30: #{ltc_sequence_forward.3} parent=1 // pred_check
      _
    $region31: #{ltc_sequence_forward.3} parent=1 // pred_check_branch
      %39 = sbr.rel (0) target = $region33
    $region32: #{ltc_sequence_forward.3} parent=1 // pred_region
      %41 = dma.done [#allocation3], 16128
    $region33: #{ltc_sequence_forward.3} parent=1 // pred_fallthru
      _
    %v43 = vld [vmem:[%s0] sm:$0xff]
    %v44 = vld [vmem:[%s0 + $0x8] sm:$0xff]
    %v45 = vpack.c.bf16 %v44, %v43
    %v46 = vld [vmem:[%s1] sm:$0xff]
    %v47 = vld [vmem:[%s1 + $0x8] sm:$0xff]
    %v48 = vld [vmem:[%s1 + $0x10] sm:$0xff]
    %v49 = vld [vmem:[%s1 + $0x18] sm:$0xff]
    %v50 = vld [vmem:[%s1 + $0x20] sm:$0xff]
    %v51 = vld [vmem:[%s1 + $0x28] sm:$0xff]
    %v52 = vld [vmem:[%s1 + $0x30] sm:$0xff]
    %v53 = vld [vmem:[%s1 + $0x38] sm:$0xff]
    %v54 = vld [vmem:[%s1 + $0x40] sm:$0xff]
    %v55 = vld [vmem:[%s1 + $0x48] sm:$0xff]
    %v56 = vld [vmem:[%s2] sm:$0xf]
    %v58 = vperm.slane %v56, 0
    %v59 = vperm.slane %v56, 1
    %v60 = vperm.slane %v56, 2
    %v61 = vperm.slane %v56, 3
    %v76 = vunpack.c.l.b16 %v46
    %v77 = vunpack.c.h.b16 %v46
    %v78 = vunpack.c.l.b16 %v47
    %v79 = vunpack.c.h.b16 %v47
    %v80 = vunpack.c.l.b16 %v48
    %v81 = vunpack.c.h.b16 %v48
    %v82 = vunpack.c.l.b16 %v49
    %v83 = vunpack.c.h.b16 %v49
    %v84 = vunpack.c.l.b16 %v50
    %v85 = vunpack.c.h.b16 %v50
    %v86 = vunpack.c.l.b16 %v51
    %v87 = vunpack.c.h.b16 %v51
    %v88 = vunpack.c.l.b16 %v52
    %v89 = vunpack.c.h.b16 %v52
    %v90 = vunpack.c.l.b16 %v53
    %v91 = vunpack.c.h.b16 %v53
    %v92 = vunpack.c.l.b16 %v54
    %v93 = vunpack.c.h.b16 %v54
    %v94 = vunpack.c.l.b16 %v55
    %v95 = vunpack.c.h.b16 %v55
    %v96 = vpack.c.b16 %v80, %v76
    %v97 = vpack.c.b16 %v81, %v77
    %v98 = vpack.c.b16 %v82, %v78
    %v99 = vpack.c.b16 %v83, %v79
    %v100 = vpack.c.b16 %v88, %v84
    %v101 = vpack.c.b16 %v89, %v85
    %v102 = vpack.c.b16 %v90, %v86
    %v103 = vpack.c.b16 %v91, %v87
    %v104 = vpack.c.b16 %v92, %v92
    %v105 = vpack.c.b16 %v93, %v93
    %v106 = vpack.c.b16 %v94, %v94
    %v107 = vpack.c.b16 %v95, %v95
    %vm116 = vcmask 318464
    %v118 = vsel %vm116, %v45, 0
    %vm120 = vcmask 1042432
    %vm121 = vcmask 1043456
    %v122 = vsel %vm120, 4294967295, 65535
    %v123 = vsel %vm121, %v122, 0
    %v125 = vand.u32 %v104, %v123
    %v128 = vand.u32 %v105, %v123
    %v131 = vand.u32 %v106, %v123
    %v134 = vand.u32 %v107, %v123
    %136 = vmatpush.bf16.msra.mxu0 0
    %137 = vmatpush.bf16.msra.mxu0 0
    %138 = vmatpush.bf16.msra.mxu0 0
    %139 = vmatpush.bf16.msra.mxu0 0
    %140 = vmatpush.bf16.msra.mxu0 0
    %141 = vmatpush.bf16.msra.mxu0 %v125
    %142 = vmatpush.bf16.msra.mxu0 %v100
    %143 = vmatpush.bf16.msra.mxu0 %v96
    %144 = vmatmul.bf16.gmra.mxu0 %v118
    %v145 = vpop.f32.mrf.mxu0
    %v146 = vadd.f32 %v58, %v145
    %v147 = vpop.f32.mrf.mxu0
    %v148 = vadd.f32 %v58, %v147
    %149 = vdwg.mxu0
    %150 = vmatpush.bf16.msra.mxu0 0
    %151 = vmatpush.bf16.msra.mxu0 0
    %152 = vmatpush.bf16.msra.mxu0 0
    %153 = vmatpush.bf16.msra.mxu0 0
    %154 = vmatpush.bf16.msra.mxu0 0
    %155 = vmatpush.bf16.msra.mxu0 %v128
    %156 = vmatpush.bf16.msra.mxu0 %v101
    %157 = vmatpush.bf16.msra.mxu0 %v97
    %158 = vmatmul.bf16.gmra.mxu0 %v118
    %v159 = vpop.f32.mrf.mxu0
    %v160 = vadd.f32 %v59, %v159
    %v161 = vpop.f32.mrf.mxu0
    %v162 = vadd.f32 %v59, %v161
    %163 = vdwg.mxu0
    %164 = vmatpush.bf16.msra.mxu0 0
    %165 = vmatpush.bf16.msra.mxu0 0
    %166 = vmatpush.bf16.msra.mxu0 0
    %167 = vmatpush.bf16.msra.mxu0 0
    %168 = vmatpush.bf16.msra.mxu0 0
    %169 = vmatpush.bf16.msra.mxu0 %v131
    %170 = vmatpush.bf16.msra.mxu0 %v102
    %171 = vmatpush.bf16.msra.mxu0 %v98
    %172 = vmatmul.bf16.gmra.mxu0 %v118
    %v173 = vpop.f32.mrf.mxu0
    %v174 = vadd.f32 %v60, %v173
    %v175 = vpop.f32.mrf.mxu0
    %v176 = vadd.f32 %v60, %v175
    %177 = vdwg.mxu0
    %178 = vmatpush.bf16.msra.mxu0 0
    %179 = vmatpush.bf16.msra.mxu0 0
    %180 = vmatpush.bf16.msra.mxu0 0
    %181 = vmatpush.bf16.msra.mxu0 0
    %182 = vmatpush.bf16.msra.mxu0 0
    %183 = vmatpush.bf16.msra.mxu0 %v134
    %184 = vmatpush.bf16.msra.mxu0 %v103
    %185 = vmatpush.bf16.msra.mxu0 %v99
    %186 = vmatmul.bf16.gmra.mxu0 %v118
    %v187 = vpop.f32.mrf.mxu0
    %v188 = vadd.f32 %v61, %v187
    %v189 = vpop.f32.mrf.mxu0
    %v190 = vadd.f32 %v61, %v189
    %191 = vdwg.mxu0
    %v192 = vtanh.pop %v146
    %v193 = vtanh.pop %v160
    %v194 = vtanh.pop %v174
    %v195 = vtanh.pop %v188
    %v196 = vtanh.pop %v148
    %v197 = vtanh.pop %v162
    %v198 = vtanh.pop %v176
    %v199 = vtanh.pop %v190
    %v200 = vpack.c.bf16 %v196, %v192
    %v201 = vpack.c.bf16 %v197, %v193
    %v202 = vpack.c.bf16 %v198, %v194
    %v203 = vpack.c.bf16 %v199, %v195
    %v204 = vld [vmem:[#allocation2] sm:$0xff]
    %v205 = vld [vmem:[#allocation2 + $0x8] sm:$0xff]
    %v206 = vld [vmem:[#allocation2 + $0x10] sm:$0xff]
    %v207 = vld [vmem:[#allocation2 + $0x18] sm:$0xff]
    %v208 = vld [vmem:[#allocation2 + $0x20] sm:$0xff]
    %v209 = vld [vmem:[#allocation2 + $0x28] sm:$0xff]
    %v210 = vld [vmem:[#allocation2 + $0x30] sm:$0xff]
    %v211 = vld [vmem:[#allocation2 + $0x38] sm:$0xff]
    %v212 = vld [vmem:[#allocation2 + $0x40] sm:$0xff]
    %v213 = vld [vmem:[#allocation2 + $0x48] sm:$0xff]
    %v214 = vld [vmem:[#allocation2 + $0x50] sm:$0xff]
    %v215 = vld [vmem:[#allocation2 + $0x58] sm:$0xff]
    %v216 = vld [vmem:[#allocation2 + $0x60] sm:$0xff]
    %v217 = vld [vmem:[#allocation2 + $0x68] sm:$0xff]
    %v218 = vld [vmem:[#allocation2 + $0x70] sm:$0xff]
    %v219 = vld [vmem:[#allocation2 + $0x78] sm:$0xff]
    %v220 = vld [vmem:[#allocation2 + $0x80] sm:$0xff]
    %v221 = vld [vmem:[#allocation2 + $0x88] sm:$0xff]
    %v222 = vld [vmem:[#allocation2 + $0x90] sm:$0xff]
    %v223 = vld [vmem:[#allocation2 + $0x98] sm:$0xff]
    %v224 = vld [vmem:[#allocation2 + $0xa0] sm:$0xff]
    %v225 = vld [vmem:[#allocation2 + $0xa8] sm:$0xff]
    %v226 = vld [vmem:[#allocation2 + $0xb0] sm:$0xff]
    %v227 = vld [vmem:[#allocation2 + $0xb8] sm:$0xff]
    %v228 = vld [vmem:[#allocation2 + $0xc0] sm:$0xff]
    %v229 = vld [vmem:[#allocation2 + $0xc8] sm:$0xff]
    %v230 = vld [vmem:[#allocation2 + $0xd0] sm:$0xff]
    %v231 = vld [vmem:[#allocation2 + $0xd8] sm:$0xff]
    %v232 = vld [vmem:[#allocation2 + $0xe0] sm:$0xff]
    %v233 = vld [vmem:[#allocation2 + $0xe8] sm:$0xff]
    %v234 = vld [vmem:[#allocation2 + $0xf0] sm:$0xff]
    %v235 = vld [vmem:[#allocation2 + $0xf8] sm:$0xff]
    %v236 = vld [vmem:[#allocation2 + $0x100] sm:$0xff]
    %v237 = vld [vmem:[#allocation2 + $0x108] sm:$0xff]
    %v238 = vld [vmem:[#allocation2 + $0x110] sm:$0xff]
    %v239 = vld [vmem:[#allocation2 + $0x118] sm:$0xff]
    %v240 = vld [vmem:[#allocation2 + $0x120] sm:$0xff]
    %v241 = vld [vmem:[#allocation2 + $0x128] sm:$0xff]
    %v242 = vld [vmem:[#allocation2 + $0x130] sm:$0xff]
    %v243 = vld [vmem:[#allocation2 + $0x138] sm:$0xff]
    %v244 = vld [vmem:[#allocation2 + $0x140] sm:$0xff]
    %v245 = vld [vmem:[#allocation2 + $0x148] sm:$0xff]
    %v246 = vld [vmem:[#allocation2 + $0x150] sm:$0xff]
    %v247 = vld [vmem:[#allocation2 + $0x158] sm:$0xff]
    %v248 = vld [vmem:[#allocation2 + $0x160] sm:$0xff]
    %v249 = vld [vmem:[#allocation2 + $0x168] sm:$0xff]
    %v250 = vld [vmem:[#allocation2 + $0x170] sm:$0xff]
    %v251 = vld [vmem:[#allocation2 + $0x178] sm:$0xff]
    %v252 = vld [vmem:[#allocation2 + $0x180] sm:$0xff]
    %v253 = vld [vmem:[#allocation2 + $0x188] sm:$0xff]
    %v254 = vld [vmem:[#allocation2 + $0x190] sm:$0xff]
    %v255 = vld [vmem:[#allocation2 + $0x198] sm:$0xff]
    %v256 = vld [vmem:[#allocation2 + $0x1a0] sm:$0xff]
    %v257 = vld [vmem:[#allocation2 + $0x1a8] sm:$0xff]
    %v258 = vld [vmem:[#allocation2 + $0x1b0] sm:$0xff]
    %v259 = vld [vmem:[#allocation2 + $0x1b8] sm:$0xff]
    %v260 = vld [vmem:[#allocation2 + $0x1c0] sm:$0xff]
    %v261 = vld [vmem:[#allocation2 + $0x1c8] sm:$0xff]
    %v262 = vld [vmem:[#allocation2 + $0x1d0] sm:$0xff]
    %v263 = vld [vmem:[#allocation2 + $0x1d8] sm:$0xff]
    %v264 = vld [vmem:[#allocation2 + $0x1e0] sm:$0xff]
    %v265 = vld [vmem:[#allocation2 + $0x1e8] sm:$0xff]
    %v266 = vld [vmem:[#allocation2 + $0x1f0] sm:$0xff]
    %v267 = vld [vmem:[#allocation2 + $0x1f8] sm:$0xff]
    %v268 = vld [vmem:[#allocation2 + $0x200] sm:$0xff]
    %v269 = vld [vmem:[#allocation2 + $0x208] sm:$0xff]
    %v270 = vld [vmem:[#allocation2 + $0x210] sm:$0xff]
    %v271 = vld [vmem:[#allocation2 + $0x218] sm:$0xff]
    %v272 = vld [vmem:[#allocation2 + $0x220] sm:$0xff]
    %v273 = vld [vmem:[#allocation2 + $0x228] sm:$0xff]
    %v274 = vld [vmem:[#allocation2 + $0x230] sm:$0xff]
    %v275 = vld [vmem:[#allocation2 + $0x238] sm:$0xff]
    %v276 = vld [vmem:[#allocation2 + $0x240] sm:$0xff]
    %v277 = vld [vmem:[#allocation2 + $0x248] sm:$0xff]
    %v278 = vld [vmem:[#allocation2 + $0x250] sm:$0xff]
    %v279 = vld [vmem:[#allocation2 + $0x258] sm:$0xff]
    %v280 = vld [vmem:[#allocation2 + $0x260] sm:$0xff]
    %v281 = vld [vmem:[#allocation2 + $0x268] sm:$0xff]
    %v282 = vld [vmem:[#allocation2 + $0x270] sm:$0xff]
    %v283 = vld [vmem:[#allocation2 + $0x278] sm:$0xff]
    %v284 = vld [vmem:[#allocation2 + $0x280] sm:$0xff]
    %v285 = vld [vmem:[#allocation2 + $0x288] sm:$0xff]
    %v286 = vld [vmem:[#allocation2 + $0x290] sm:$0xff]
    %v287 = vld [vmem:[#allocation2 + $0x298] sm:$0xff]
    %v288 = vld [vmem:[#allocation2 + $0x2a0] sm:$0xff]
    %v289 = vld [vmem:[#allocation2 + $0x2a8] sm:$0xff]
    %v290 = vld [vmem:[#allocation2 + $0x2b0] sm:$0xff]
    %v291 = vld [vmem:[#allocation2 + $0x2b8] sm:$0xff]
    %v292 = vld [vmem:[#allocation2 + $0x2c0] sm:$0xff]
    %v293 = vld [vmem:[#allocation2 + $0x2c8] sm:$0xff]
    %v294 = vld [vmem:[#allocation2 + $0x2d0] sm:$0xff]
    %v295 = vld [vmem:[#allocation2 + $0x2d8] sm:$0xff]
    %v296 = vld [vmem:[#allocation2 + $0x2e0] sm:$0xff]
    %v297 = vld [vmem:[#allocation2 + $0x2e8] sm:$0xff]
    %v298 = vld [vmem:[#allocation2 + $0x2f0] sm:$0xff]
    %v299 = vld [vmem:[#allocation2 + $0x2f8] sm:$0xff]
    %v300 = vld [vmem:[#allocation2 + $0x300] sm:$0xff]
    %v301 = vld [vmem:[#allocation2 + $0x308] sm:$0xff]
    %v302 = vld [vmem:[#allocation2 + $0x310] sm:$0xff]
    %v303 = vld [vmem:[#allocation2 + $0x318] sm:$0xff]
    %v304 = vld [vmem:[#allocation2 + $0x320] sm:$0xff]
    %v305 = vld [vmem:[#allocation2 + $0x328] sm:$0xff]
    %v306 = vld [vmem:[#allocation2 + $0x330] sm:$0xff]
    %v307 = vld [vmem:[#allocation2 + $0x338] sm:$0xff]
    %v308 = vld [vmem:[#allocation2 + $0x340] sm:$0xff]
    %v309 = vld [vmem:[#allocation2 + $0x348] sm:$0xff]
    %v310 = vld [vmem:[#allocation2 + $0x350] sm:$0xff]
    %v311 = vld [vmem:[#allocation2 + $0x358] sm:$0xff]
    %v312 = vld [vmem:[#allocation2 + $0x360] sm:$0xff]
    %v313 = vld [vmem:[#allocation2 + $0x368] sm:$0xff]
    %v314 = vld [vmem:[#allocation2 + $0x370] sm:$0xff]
    %v315 = vld [vmem:[#allocation2 + $0x378] sm:$0xff]
    %v316 = vld [vmem:[#allocation2 + $0x380] sm:$0xff]
    %v317 = vld [vmem:[#allocation2 + $0x388] sm:$0xff]
    %v318 = vld [vmem:[#allocation2 + $0x390] sm:$0xff]
    %v319 = vld [vmem:[#allocation2 + $0x398] sm:$0xff]
    %v320 = vld [vmem:[#allocation2 + $0x3a0] sm:$0xff]
    %v321 = vld [vmem:[#allocation2 + $0x3a8] sm:$0xff]
    %v322 = vld [vmem:[#allocation2 + $0x3b0] sm:$0xff]
    %v323 = vld [vmem:[#allocation2 + $0x3b8] sm:$0xff]
    %v324 = vld [vmem:[#allocation2 + $0x3c0] sm:$0xff]
    %v325 = vld [vmem:[#allocation2 + $0x3c8] sm:$0xff]
    %v326 = vld [vmem:[#allocation2 + $0x3d0] sm:$0xff]
    %v327 = vld [vmem:[#allocation2 + $0x3d8] sm:$0xff]
    %v328 = vld [vmem:[#allocation2 + $0x3e0] sm:$0x33]
    %v329 = vld [vmem:[#allocation2 + $0x3e8] sm:$0x33]
    %v330 = vld [vmem:[%s4] sm:$0xf]
    %v332 = vperm.slane %v330, 0
    %v333 = vperm.slane %v330, 1
    %v334 = vperm.slane %v330, 2
    %v335 = vperm.slane %v330, 3
    %v466 = vunpack.c.l.b16 %v204
    %v467 = vunpack.c.h.b16 %v204
    %v468 = vunpack.c.l.b16 %v205
    %v469 = vunpack.c.h.b16 %v205
    %v470 = vunpack.c.l.b16 %v206
    %v471 = vunpack.c.h.b16 %v206
    %v472 = vunpack.c.l.b16 %v207
    %v473 = vunpack.c.h.b16 %v207
    %v474 = vunpack.c.l.b16 %v208
    %v475 = vunpack.c.h.b16 %v208
    %v476 = vunpack.c.l.b16 %v209
    %v477 = vunpack.c.h.b16 %v209
    %v478 = vunpack.c.l.b16 %v210
    %v479 = vunpack.c.h.b16 %v210
    %v480 = vunpack.c.l.b16 %v211
    %v481 = vunpack.c.h.b16 %v211
    %v482 = vunpack.c.l.b16 %v212
    %v483 = vunpack.c.h.b16 %v212
    %v484 = vunpack.c.l.b16 %v213
    %v485 = vunpack.c.h.b16 %v213
    %v486 = vunpack.c.l.b16 %v214
    %v487 = vunpack.c.h.b16 %v214
    %v488 = vunpack.c.l.b16 %v215
    %v489 = vunpack.c.h.b16 %v215
    %v490 = vunpack.c.l.b16 %v216
    %v491 = vunpack.c.h.b16 %v216
    %v492 = vunpack.c.l.b16 %v217
    %v493 = vunpack.c.h.b16 %v217
    %v494 = vunpack.c.l.b16 %v218
    %v495 = vunpack.c.h.b16 %v218
    %v496 = vunpack.c.l.b16 %v219
    %v497 = vunpack.c.h.b16 %v219
    %v498 = vunpack.c.l.b16 %v220
    %v499 = vunpack.c.h.b16 %v220
    %v500 = vunpack.c.l.b16 %v221
    %v501 = vunpack.c.h.b16 %v221
    %v502 = vunpack.c.l.b16 %v222
    %v503 = vunpack.c.h.b16 %v222
    %v504 = vunpack.c.l.b16 %v223
    %v505 = vunpack.c.h.b16 %v223
    %v506 = vunpack.c.l.b16 %v224
    %v507 = vunpack.c.h.b16 %v224
    %v508 = vunpack.c.l.b16 %v225
    %v509 = vunpack.c.h.b16 %v225
    %v510 = vunpack.c.l.b16 %v226
    %v511 = vunpack.c.h.b16 %v226
    %v512 = vunpack.c.l.b16 %v227
    %v513 = vunpack.c.h.b16 %v227
    %v514 = vunpack.c.l.b16 %v228
    %v515 = vunpack.c.h.b16 %v228
    %v516 = vunpack.c.l.b16 %v229
    %v517 = vunpack.c.h.b16 %v229
    %v518 = vunpack.c.l.b16 %v230
    %v519 = vunpack.c.h.b16 %v230
    %v520 = vunpack.c.l.b16 %v231
    %v521 = vunpack.c.h.b16 %v231
    %v522 = vunpack.c.l.b16 %v232
    %v523 = vunpack.c.h.b16 %v232
    %v524 = vunpack.c.l.b16 %v233
    %v525 = vunpack.c.h.b16 %v233
    %v526 = vunpack.c.l.b16 %v234
    %v527 = vunpack.c.h.b16 %v234
    %v528 = vunpack.c.l.b16 %v235
    %v529 = vunpack.c.h.b16 %v235
    %v530 = vunpack.c.l.b16 %v236
    %v531 = vunpack.c.h.b16 %v236
    %v532 = vunpack.c.l.b16 %v237
    %v533 = vunpack.c.h.b16 %v237
    %v534 = vunpack.c.l.b16 %v238
    %v535 = vunpack.c.h.b16 %v238
    %v536 = vunpack.c.l.b16 %v239
    %v537 = vunpack.c.h.b16 %v239
    %v538 = vunpack.c.l.b16 %v240
    %v539 = vunpack.c.h.b16 %v240
    %v540 = vunpack.c.l.b16 %v241
    %v541 = vunpack.c.h.b16 %v241
    %v542 = vunpack.c.l.b16 %v242
    %v543 = vunpack.c.h.b16 %v242
    %v544 = vunpack.c.l.b16 %v243
    %v545 = vunpack.c.h.b16 %v243
    %v546 = vunpack.c.l.b16 %v244
    %v547 = vunpack.c.h.b16 %v244
    %v548 = vunpack.c.l.b16 %v245
    %v549 = vunpack.c.h.b16 %v245
    %v550 = vunpack.c.l.b16 %v246
    %v551 = vunpack.c.h.b16 %v246
    %v552 = vunpack.c.l.b16 %v247
    %v553 = vunpack.c.h.b16 %v247
    %v554 = vunpack.c.l.b16 %v248
    %v555 = vunpack.c.h.b16 %v248
    %v556 = vunpack.c.l.b16 %v249
    %v557 = vunpack.c.h.b16 %v249
    %v558 = vunpack.c.l.b16 %v250
    %v559 = vunpack.c.h.b16 %v250
    %v560 = vunpack.c.l.b16 %v251
    %v561 = vunpack.c.h.b16 %v251
    %v562 = vunpack.c.l.b16 %v252
    %v563 = vunpack.c.h.b16 %v252
    %v564 = vunpack.c.l.b16 %v253
    %v565 = vunpack.c.h.b16 %v253
    %v566 = vunpack.c.l.b16 %v254
    %v567 = vunpack.c.h.b16 %v254
    %v568 = vunpack.c.l.b16 %v255
    %v569 = vunpack.c.h.b16 %v255
    %v570 = vunpack.c.l.b16 %v256
    %v571 = vunpack.c.h.b16 %v256
    %v572 = vunpack.c.l.b16 %v257
    %v573 = vunpack.c.h.b16 %v257
    %v574 = vunpack.c.l.b16 %v258
    %v575 = vunpack.c.h.b16 %v258
    %v576 = vunpack.c.l.b16 %v259
    %v577 = vunpack.c.h.b16 %v259
    %v578 = vunpack.c.l.b16 %v260
    %v579 = vunpack.c.h.b16 %v260
    %v580 = vunpack.c.l.b16 %v261
    %v581 = vunpack.c.h.b16 %v261
    %v582 = vunpack.c.l.b16 %v262
    %v583 = vunpack.c.h.b16 %v262
    %v584 = vunpack.c.l.b16 %v263
    %v585 = vunpack.c.h.b16 %v263
    %v586 = vunpack.c.l.b16 %v264
    %v587 = vunpack.c.h.b16 %v264
    %v588 = vunpack.c.l.b16 %v265
    %v589 = vunpack.c.h.b16 %v265
    %v590 = vunpack.c.l.b16 %v266
    %v591 = vunpack.c.h.b16 %v266
    %v592 = vunpack.c.l.b16 %v267
    %v593 = vunpack.c.h.b16 %v267
    %v594 = vunpack.c.l.b16 %v268
    %v595 = vunpack.c.h.b16 %v268
    %v596 = vunpack.c.l.b16 %v269
    %v597 = vunpack.c.h.b16 %v269
    %v598 = vunpack.c.l.b16 %v270
    %v599 = vunpack.c.h.b16 %v270
    %v600 = vunpack.c.l.b16 %v271
    %v601 = vunpack.c.h.b16 %v271
    %v602 = vunpack.c.l.b16 %v272
    %v603 = vunpack.c.h.b16 %v272
    %v604 = vunpack.c.l.b16 %v273
    %v605 = vunpack.c.h.b16 %v273
    %v606 = vunpack.c.l.b16 %v274
    %v607 = vunpack.c.h.b16 %v274
    %v608 = vunpack.c.l.b16 %v275
    %v609 = vunpack.c.h.b16 %v275
    %v610 = vunpack.c.l.b16 %v276
    %v611 = vunpack.c.h.b16 %v276
    %v612 = vunpack.c.l.b16 %v277
    %v613 = vunpack.c.h.b16 %v277
    %v614 = vunpack.c.l.b16 %v278
    %v615 = vunpack.c.h.b16 %v278
    %v616 = vunpack.c.l.b16 %v279
    %v617 = vunpack.c.h.b16 %v279
    %v618 = vunpack.c.l.b16 %v280
    %v619 = vunpack.c.h.b16 %v280
    %v620 = vunpack.c.l.b16 %v281
    %v621 = vunpack.c.h.b16 %v281
    %v622 = vunpack.c.l.b16 %v282
    %v623 = vunpack.c.h.b16 %v282
    %v624 = vunpack.c.l.b16 %v283
    %v625 = vunpack.c.h.b16 %v283
    %v626 = vunpack.c.l.b16 %v284
    %v627 = vunpack.c.h.b16 %v284
    %v628 = vunpack.c.l.b16 %v285
    %v629 = vunpack.c.h.b16 %v285
    %v630 = vunpack.c.l.b16 %v286
    %v631 = vunpack.c.h.b16 %v286
    %v632 = vunpack.c.l.b16 %v287
    %v633 = vunpack.c.h.b16 %v287
    %v634 = vunpack.c.l.b16 %v288
    %v635 = vunpack.c.h.b16 %v288
    %v636 = vunpack.c.l.b16 %v289
    %v637 = vunpack.c.h.b16 %v289
    %v638 = vunpack.c.l.b16 %v290
    %v639 = vunpack.c.h.b16 %v290
    %v640 = vunpack.c.l.b16 %v291
    %v641 = vunpack.c.h.b16 %v291
    %v642 = vunpack.c.l.b16 %v292
    %v643 = vunpack.c.h.b16 %v292
    %v644 = vunpack.c.l.b16 %v293
    %v645 = vunpack.c.h.b16 %v293
    %v646 = vunpack.c.l.b16 %v294
    %v647 = vunpack.c.h.b16 %v294
    %v648 = vunpack.c.l.b16 %v295
    %v649 = vunpack.c.h.b16 %v295
    %v650 = vunpack.c.l.b16 %v296
    %v651 = vunpack.c.h.b16 %v296
    %v652 = vunpack.c.l.b16 %v297
    %v653 = vunpack.c.h.b16 %v297
    %v654 = vunpack.c.l.b16 %v298
    %v655 = vunpack.c.h.b16 %v298
    %v656 = vunpack.c.l.b16 %v299
    %v657 = vunpack.c.h.b16 %v299
    %v658 = vunpack.c.l.b16 %v300
    %v659 = vunpack.c.h.b16 %v300
    %v660 = vunpack.c.l.b16 %v301
    %v661 = vunpack.c.h.b16 %v301
    %v662 = vunpack.c.l.b16 %v302
    %v663 = vunpack.c.h.b16 %v302
    %v664 = vunpack.c.l.b16 %v303
    %v665 = vunpack.c.h.b16 %v303
    %v666 = vunpack.c.l.b16 %v304
    %v667 = vunpack.c.h.b16 %v304
    %v668 = vunpack.c.l.b16 %v305
    %v669 = vunpack.c.h.b16 %v305
    %v670 = vunpack.c.l.b16 %v306
    %v671 = vunpack.c.h.b16 %v306
    %v672 = vunpack.c.l.b16 %v307
    %v673 = vunpack.c.h.b16 %v307
    %v674 = vunpack.c.l.b16 %v308
    %v675 = vunpack.c.h.b16 %v308
    %v676 = vunpack.c.l.b16 %v309
    %v677 = vunpack.c.h.b16 %v309
    %v678 = vunpack.c.l.b16 %v310
    %v679 = vunpack.c.h.b16 %v310
    %v680 = vunpack.c.l.b16 %v311
    %v681 = vunpack.c.h.b16 %v311
    %v682 = vunpack.c.l.b16 %v312
    %v683 = vunpack.c.h.b16 %v312
    %v684 = vunpack.c.l.b16 %v313
    %v685 = vunpack.c.h.b16 %v313
    %v686 = vunpack.c.l.b16 %v314
    %v687 = vunpack.c.h.b16 %v314
    %v688 = vunpack.c.l.b16 %v315
    %v689 = vunpack.c.h.b16 %v315
    %v690 = vunpack.c.l.b16 %v316
    %v691 = vunpack.c.h.b16 %v316
    %v692 = vunpack.c.l.b16 %v317
    %v693 = vunpack.c.h.b16 %v317
    %v694 = vunpack.c.l.b16 %v318
    %v695 = vunpack.c.h.b16 %v318
    %v696 = vunpack.c.l.b16 %v319
    %v697 = vunpack.c.h.b16 %v319
    %v698 = vunpack.c.l.b16 %v320
    %v699 = vunpack.c.h.b16 %v320
    %v700 = vunpack.c.l.b16 %v321
    %v701 = vunpack.c.h.b16 %v321
    %v702 = vunpack.c.l.b16 %v322
    %v703 = vunpack.c.h.b16 %v322
    %v704 = vunpack.c.l.b16 %v323
    %v705 = vunpack.c.h.b16 %v323
    %v706 = vunpack.c.l.b16 %v324
    %v707 = vunpack.c.h.b16 %v324
    %v708 = vunpack.c.l.b16 %v325
    %v709 = vunpack.c.h.b16 %v325
    %v710 = vunpack.c.l.b16 %v326
    %v711 = vunpack.c.h.b16 %v326
    %v712 = vunpack.c.l.b16 %v327
    %v713 = vunpack.c.h.b16 %v327
    %v714 = vunpack.c.l.b16 %v328
    %v715 = vunpack.c.h.b16 %v328
    %v716 = vunpack.c.l.b16 %v329
    %v717 = vunpack.c.h.b16 %v329
    %v718 = vpack.c.b16 %v470, %v466
    %v719 = vpack.c.b16 %v471, %v467
    %v720 = vpack.c.b16 %v472, %v468
    %v721 = vpack.c.b16 %v473, %v469
    %v722 = vpack.c.b16 %v478, %v474
    %v723 = vpack.c.b16 %v479, %v475
    %v724 = vpack.c.b16 %v480, %v476
    %v725 = vpack.c.b16 %v481, %v477
    %v726 = vpack.c.b16 %v486, %v482
    %v727 = vpack.c.b16 %v487, %v483
    %v728 = vpack.c.b16 %v488, %v484
    %v729 = vpack.c.b16 %v489, %v485
    %v730 = vpack.c.b16 %v494, %v490
    %v731 = vpack.c.b16 %v495, %v491
    %v732 = vpack.c.b16 %v496, %v492
    %v733 = vpack.c.b16 %v497, %v493
    %v734 = vpack.c.b16 %v502, %v498
    %v735 = vpack.c.b16 %v503, %v499
    %v736 = vpack.c.b16 %v504, %v500
    %v737 = vpack.c.b16 %v505, %v501
    %v738 = vpack.c.b16 %v510, %v506
    %v739 = vpack.c.b16 %v511, %v507
    %v740 = vpack.c.b16 %v512, %v508
    %v741 = vpack.c.b16 %v513, %v509
    %v742 = vpack.c.b16 %v518, %v514
    %v743 = vpack.c.b16 %v519, %v515
    %v744 = vpack.c.b16 %v520, %v516
    %v745 = vpack.c.b16 %v521, %v517
    %v746 = vpack.c.b16 %v526, %v522
    %v747 = vpack.c.b16 %v527, %v523
    %v748 = vpack.c.b16 %v528, %v524
    %v749 = vpack.c.b16 %v529, %v525
    %v750 = vpack.c.b16 %v534, %v530
    %v751 = vpack.c.b16 %v535, %v531
    %v752 = vpack.c.b16 %v536, %v532
    %v753 = vpack.c.b16 %v537, %v533
    %v754 = vpack.c.b16 %v542, %v538
    %v755 = vpack.c.b16 %v543, %v539
    %v756 = vpack.c.b16 %v544, %v540
    %v757 = vpack.c.b16 %v545, %v541
    %v758 = vpack.c.b16 %v550, %v546
    %v759 = vpack.c.b16 %v551, %v547
    %v760 = vpack.c.b16 %v552, %v548
    %v761 = vpack.c.b16 %v553, %v549
    %v762 = vpack.c.b16 %v558, %v554
    %v763 = vpack.c.b16 %v559, %v555
    %v764 = vpack.c.b16 %v560, %v556
    %v765 = vpack.c.b16 %v561, %v557
    %v766 = vpack.c.b16 %v566, %v562
    %v767 = vpack.c.b16 %v567, %v563
    %v768 = vpack.c.b16 %v568, %v564
    %v769 = vpack.c.b16 %v569, %v565
    %v770 = vpack.c.b16 %v574, %v570
    %v771 = vpack.c.b16 %v575, %v571
    %v772 = vpack.c.b16 %v576, %v572
    %v773 = vpack.c.b16 %v577, %v573
    %v774 = vpack.c.b16 %v582, %v578
    %v775 = vpack.c.b16 %v583, %v579
    %v776 = vpack.c.b16 %v584, %v580
    %v777 = vpack.c.b16 %v585, %v581
    %v778 = vpack.c.b16 %v590, %v586
    %v779 = vpack.c.b16 %v591, %v587
    %v780 = vpack.c.b16 %v592, %v588
    %v781 = vpack.c.b16 %v593, %v589
    %v782 = vpack.c.b16 %v598, %v594
    %v783 = vpack.c.b16 %v599, %v595
    %v784 = vpack.c.b16 %v600, %v596
    %v785 = vpack.c.b16 %v601, %v597
    %v786 = vpack.c.b16 %v606, %v602
    %v787 = vpack.c.b16 %v607, %v603
    %v788 = vpack.c.b16 %v608, %v604
    %v789 = vpack.c.b16 %v609, %v605
    %v790 = vpack.c.b16 %v614, %v610
    %v791 = vpack.c.b16 %v615, %v611
    %v792 = vpack.c.b16 %v616, %v612
    %v793 = vpack.c.b16 %v617, %v613
    %v794 = vpack.c.b16 %v622, %v618
    %v795 = vpack.c.b16 %v623, %v619
    %v796 = vpack.c.b16 %v624, %v620
    %v797 = vpack.c.b16 %v625, %v621
    %v798 = vpack.c.b16 %v630, %v626
    %v799 = vpack.c.b16 %v631, %v627
    %v800 = vpack.c.b16 %v632, %v628
    %v801 = vpack.c.b16 %v633, %v629
    %v802 = vpack.c.b16 %v638, %v634
    %v803 = vpack.c.b16 %v639, %v635
    %v804 = vpack.c.b16 %v640, %v636
    %v805 = vpack.c.b16 %v641, %v637
    %v806 = vpack.c.b16 %v646, %v642
    %v807 = vpack.c.b16 %v647, %v643
    %v808 = vpack.c.b16 %v648, %v644
    %v809 = vpack.c.b16 %v649, %v645
    %v810 = vpack.c.b16 %v654, %v650
    %v811 = vpack.c.b16 %v655, %v651
    %v812 = vpack.c.b16 %v656, %v652
    %v813 = vpack.c.b16 %v657, %v653
    %v814 = vpack.c.b16 %v662, %v658
    %v815 = vpack.c.b16 %v663, %v659
    %v816 = vpack.c.b16 %v664, %v660
    %v817 = vpack.c.b16 %v665, %v661
    %v818 = vpack.c.b16 %v670, %v666
    %v819 = vpack.c.b16 %v671, %v667
    %v820 = vpack.c.b16 %v672, %v668
    %v821 = vpack.c.b16 %v673, %v669
    %v822 = vpack.c.b16 %v678, %v674
    %v823 = vpack.c.b16 %v679, %v675
    %v824 = vpack.c.b16 %v680, %v676
    %v825 = vpack.c.b16 %v681, %v677
    %v826 = vpack.c.b16 %v686, %v682
    %v827 = vpack.c.b16 %v687, %v683
    %v828 = vpack.c.b16 %v688, %v684
    %v829 = vpack.c.b16 %v689, %v685
    %v830 = vpack.c.b16 %v694, %v690
    %v831 = vpack.c.b16 %v695, %v691
    %v832 = vpack.c.b16 %v696, %v692
    %v833 = vpack.c.b16 %v697, %v693
    %v834 = vpack.c.b16 %v702, %v698
    %v835 = vpack.c.b16 %v703, %v699
    %v836 = vpack.c.b16 %v704, %v700
    %v837 = vpack.c.b16 %v705, %v701
    %v838 = vpack.c.b16 %v710, %v706
    %v839 = vpack.c.b16 %v711, %v707
    %v840 = vpack.c.b16 %v712, %v708
    %v841 = vpack.c.b16 %v713, %v709
    %v842 = vpack.c.b16 %v714, %v714
    %v843 = vpack.c.b16 %v715, %v715
    %v844 = vpack.c.b16 %v716, %v716
    %v845 = vpack.c.b16 %v717, %v717
    %vm970 = vcmask 949248
    %v972 = vsel %vm970, %v203, 0
    %vm974 = vcmask 1041408
    %v976 = vsel %vm974, %v842, 0
    %v979 = vsel %vm974, %v843, 0
    %v982 = vsel %vm974, %v844, 0
    %v985 = vsel %vm974, %v845, 0
    %987 = vmatpush.bf16.msra.mxu0 %v746
    %988 = vmatpush.bf16.msra.mxu0 %v742
    %989 = vmatpush.bf16.msra.mxu0 %v738
    %990 = vmatpush.bf16.msra.mxu0 %v734
    %991 = vmatpush.bf16.msra.mxu0 %v730
    %992 = vmatpush.bf16.msra.mxu0 %v726
    %993 = vmatpush.bf16.msra.mxu0 %v722
    %994 = vmatpush.bf16.msra.mxu0 %v718
    %995 = vmatmul.bf16.gmra.mxu0 %v200
    %v996 = vpop.f32.mrf.mxu0
    %v997 = vadd.f32 %v332, %v996
    %v998 = vpop.f32.mrf.mxu0
    %v999 = vadd.f32 %v332, %v998
    %1000 = vdwg.mxu0
    %1001 = vmatpush.bf16.msra.mxu0 %v778
    %1002 = vmatpush.bf16.msra.mxu0 %v774
    %1003 = vmatpush.bf16.msra.mxu0 %v770
    %1004 = vmatpush.bf16.msra.mxu0 %v766
    %1005 = vmatpush.bf16.msra.mxu0 %v762
    %1006 = vmatpush.bf16.msra.mxu0 %v758
    %1007 = vmatpush.bf16.msra.mxu0 %v754
    %1008 = vmatpush.bf16.msra.mxu0 %v750
    %1009 = vmatmul.bf16.gmra.mxu0 %v201
    %v1010 = vpop.f32.mrf.mxu0
    %v1011 = vadd.f32 %v997, %v1010
    %v1012 = vpop.f32.mrf.mxu0
    %v1013 = vadd.f32 %v999, %v1012
    %1014 = vdwg.mxu0
    %1015 = vmatpush.bf16.msra.mxu0 %v810
    %1016 = vmatpush.bf16.msra.mxu0 %v806
    %1017 = vmatpush.bf16.msra.mxu0 %v802
    %1018 = vmatpush.bf16.msra.mxu0 %v798
    %1019 = vmatpush.bf16.msra.mxu0 %v794
    %1020 = vmatpush.bf16.msra.mxu0 %v790
    %1021 = vmatpush.bf16.msra.mxu0 %v786
    %1022 = vmatpush.bf16.msra.mxu0 %v782
    %1023 = vmatmul.bf16.gmra.mxu0 %v202
    %v1024 = vpop.f32.mrf.mxu0
    %v1025 = vadd.f32 %v1011, %v1024
    %v1026 = vpop.f32.mrf.mxu0
    %v1027 = vadd.f32 %v1013, %v1026
    %1028 = vdwg.mxu0
    %1029 = vmatpush.bf16.msra.mxu0 %v976
    %1030 = vmatpush.bf16.msra.mxu0 %v838
    %1031 = vmatpush.bf16.msra.mxu0 %v834
    %1032 = vmatpush.bf16.msra.mxu0 %v830
    %1033 = vmatpush.bf16.msra.mxu0 %v826
    %1034 = vmatpush.bf16.msra.mxu0 %v822
    %1035 = vmatpush.bf16.msra.mxu0 %v818
    %1036 = vmatpush.bf16.msra.mxu0 %v814
    %1037 = vmatmul.bf16.gmra.mxu0 %v972
    %v1038 = vpop.f32.mrf.mxu0
    %v1039 = vadd.f32 %v1025, %v1038
    %v1040 = vpop.f32.mrf.mxu0
    %v1041 = vadd.f32 %v1027, %v1040
    %1042 = vdwg.mxu0
    %1043 = vmatpush.bf16.msra.mxu0 %v747
    %1044 = vmatpush.bf16.msra.mxu0 %v743
    %1045 = vmatpush.bf16.msra.mxu0 %v739
    %1046 = vmatpush.bf16.msra.mxu0 %v735
    %1047 = vmatpush.bf16.msra.mxu0 %v731
    %1048 = vmatpush.bf16.msra.mxu0 %v727
    %1049 = vmatpush.bf16.msra.mxu0 %v723
    %1050 = vmatpush.bf16.msra.mxu0 %v719
    %1051 = vmatmul.bf16.gmra.mxu0 %v200
    %v1052 = vpop.f32.mrf.mxu0
    %v1053 = vadd.f32 %v333, %v1052
    %v1054 = vpop.f32.mrf.mxu0
    %v1055 = vadd.f32 %v333, %v1054
    %1056 = vdwg.mxu0
    %1057 = vmatpush.bf16.msra.mxu0 %v779
    %1058 = vmatpush.bf16.msra.mxu0 %v775
    %1059 = vmatpush.bf16.msra.mxu0 %v771
    %1060 = vmatpush.bf16.msra.mxu0 %v767
    %1061 = vmatpush.bf16.msra.mxu0 %v763
    %1062 = vmatpush.bf16.msra.mxu0 %v759
    %1063 = vmatpush.bf16.msra.mxu0 %v755
    %1064 = vmatpush.bf16.msra.mxu0 %v751
    %1065 = vmatmul.bf16.gmra.mxu0 %v201
    %v1066 = vpop.f32.mrf.mxu0
    %v1067 = vadd.f32 %v1053, %v1066
    %v1068 = vpop.f32.mrf.mxu0
    %v1069 = vadd.f32 %v1055, %v1068
    %1070 = vdwg.mxu0
    %1071 = vmatpush.bf16.msra.mxu0 %v811
    %1072 = vmatpush.bf16.msra.mxu0 %v807
    %1073 = vmatpush.bf16.msra.mxu0 %v803
    %1074 = vmatpush.bf16.msra.mxu0 %v799
    %1075 = vmatpush.bf16.msra.mxu0 %v795
    %1076 = vmatpush.bf16.msra.mxu0 %v791
    %1077 = vmatpush.bf16.msra.mxu0 %v787
    %1078 = vmatpush.bf16.msra.mxu0 %v783
    %1079 = vmatmul.bf16.gmra.mxu0 %v202
    %v1080 = vpop.f32.mrf.mxu0
    %v1081 = vadd.f32 %v1067, %v1080
    %v1082 = vpop.f32.mrf.mxu0
    %v1083 = vadd.f32 %v1069, %v1082
    %1084 = vdwg.mxu0
    %1085 = vmatpush.bf16.msra.mxu0 %v979
    %1086 = vmatpush.bf16.msra.mxu0 %v839
    %1087 = vmatpush.bf16.msra.mxu0 %v835
    %1088 = vmatpush.bf16.msra.mxu0 %v831
    %1089 = vmatpush.bf16.msra.mxu0 %v827
    %1090 = vmatpush.bf16.msra.mxu0 %v823
    %1091 = vmatpush.bf16.msra.mxu0 %v819
    %1092 = vmatpush.bf16.msra.mxu0 %v815
    %1093 = vmatmul.bf16.gmra.mxu0 %v972
    %v1094 = vpop.f32.mrf.mxu0
    %v1095 = vadd.f32 %v1081, %v1094
    %v1096 = vpop.f32.mrf.mxu0
    %v1097 = vadd.f32 %v1083, %v1096
    %1098 = vdwg.mxu0
    %1099 = vmatpush.bf16.msra.mxu0 %v748
    %1100 = vmatpush.bf16.msra.mxu0 %v744
    %1101 = vmatpush.bf16.msra.mxu0 %v740
    %1102 = vmatpush.bf16.msra.mxu0 %v736
    %1103 = vmatpush.bf16.msra.mxu0 %v732
    %1104 = vmatpush.bf16.msra.mxu0 %v728
    %1105 = vmatpush.bf16.msra.mxu0 %v724
    %1106 = vmatpush.bf16.msra.mxu0 %v720
    %1107 = vmatmul.bf16.gmra.mxu0 %v200
    %v1108 = vpop.f32.mrf.mxu0
    %v1109 = vadd.f32 %v334, %v1108
    %v1110 = vpop.f32.mrf.mxu0
    %v1111 = vadd.f32 %v334, %v1110
    %1112 = vdwg.mxu0
    %1113 = vmatpush.bf16.msra.mxu0 %v780
    %1114 = vmatpush.bf16.msra.mxu0 %v776
    %1115 = vmatpush.bf16.msra.mxu0 %v772
    %1116 = vmatpush.bf16.msra.mxu0 %v768
    %1117 = vmatpush.bf16.msra.mxu0 %v764
    %1118 = vmatpush.bf16.msra.mxu0 %v760
    %1119 = vmatpush.bf16.msra.mxu0 %v756
    %1120 = vmatpush.bf16.msra.mxu0 %v752
    %1121 = vmatmul.bf16.gmra.mxu0 %v201
    %v1122 = vpop.f32.mrf.mxu0
    %v1123 = vadd.f32 %v1109, %v1122
    %v1124 = vpop.f32.mrf.mxu0
    %v1125 = vadd.f32 %v1111, %v1124
    %1126 = vdwg.mxu0
    %1127 = vmatpush.bf16.msra.mxu0 %v812
    %1128 = vmatpush.bf16.msra.mxu0 %v808
    %1129 = vmatpush.bf16.msra.mxu0 %v804
    %1130 = vmatpush.bf16.msra.mxu0 %v800
    %1131 = vmatpush.bf16.msra.mxu0 %v796
    %1132 = vmatpush.bf16.msra.mxu0 %v792
    %1133 = vmatpush.bf16.msra.mxu0 %v788
    %1134 = vmatpush.bf16.msra.mxu0 %v784
    %1135 = vmatmul.bf16.gmra.mxu0 %v202
    %v1136 = vpop.f32.mrf.mxu0
    %v1137 = vadd.f32 %v1123, %v1136
    %v1138 = vpop.f32.mrf.mxu0
    %v1139 = vadd.f32 %v1125, %v1138
    %1140 = vdwg.mxu0
    %1141 = vmatpush.bf16.msra.mxu0 %v982
    %1142 = vmatpush.bf16.msra.mxu0 %v840
    %1143 = vmatpush.bf16.msra.mxu0 %v836
    %1144 = vmatpush.bf16.msra.mxu0 %v832
    %1145 = vmatpush.bf16.msra.mxu0 %v828
    %1146 = vmatpush.bf16.msra.mxu0 %v824
    %1147 = vmatpush.bf16.msra.mxu0 %v820
    %1148 = vmatpush.bf16.msra.mxu0 %v816
    %1149 = vmatmul.bf16.gmra.mxu0 %v972
    %v1150 = vpop.f32.mrf.mxu0
    %v1151 = vadd.f32 %v1137, %v1150
    %v1152 = vpop.f32.mrf.mxu0
    %v1153 = vadd.f32 %v1139, %v1152
    %1154 = vdwg.mxu0
    %1155 = vmatpush.bf16.msra.mxu0 %v749
    %1156 = vmatpush.bf16.msra.mxu0 %v745
    %1157 = vmatpush.bf16.msra.mxu0 %v741
    %1158 = vmatpush.bf16.msra.mxu0 %v737
    %1159 = vmatpush.bf16.msra.mxu0 %v733
    %1160 = vmatpush.bf16.msra.mxu0 %v729
    %1161 = vmatpush.bf16.msra.mxu0 %v725
    %1162 = vmatpush.bf16.msra.mxu0 %v721
    %1163 = vmatmul.bf16.gmra.mxu0 %v200
    %v1164 = vpop.f32.mrf.mxu0
    %v1165 = vadd.f32 %v335, %v1164
    %v1166 = vpop.f32.mrf.mxu0
    %v1167 = vadd.f32 %v335, %v1166
    %1168 = vdwg.mxu0
    %1169 = vmatpush.bf16.msra.mxu0 %v781
    %1170 = vmatpush.bf16.msra.mxu0 %v777
    %1171 = vmatpush.bf16.msra.mxu0 %v773
    %1172 = vmatpush.bf16.msra.mxu0 %v769
    %1173 = vmatpush.bf16.msra.mxu0 %v765
    %1174 = vmatpush.bf16.msra.mxu0 %v761
    %1175 = vmatpush.bf16.msra.mxu0 %v757
    %1176 = vmatpush.bf16.msra.mxu0 %v753
    %1177 = vmatmul.bf16.gmra.mxu0 %v201
    %v1178 = vpop.f32.mrf.mxu0
    %v1179 = vadd.f32 %v1165, %v1178
    %v1180 = vpop.f32.mrf.mxu0
    %v1181 = vadd.f32 %v1167, %v1180
    %1182 = vdwg.mxu0
    %1183 = vmatpush.bf16.msra.mxu0 %v813
    %1184 = vmatpush.bf16.msra.mxu0 %v809
    %1185 = vmatpush.bf16.msra.mxu0 %v805
    %1186 = vmatpush.bf16.msra.mxu0 %v801
    %1187 = vmatpush.bf16.msra.mxu0 %v797
    %1188 = vmatpush.bf16.msra.mxu0 %v793
    %1189 = vmatpush.bf16.msra.mxu0 %v789
    %1190 = vmatpush.bf16.msra.mxu0 %v785
    %1191 = vmatmul.bf16.gmra.mxu0 %v202
    %v1192 = vpop.f32.mrf.mxu0
    %v1193 = vadd.f32 %v1179, %v1192
    %v1194 = vpop.f32.mrf.mxu0
    %v1195 = vadd.f32 %v1181, %v1194
    %1196 = vdwg.mxu0
    %1197 = vmatpush.bf16.msra.mxu0 %v985
    %1198 = vmatpush.bf16.msra.mxu0 %v841
    %1199 = vmatpush.bf16.msra.mxu0 %v837
    %1200 = vmatpush.bf16.msra.mxu0 %v833
    %1201 = vmatpush.bf16.msra.mxu0 %v829
    %1202 = vmatpush.bf16.msra.mxu0 %v825
    %1203 = vmatpush.bf16.msra.mxu0 %v821
    %1204 = vmatpush.bf16.msra.mxu0 %v817
    %1205 = vmatmul.bf16.gmra.mxu0 %v972
    %v1206 = vpop.f32.mrf.mxu0
    %v1207 = vadd.f32 %v1193, %v1206
    %v1208 = vpop.f32.mrf.mxu0
    %v1209 = vadd.f32 %v1195, %v1208
    %1210 = vdwg.mxu0
    %v1211 = vtanh.pop %v1039
    %v1212 = vtanh.pop %v1095
    %v1213 = vtanh.pop %v1151
    %v1214 = vtanh.pop %v1207
    %v1215 = vtanh.pop %v1041
    %v1216 = vtanh.pop %v1097
    %v1217 = vtanh.pop %v1153
    %v1218 = vtanh.pop %v1209
    %v1219 = vpack.c.bf16 %v1215, %v1211
    %v1220 = vpack.c.bf16 %v1216, %v1212
    %v1221 = vpack.c.bf16 %v1217, %v1213
    %v1222 = vpack.c.bf16 %v1218, %v1214
    %v1223 = vld [vmem:[%s5] sm:$0xf]
    %v1224 = vld [vmem:[%s5 + $0x4] sm:$0xf]
    %v1225 = vld [vmem:[%s5 + $0x8] sm:$0xf]
    %v1226 = vld [vmem:[%s5 + $0xc] sm:$0xf]
    %v1227 = vld [vmem:[%s5 + $0x10] sm:$0xf]
    %v1228 = vld [vmem:[%s5 + $0x14] sm:$0xf]
    %v1229 = vld [vmem:[%s5 + $0x18] sm:$0xf]
    %v1230 = vld [vmem:[%s5 + $0x1c] sm:$0xf]
    %v1231 = vld [vmem:[%s5 + $0x20] sm:$0xf]
    %v1232 = vld [vmem:[%s5 + $0x24] sm:$0xf]
    %v1233 = vld [vmem:[%s5 + $0x28] sm:$0xf]
    %v1234 = vld [vmem:[%s5 + $0x2c] sm:$0xf]
    %v1235 = vld [vmem:[%s5 + $0x30] sm:$0xf]
    %v1236 = vld [vmem:[%s5 + $0x34] sm:$0xf]
    %v1237 = vld [vmem:[%s5 + $0x38] sm:$0xf]
    %v1238 = vld [vmem:[%s5 + $0x3c] sm:$0xf]
    %v1239 = vld [vmem:[%s5 + $0x40] sm:$0xf]
    %v1240 = vld [vmem:[%s5 + $0x44] sm:$0xf]
    %v1241 = vld [vmem:[%s5 + $0x48] sm:$0xf]
    %v1242 = vld [vmem:[%s5 + $0x4c] sm:$0xf]
    %v1243 = vld [vmem:[%s5 + $0x50] sm:$0xf]
    %v1244 = vld [vmem:[%s5 + $0x54] sm:$0xf]
    %v1245 = vld [vmem:[%s5 + $0x58] sm:$0xf]
    %v1246 = vld [vmem:[%s5 + $0x5c] sm:$0xf]
    %v1247 = vld [vmem:[%s5 + $0x60] sm:$0xf]
    %v1248 = vld [vmem:[%s5 + $0x64] sm:$0xf]
    %v1249 = vld [vmem:[%s5 + $0x68] sm:$0xf]
    %v1250 = vld [vmem:[%s5 + $0x6c] sm:$0xf]
    %v1251 = vld [vmem:[%s5 + $0x70] sm:$0xf]
    %v1252 = vld [vmem:[%s5 + $0x74] sm:$0xf]
    %v1253 = vld [vmem:[%s5 + $0x78] sm:$0xf]
    %v1254 = vld [vmem:[%s5 + $0x7c] sm:$0xf]
    %v1255 = vld [vmem:[%s5 + $0x80] sm:$0xf]
    %v1256 = vld [vmem:[%s5 + $0x84] sm:$0xf]
    %v1257 = vld [vmem:[%s5 + $0x88] sm:$0xf]
    %v1258 = vld [vmem:[%s5 + $0x8c] sm:$0xf]
    %v1259 = vld [vmem:[%s5 + $0x90] sm:$0xf]
    %v1260 = vld [vmem:[%s5 + $0x94] sm:$0xf]
    %v1261 = vld [vmem:[%s5 + $0x98] sm:$0xf]
    %v1262 = vld [vmem:[%s5 + $0x9c] sm:$0xf]
    %v1263 = vld [vmem:[%s5 + $0xa0] sm:$0xf]
    %v1264 = vld [vmem:[%s5 + $0xa4] sm:$0xf]
    %v1265 = vld [vmem:[%s5 + $0xa8] sm:$0xf]
    %v1266 = vld [vmem:[%s5 + $0xac] sm:$0xf]
    %v1267 = vld [vmem:[%s5 + $0xb0] sm:$0xf]
    %v1268 = vld [vmem:[%s5 + $0xb4] sm:$0xf]
    %v1269 = vld [vmem:[%s5 + $0xb8] sm:$0xf]
    %v1270 = vld [vmem:[%s5 + $0xbc] sm:$0xf]
    %v1271 = vld [vmem:[%s5 + $0xc0] sm:$0xf]
    %v1272 = vld [vmem:[%s5 + $0xc4] sm:$0xf]
    %v1273 = vld [vmem:[%s5 + $0xc8] sm:$0xf]
    %v1274 = vld [vmem:[%s5 + $0xcc] sm:$0xf]
    %v1275 = vld [vmem:[%s5 + $0xd0] sm:$0xf]
    %v1276 = vld [vmem:[%s5 + $0xd4] sm:$0xf]
    %v1277 = vld [vmem:[%s5 + $0xd8] sm:$0xf]
    %v1278 = vld [vmem:[%s5 + $0xdc] sm:$0xf]
    %v1279 = vld [vmem:[%s5 + $0xe0] sm:$0xf]
    %v1280 = vld [vmem:[%s5 + $0xe4] sm:$0xf]
    %v1281 = vld [vmem:[%s5 + $0xe8] sm:$0xf]
    %v1282 = vld [vmem:[%s5 + $0xec] sm:$0xf]
    %v1283 = vld [vmem:[%s5 + $0xf0] sm:$0xf]
    %v1284 = vld [vmem:[%s5 + $0xf4] sm:$0xf]
    %v1285 = vld [vmem:[%s5 + $0xf8] sm:$0x3]
    %v1286 = vld [vmem:[%s6] sm:$0x1]
    %v1288 = vperm.slane %v1286, 0
    %v1353 = vunpack.c.l.b16 %v1223
    %v1354 = vunpack.c.l.b16 %v1224
    %v1355 = vunpack.c.l.b16 %v1225
    %v1356 = vunpack.c.l.b16 %v1226
    %v1357 = vunpack.c.l.b16 %v1227
    %v1358 = vunpack.c.l.b16 %v1228
    %v1359 = vunpack.c.l.b16 %v1229
    %v1360 = vunpack.c.l.b16 %v1230
    %v1361 = vunpack.c.l.b16 %v1231
    %v1362 = vunpack.c.l.b16 %v1232
    %v1363 = vunpack.c.l.b16 %v1233
    %v1364 = vunpack.c.l.b16 %v1234
    %v1365 = vunpack.c.l.b16 %v1235
    %v1366 = vunpack.c.l.b16 %v1236
    %v1367 = vunpack.c.l.b16 %v1237
    %v1368 = vunpack.c.l.b16 %v1238
    %v1369 = vunpack.c.l.b16 %v1239
    %v1370 = vunpack.c.l.b16 %v1240
    %v1371 = vunpack.c.l.b16 %v1241
    %v1372 = vunpack.c.l.b16 %v1242
    %v1373 = vunpack.c.l.b16 %v1243
    %v1374 = vunpack.c.l.b16 %v1244
    %v1375 = vunpack.c.l.b16 %v1245
    %v1376 = vunpack.c.l.b16 %v1246
    %v1377 = vunpack.c.l.b16 %v1247
    %v1378 = vunpack.c.l.b16 %v1248
    %v1379 = vunpack.c.l.b16 %v1249
    %v1380 = vunpack.c.l.b16 %v1250
    %v1381 = vunpack.c.l.b16 %v1251
    %v1382 = vunpack.c.l.b16 %v1252
    %v1383 = vunpack.c.l.b16 %v1253
    %v1384 = vunpack.c.l.b16 %v1254
    %v1385 = vunpack.c.l.b16 %v1255
    %v1386 = vunpack.c.l.b16 %v1256
    %v1387 = vunpack.c.l.b16 %v1257
    %v1388 = vunpack.c.l.b16 %v1258
    %v1389 = vunpack.c.l.b16 %v1259
    %v1390 = vunpack.c.l.b16 %v1260
    %v1391 = vunpack.c.l.b16 %v1261
    %v1392 = vunpack.c.l.b16 %v1262
    %v1393 = vunpack.c.l.b16 %v1263
    %v1394 = vunpack.c.l.b16 %v1264
    %v1395 = vunpack.c.l.b16 %v1265
    %v1396 = vunpack.c.l.b16 %v1266
    %v1397 = vunpack.c.l.b16 %v1267
    %v1398 = vunpack.c.l.b16 %v1268
    %v1399 = vunpack.c.l.b16 %v1269
    %v1400 = vunpack.c.l.b16 %v1270
    %v1401 = vunpack.c.l.b16 %v1271
    %v1402 = vunpack.c.l.b16 %v1272
    %v1403 = vunpack.c.l.b16 %v1273
    %v1404 = vunpack.c.l.b16 %v1274
    %v1405 = vunpack.c.l.b16 %v1275
    %v1406 = vunpack.c.l.b16 %v1276
    %v1407 = vunpack.c.l.b16 %v1277
    %v1408 = vunpack.c.l.b16 %v1278
    %v1409 = vunpack.c.l.b16 %v1279
    %v1410 = vunpack.c.l.b16 %v1280
    %v1411 = vunpack.c.l.b16 %v1281
    %v1412 = vunpack.c.l.b16 %v1282
    %v1413 = vunpack.c.l.b16 %v1283
    %v1414 = vunpack.c.l.b16 %v1284
    %v1415 = vunpack.c.l.b16 %v1285
    %v1416 = vpack.c.b16 %v1354, %v1353
    %v1417 = vpack.c.b16 %v1356, %v1355
    %v1418 = vpack.c.b16 %v1358, %v1357
    %v1419 = vpack.c.b16 %v1360, %v1359
    %v1420 = vpack.c.b16 %v1362, %v1361
    %v1421 = vpack.c.b16 %v1364, %v1363
    %v1422 = vpack.c.b16 %v1366, %v1365
    %v1423 = vpack.c.b16 %v1368, %v1367
    %v1424 = vpack.c.b16 %v1370, %v1369
    %v1425 = vpack.c.b16 %v1372, %v1371
    %v1426 = vpack.c.b16 %v1374, %v1373
    %v1427 = vpack.c.b16 %v1376, %v1375
    %v1428 = vpack.c.b16 %v1378, %v1377
    %v1429 = vpack.c.b16 %v1380, %v1379
    %v1430 = vpack.c.b16 %v1382, %v1381
    %v1431 = vpack.c.b16 %v1384, %v1383
    %v1432 = vpack.c.b16 %v1386, %v1385
    %v1433 = vpack.c.b16 %v1388, %v1387
    %v1434 = vpack.c.b16 %v1390, %v1389
    %v1435 = vpack.c.b16 %v1392, %v1391
    %v1436 = vpack.c.b16 %v1394, %v1393
    %v1437 = vpack.c.b16 %v1396, %v1395
    %v1438 = vpack.c.b16 %v1398, %v1397
    %v1439 = vpack.c.b16 %v1400, %v1399
    %v1440 = vpack.c.b16 %v1402, %v1401
    %v1441 = vpack.c.b16 %v1404, %v1403
    %v1442 = vpack.c.b16 %v1406, %v1405
    %v1443 = vpack.c.b16 %v1408, %v1407
    %v1444 = vpack.c.b16 %v1410, %v1409
    %v1445 = vpack.c.b16 %v1412, %v1411
    %v1446 = vpack.c.b16 %v1414, %v1413
    %v1447 = vpack.c.b16 %v1415, %v1415
    %v1480 = vsel %vm970, %v1222, 0
    %v1483 = vsel %vm974, %v1447, 0
    %1485 = vmatpush.bf16.msra.mxu0 %v1423
    %1486 = vmatpush.bf16.msra.mxu0 %v1422
    %1487 = vmatpush.bf16.msra.mxu0 %v1421
    %1488 = vmatpush.bf16.msra.mxu0 %v1420
    %1489 = vmatpush.bf16.msra.mxu0 %v1419
    %1490 = vmatpush.bf16.msra.mxu0 %v1418
    %1491 = vmatpush.bf16.msra.mxu0 %v1417
    %1492 = vmatpush.bf16.msra.mxu0 %v1416
    %1493 = vmatmul.bf16.gmra.mxu0 %v1219
    %v1494 = vpop.f32.mrf.mxu0
    %v1495 = vadd.f32 %v1288, %v1494
    %v1496 = vpop.f32.mrf.mxu0
    %v1497 = vadd.f32 %v1288, %v1496
    %1498 = vdwg.mxu0
    %1499 = vmatpush.bf16.msra.mxu0 %v1431
    %1500 = vmatpush.bf16.msra.mxu0 %v1430
    %1501 = vmatpush.bf16.msra.mxu0 %v1429
    %1502 = vmatpush.bf16.msra.mxu0 %v1428
    %1503 = vmatpush.bf16.msra.mxu0 %v1427
    %1504 = vmatpush.bf16.msra.mxu0 %v1426
    %1505 = vmatpush.bf16.msra.mxu0 %v1425
    %1506 = vmatpush.bf16.msra.mxu0 %v1424
    %1507 = vmatmul.bf16.gmra.mxu0 %v1220
    %v1508 = vpop.f32.mrf.mxu0
    %v1509 = vadd.f32 %v1495, %v1508
    %v1510 = vpop.f32.mrf.mxu0
    %v1511 = vadd.f32 %v1497, %v1510
    %1512 = vdwg.mxu0
    %1513 = vmatpush.bf16.msra.mxu0 %v1439
    %1514 = vmatpush.bf16.msra.mxu0 %v1438
    %1515 = vmatpush.bf16.msra.mxu0 %v1437
    %1516 = vmatpush.bf16.msra.mxu0 %v1436
    %1517 = vmatpush.bf16.msra.mxu0 %v1435
    %1518 = vmatpush.bf16.msra.mxu0 %v1434
    %1519 = vmatpush.bf16.msra.mxu0 %v1433
    %1520 = vmatpush.bf16.msra.mxu0 %v1432
    %1521 = vmatmul.bf16.gmra.mxu0 %v1221
    %v1522 = vpop.f32.mrf.mxu0
    %v1523 = vadd.f32 %v1509, %v1522
    %v1524 = vpop.f32.mrf.mxu0
    %v1525 = vadd.f32 %v1511, %v1524
    %1526 = vdwg.mxu0
    %1527 = vmatpush.bf16.msra.mxu0 %v1483
    %1528 = vmatpush.bf16.msra.mxu0 %v1446
    %1529 = vmatpush.bf16.msra.mxu0 %v1445
    %1530 = vmatpush.bf16.msra.mxu0 %v1444
    %1531 = vmatpush.bf16.msra.mxu0 %v1443
    %1532 = vmatpush.bf16.msra.mxu0 %v1442
    %1533 = vmatpush.bf16.msra.mxu0 %v1441
    %1534 = vmatpush.bf16.msra.mxu0 %v1440
    %1535 = vmatmul.bf16.gmra.mxu0 %v1480
    %v1536 = vpop.f32.mrf.mxu0
    %v1537 = vadd.f32 %v1523, %v1536
    %v1538 = vpop.f32.mrf.mxu0
    %v1539 = vadd.f32 %v1525, %v1538
    %1540 = vdwg.mxu0
    %vm1541 = vcmask 261120
    %1542 = vst.msk [vmem:[%s7] sm:$0xff] %vm1541, %v1537
    %1543 = vst.msk [vmem:[%s7 + $0x8] sm:$0xff] %vm1541, %v1539
    // Predicated region
    $region34: #{ltc_sequence_forward.3} parent=1 // pred_check
      _
    $region35: #{ltc_sequence_forward.3} parent=1 // pred_check_branch
      %1545 = sbr.rel (0) target = $region37
    $region36: #{ltc_sequence_forward.3} parent=1 // pred_region
      _
    $region37: #{ltc_sequence_forward.3} parent=1 // pred_fallthru
      _
    // Predicated region
    $region38: #{ltc_sequence_forward.3} parent=1 // pred_check
      _
    $region39: #{ltc_sequence_forward.3} parent=1 // pred_check_branch
      %1547 = sbr.rel (0) target = $region41
    $region40: #{ltc_sequence_forward.3} parent=1 // pred_region
      _
    $region41: #{ltc_sequence_forward.3} parent=1 // pred_fallthru
      _
    %1548 = vsyncpa [#allocation3], 1

</llo_original>
